<compile_context>
chip_gen: v6e
topology: v6e:2x2x1
jax: 0.10.0
libtpu: 0.0.40
codegen_flags: <defaults>
</compile_context>

<pallas_src>
import functools

import jax
import jax.numpy as jnp
from jax.experimental import pallas as pl
from jax.experimental.pallas import tpu as pltpu

_SQRT_HALF = 0.7071067811865476


# --------------------------- in-kernel helpers ------------------------------ #

def _layernorm(x, gamma, beta):
    """torch.nn.LayerNorm: biased variance, eps=1e-5, f32 math."""
    mu = jnp.mean(x, axis=-1, keepdims=True)
    var = jnp.mean(jnp.square(x - mu), axis=-1, keepdims=True)
    return (x - mu) * jax.lax.rsqrt(var + 1e-5) * gamma + beta


def _erf(x):
    # Abramowitz & Stegun 7.1.26, |error| <= 1.5e-7 -- exact-erf GELU to f32
    # precision using only ops guaranteed to lower in Mosaic.
    a1, a2, a3, a4, a5 = 0.254829592, -0.284496736, 1.421413741, -1.453152027, 1.061405429
    pc = 0.3275911
    sgn = jnp.where(x >= 0.0, 1.0, -1.0)
    ax = jnp.abs(x)
    t = 1.0 / (1.0 + pc * ax)
    poly = t * (a1 + t * (a2 + t * (a3 + t * (a4 + t * a5))))
    return sgn * (1.0 - poly * jnp.exp(-ax * ax))


def _gelu_exact(x):
    return 0.5 * x * (1.0 + _erf(x * _SQRT_HALF))


# ------------------------------ fused kernel -------------------------------- #

def _vit_kernel(patches_ref, pln1_g, pln1_b, patch_w, patch_b, pln2_g, pln2_b,
                cls_ref, pos_ref,
                aln_g, aln_b, w_qkv, w_out, b_out,
                fln_g, fln_b, w1, b1, w2, b2,
                final_g, final_b, head_w, head_b,
                rw1, rb1, rw2, rb2,
                out_ref, seq_ref,
                *, batch, n_patches, n_tokens, n_tokens_pad, heads, dim_head, scale):
    f32, bf16 = jnp.float32, jnp.bfloat16
    d = pl.program_id(0)
    depth = pl.num_programs(0)
    inner = heads * dim_head
    n, nt, ntp = n_patches, n_tokens, n_tokens_pad
    rows = batch * ntp

    # ---- prologue (d == 0): patch embedding + cls token + positional embedding
    @pl.when(d == 0)
    def _prologue():
        pt = patches_ref[...]                                        # (B*n, patch_dim) f32
        h0 = _layernorm(pt, pln1_g[...], pln1_b[...])
        tok = jnp.dot(h0.astype(bf16), patch_w[...],
                      preferred_element_type=f32) + patch_b[...]
        tok = _layernorm(tok, pln2_g[...], pln2_b[...])              # (B*n, dim)
        cls_row = cls_ref[...] + pos_ref[0:1, :]                     # (1, dim)
        pos_tok = pos_ref[1:nt, :]                                   # (n, dim)
        seq_ref[...] = jnp.zeros_like(seq_ref)                       # zero padding rows
        for b in range(batch):
            seq_ref[b * ntp:b * ntp + 1, :] = cls_row
            seq_ref[b * ntp + 1:b * ntp + nt, :] = tok[b * n:(b + 1) * n, :] + pos_tok

    # ---- transformer block d (pre-norm attention + pre-norm MLP) ------------
    x = seq_ref[...]                                                 # (rows, dim) f32

    h = _layernorm(x, aln_g[...], aln_b[...])
    qkv = jnp.dot(h.astype(bf16), w_qkv[...],
                  preferred_element_type=f32)                        # (rows, 3*inner)

    # mask padded key columns (iota over lanes; hoisted out of the head loop)
    key_pos = jax.lax.broadcasted_iota(jnp.int32, (1, ntp, ntp), 2)
    neg_mask = jnp.where(key_pos < nt, 0.0, -1e30)

    head_outs = []
    for hd in range(heads):                                          # static unroll; B-batched
        q = qkv[:, hd * dim_head:(hd + 1) * dim_head]
        k = qkv[:, inner + hd * dim_head:inner + (hd + 1) * dim_head]
        v = qkv[:, 2 * inner + hd * dim_head:2 * inner + (hd + 1) * dim_head]
        # (rows, dh) -> (B, ntp, dh): ntp is a multiple of 8, so this is an
        # exact vreg regrouping (no cross-lane relayout).
        q3 = q.reshape(batch, ntp, dim_head).astype(bf16)
        k3 = k.reshape(batch, ntp, dim_head).astype(bf16)
        v3 = v.reshape(batch, ntp, dim_head).astype(bf16)
        s = jnp.einsum('bqd,bkd->bqk', q3, k3,
                       preferred_element_type=f32) * scale + neg_mask
        s = s - jnp.max(s, axis=-1, keepdims=True)
        p = jnp.exp(s)
        p = p * pl.reciprocal(jnp.sum(p, axis=-1, keepdims=True), approx=True)
        o_h = jnp.einsum('bqk,bkd->bqd', p.astype(bf16), v3,
                         preferred_element_type=f32)                 # (B, ntp, dh)
        head_outs.append(o_h.reshape(rows, dim_head))
    o_cat = jnp.concatenate(head_outs, axis=-1)                      # (rows, inner)
    x = x + jnp.dot(o_cat.astype(bf16), w_out[...],
                    preferred_element_type=f32) + b_out[...]         # residual 1

    h = _layernorm(x, fln_g[...], fln_b[...])
    h1 = jnp.dot(h.astype(bf16), w1[...], preferred_element_type=f32) + b1[...]
    h1 = _gelu_exact(h1)
    h2 = jnp.dot(h1.astype(bf16), w2[...], preferred_element_type=f32) + b2[...]
    x = x + h2                                                       # residual 2
    seq_ref[...] = x

    # ---- epilogue (d == depth-1): final LN -> ViT head -> regressor MLP -----
    @pl.when(d == depth - 1)
    def _epilogue():
        pooled = jnp.concatenate(
            [x[b * ntp:b * ntp + 1, :] for b in range(batch)], axis=0)  # cls rows, (B, dim)
        z = _layernorm(pooled, final_g[...], final_b[...])
        logits = jnp.dot(z, head_w[...], preferred_element_type=f32) + head_b[...]
        hreg = jnp.maximum(
            jnp.dot(logits, rw1[...], preferred_element_type=f32) + rb1[...], 0.0)
        out_ref[...] = (jnp.dot(hreg, rw2[...], preferred_element_type=f32)
                        + rb2[...]).astype(out_ref.dtype)


# ------------------------------- forward ------------------------------------ #

def vit_regressor_forward(x, packed, *, patch_size, heads, dim_head):
    b, c, hh, ww = x.shape
    ps = patch_size
    gh, gw = hh // ps, ww // ps
    n = gh * gw
    nt = n + 1
    nt_pad = ((nt + 7) // 8) * 8                   # pad tokens to a full sublane tile
    patch_dim = c * ps * ps
    dim = packed["patch_w"].shape[1]
    mlp_dim = packed["w1"].shape[-1]
    depth = packed["w_qkv"].shape[0]
    inner = heads * dim_head
    nc = packed["head_w"].shape[1]

    # Rearrange 'b c (h p1) (w p2) -> (b h w) (p1 p2 c)'  -- one-time layout glue.
    patches = x.reshape(b, c, gh, ps, gw, ps)
    patches = jnp.transpose(patches, (0, 2, 4, 3, 5, 1)).reshape(b * n, patch_dim)

    arrays = dict(packed)
    arrays["patches"] = patches

    arg_names = ("patches",
                 "patch_ln1_g", "patch_ln1_b", "patch_w", "patch_b",
                 "patch_ln2_g", "patch_ln2_b",
                 "cls", "pos",
                 "attn_ln_g", "attn_ln_b", "w_qkv", "w_out", "b_out",
                 "ff_ln_g", "ff_ln_b", "w1", "b1", "w2", "b2",
                 "final_ln_g", "final_ln_b", "head_w", "head_b",
                 "reg_w1", "reg_b1", "reg_w2", "reg_b2")
    per_layer = frozenset({"attn_ln_g", "attn_ln_b", "w_qkv", "w_out", "b_out",
                           "ff_ln_g", "ff_ln_b", "w1", "b1", "w2", "b2"})

    def spec_for(name):
        a = arrays[name]
        if name in per_layer:
            # stacked (depth, ...): layer d's slab, auto-prefetched behind layer d-1.
            return pl.BlockSpec((None,) + a.shape[1:], lambda d: (d, 0, 0))
        # constant-index: whole array VMEM-resident for the entire kernel.
        return pl.BlockSpec(a.shape, lambda d, _nd=a.ndim: (0,) * _nd)

    args = tuple(arrays[nm] for nm in arg_names)
    in_specs = [spec_for(nm) for nm in arg_names]

    rows = b * nt_pad
    flops = depth * (2 * rows * dim * 3 * inner                # qkv projection
                     + 4 * b * heads * nt_pad * nt_pad * dim_head   # scores + attn*V
                     + 2 * rows * inner * dim                  # output projection
                     + 4 * rows * dim * mlp_dim)               # FF w1 + w2
    flops += 2 * b * n * patch_dim * dim + 2 * b * (dim * nc + nc * 64 + 64)
    transc = depth * (b * heads * nt_pad * nt_pad + rows * mlp_dim)
    bytes_acc = sum(int(a.size) * a.dtype.itemsize for a in args) + b * 4

    kernel = functools.partial(
        _vit_kernel, batch=b, n_patches=n, n_tokens=nt, n_tokens_pad=nt_pad,
        heads=heads, dim_head=dim_head, scale=float(dim_head) ** -0.5)

    return pl.pallas_call(
        kernel,
        out_shape=jax.ShapeDtypeStruct((b, 1), jnp.float32),
        grid=(depth,),
        in_specs=in_specs,
        out_specs=pl.BlockSpec((b, 1), lambda d: (0, 0)),
        scratch_shapes=[pltpu.VMEM((rows, dim), jnp.float32)],   # residual stream
        compiler_params=pltpu.CompilerParams(
            # Depth axis carries `seq` in VMEM scratch => sequential ("arbitrary").
            dimension_semantics=("arbitrary",)),
        cost_estimate=pl.CostEstimate(flops=int(flops), transcendentals=int(transc),
                                      bytes_accessed=int(bytes_acc)),
    )(*args)


# ------------------------------ parameters ---------------------------------- #

def init_params(key, *, image_size, patch_size, num_classes, dim, depth, heads,
                mlp_dim, channels, dim_head):
    num_patches = (image_size // patch_size) ** 2
    patch_dim = channels * patch_size * patch_size
    inner = heads * dim_head
    keys = iter(jax.random.split(key, 32 + depth * 8))

    def dense(kin, kout):
        bound = float(kin) ** -0.5
        w = jax.random.uniform(next(keys), (kin, kout), jnp.float32, -bound, bound)
        bvec = jax.random.uniform(next(keys), (kout,), jnp.float32, -bound, bound)
        return w, bvec

    p = {}
    p["patch_ln1_g"] = jnp.ones((patch_dim,), jnp.float32)
    p["patch_ln1_b"] = jnp.zeros((patch_dim,), jnp.float32)
    p["patch_w"], p["patch_b"] = dense(patch_dim, dim)
    p["patch_ln2_g"] = jnp.ones((dim,), jnp.float32)
    p["patch_ln2_b"] = jnp.zeros((dim,), jnp.float32)
    p["pos_embedding"] = jax.random.normal(next(keys), (1, num_patches + 1, dim),
                                           jnp.float32) * 0.02
    p["cls_token"] = jax.random.normal(next(keys), (1, 1, dim), jnp.float32) * 0.02

    layers = []
    for _ in range(depth):
        lyr = {}
        lyr["attn_ln_g"] = jnp.ones((dim,), jnp.float32)
        lyr["attn_ln_b"] = jnp.zeros((dim,), jnp.float32)
        w_qkv, _ = dense(dim, 3 * inner)            # to_qkv has bias=False
        lyr["w_qkv"] = w_qkv
        lyr["w_out"], lyr["b_out"] = dense(inner, dim)
        lyr["ff_ln_g"] = jnp.ones((dim,), jnp.float32)
        lyr["ff_ln_b"] = jnp.zeros((dim,), jnp.float32)
        lyr["w1"], lyr["b1"] = dense(dim, mlp_dim)
        lyr["w2"], lyr["b2"] = dense(mlp_dim, dim)
        layers.append(lyr)
    p["layers"] = layers

    p["final_ln_g"] = jnp.ones((dim,), jnp.float32)
    p["final_ln_b"] = jnp.zeros((dim,), jnp.float32)
    p["head_w"], p["head_b"] = dense(dim, num_classes)
    # regressor: Linear(num_classes, 64) -> ReLU -> Dropout -> Linear(64, 1)
    p["reg_w1"], p["reg_b1"] = dense(num_classes, 64)
    p["reg_w2"], p["reg_b2"] = dense(64, 1)
    return p


def pack_params(p):
    """One-time packing: stack per-layer weights along a leading depth axis,
    pre-cast MXU weights to bf16, pre-reshape biases/LN params to (.., 1, D)."""
    bf16 = jnp.bfloat16
    layers = p["layers"]
    depth = len(layers)
    dim = p["patch_w"].shape[1]
    mlp_dim = layers[0]["w1"].shape[1]

    def stack(key):
        return jnp.stack([lyr[key] for lyr in layers])

    return {
        "patch_ln1_g": p["patch_ln1_g"].reshape(1, -1),
        "patch_ln1_b": p["patch_ln1_b"].reshape(1, -1),
        "patch_w": p["patch_w"].astype(bf16),
        "patch_b": p["patch_b"].reshape(1, -1),
        "patch_ln2_g": p["patch_ln2_g"].reshape(1, -1),
        "patch_ln2_b": p["patch_ln2_b"].reshape(1, -1),
        "cls": p["cls_token"].reshape(1, dim),
        "pos": p["pos_embedding"][0],                       # (num_patches+1, dim)
        "attn_ln_g": stack("attn_ln_g").reshape(depth, 1, dim),
        "attn_ln_b": stack("attn_ln_b").reshape(depth, 1, dim),
        "w_qkv": stack("w_qkv").astype(bf16),               # (depth, dim, 3*inner)
        "w_out": stack("w_out").astype(bf16),               # (depth, inner, dim)
        "b_out": stack("b_out").reshape(depth, 1, dim),
        "ff_ln_g": stack("ff_ln_g").reshape(depth, 1, dim),
        "ff_ln_b": stack("ff_ln_b").reshape(depth, 1, dim),
        "w1": stack("w1").astype(bf16),                     # (depth, dim, mlp_dim)
        "b1": stack("b1").reshape(depth, 1, mlp_dim),
        "w2": stack("w2").astype(bf16),                     # (depth, mlp_dim, dim)
        "b2": stack("b2").reshape(depth, 1, dim),
        "final_ln_g": p["final_ln_g"].reshape(1, dim),
        "final_ln_b": p["final_ln_b"].reshape(1, dim),
        "head_w": p["head_w"],
        "head_b": p["head_b"].reshape(1, -1),
        "reg_w1": p["reg_w1"],
        "reg_b1": p["reg_b1"].reshape(1, -1),
        "reg_w2": p["reg_w2"],
        "reg_b2": p["reg_b2"].reshape(1, -1),
    }


# --------------------------------- main -------------------------------------- #

if __name__ == "__main__":
    B, C, IMG = 2, 4, 16
    PATCH, NUM_CLASSES, DIM, DEPTH, HEADS, MLP_DIM, DIM_HEAD = 8, 8, 32, 2, 2, 64, 64

    key = jax.random.PRNGKey(0)
    pkey, xkey = jax.random.split(key)
    params = init_params(
        pkey, image_size=IMG, patch_size=PATCH, num_classes=NUM_CLASSES, dim=DIM,
        depth=DEPTH, heads=HEADS, mlp_dim=MLP_DIM, channels=C, dim_head=DIM_HEAD)
    packed = pack_params(params)        # one-time stack + bf16 cast, outside the hot path

    x = jax.random.normal(xkey, (B, C, IMG, IMG), jnp.float32)

    fwd = jax.jit(functools.partial(
        vit_regressor_forward, patch_size=PATCH, heads=HEADS, dim_head=DIM_HEAD))
    out = fwd(x, packed)
    jax.block_until_ready(out)
    assert out.shape == (B, 1) and out.dtype == jnp.float32
    print("KERNEL_OK")
</pallas_src>

<mosaic_0001>
module attributes {stable_mosaic.version = 11 : i64} {
  func.func @_vit_kernel(%arg0: i32, %arg1: memref<8x256xf32, #tpu.memory_space<vmem>>, %arg2: memref<1x256xf32, #tpu.memory_space<vmem>>, %arg3: memref<1x256xf32, #tpu.memory_space<vmem>>, %arg4: memref<256x32xbf16, #tpu.memory_space<vmem>>, %arg5: memref<1x32xf32, #tpu.memory_space<vmem>>, %arg6: memref<1x32xf32, #tpu.memory_space<vmem>>, %arg7: memref<1x32xf32, #tpu.memory_space<vmem>>, %arg8: memref<1x32xf32, #tpu.memory_space<vmem>>, %arg9: memref<5x32xf32, #tpu.memory_space<vmem>>, %arg10: memref<1x1x32xf32, #tpu.memory_space<vmem>>, %arg11: memref<1x1x32xf32, #tpu.memory_space<vmem>>, %arg12: memref<1x32x384xbf16, #tpu.memory_space<vmem>>, %arg13: memref<1x128x32xbf16, #tpu.memory_space<vmem>>, %arg14: memref<1x1x32xf32, #tpu.memory_space<vmem>>, %arg15: memref<1x1x32xf32, #tpu.memory_space<vmem>>, %arg16: memref<1x1x32xf32, #tpu.memory_space<vmem>>, %arg17: memref<1x32x64xbf16, #tpu.memory_space<vmem>>, %arg18: memref<1x1x64xf32, #tpu.memory_space<vmem>>, %arg19: memref<1x64x32xbf16, #tpu.memory_space<vmem>>, %arg20: memref<1x1x32xf32, #tpu.memory_space<vmem>>, %arg21: memref<1x32xf32, #tpu.memory_space<vmem>>, %arg22: memref<1x32xf32, #tpu.memory_space<vmem>>, %arg23: memref<32x8xf32, #tpu.memory_space<vmem>>, %arg24: memref<1x8xf32, #tpu.memory_space<vmem>>, %arg25: memref<8x64xf32, #tpu.memory_space<vmem>>, %arg26: memref<1x64xf32, #tpu.memory_space<vmem>>, %arg27: memref<64x1xf32, #tpu.memory_space<vmem>>, %arg28: memref<1x1xf32, #tpu.memory_space<vmem>>, %arg29: memref<2x1xf32, #tpu.memory_space<vmem>>, %arg30: memref<16x32xf32, #tpu.memory_space<vmem>>) attributes {dimension_semantics = [#tpu.dimension_semantics<arbitrary>], iteration_bounds = array<i64: 2>, scalar_prefetch = 0 : i64, scratch_operands = 1 : i64, tpu.core_type = #tpu.core_type<tc>, window_params = [{pipeline_mode = #tpu.pipeline_mode<synchronous>, transform_indices = @transform_0, window_bounds = array<i64: 8, 256>}, {pipeline_mode = #tpu.pipeline_mode<synchronous>, transform_indices = @transform_1, window_bounds = array<i64: 1, 256>}, {pipeline_mode = #tpu.pipeline_mode<synchronous>, transform_indices = @transform_2, window_bounds = array<i64: 1, 256>}, {pipeline_mode = #tpu.pipeline_mode<synchronous>, transform_indices = @transform_3, window_bounds = array<i64: 256, 32>}, {pipeline_mode = #tpu.pipeline_mode<synchronous>, transform_indices = @transform_4, window_bounds = array<i64: 1, 32>}, {pipeline_mode = #tpu.pipeline_mode<synchronous>, transform_indices = @transform_5, window_bounds = array<i64: 1, 32>}, {pipeline_mode = #tpu.pipeline_mode<synchronous>, transform_indices = @transform_6, window_bounds = array<i64: 1, 32>}, {pipeline_mode = #tpu.pipeline_mode<synchronous>, transform_indices = @transform_7, window_bounds = array<i64: 1, 32>}, {pipeline_mode = #tpu.pipeline_mode<synchronous>, transform_indices = @transform_8, window_bounds = array<i64: 5, 32>}, {transform_indices = @transform_9, window_bounds = array<i64: 1, 1, 32>}, {transform_indices = @transform_10, window_bounds = array<i64: 1, 1, 32>}, {transform_indices = @transform_11, window_bounds = array<i64: 1, 32, 384>}, {transform_indices = @transform_12, window_bounds = array<i64: 1, 128, 32>}, {transform_indices = @transform_13, window_bounds = array<i64: 1, 1, 32>}, {transform_indices = @transform_14, window_bounds = array<i64: 1, 1, 32>}, {transform_indices = @transform_15, window_bounds = array<i64: 1, 1, 32>}, {transform_indices = @transform_16, window_bounds = array<i64: 1, 32, 64>}, {transform_indices = @transform_17, window_bounds = array<i64: 1, 1, 64>}, {transform_indices = @transform_18, window_bounds = array<i64: 1, 64, 32>}, {transform_indices = @transform_19, window_bounds = array<i64: 1, 1, 32>}, {pipeline_mode = #tpu.pipeline_mode<synchronous>, transform_indices = @transform_20, window_bounds = array<i64: 1, 32>}, {pipeline_mode = #tpu.pipeline_mode<synchronous>, transform_indices = @transform_21, window_bounds = array<i64: 1, 32>}, {pipeline_mode = #tpu.pipeline_mode<synchronous>, transform_indices = @transform_22, window_bounds = array<i64: 32, 8>}, {pipeline_mode = #tpu.pipeline_mode<synchronous>, transform_indices = @transform_23, window_bounds = array<i64: 1, 8>}, {pipeline_mode = #tpu.pipeline_mode<synchronous>, transform_indices = @transform_24, window_bounds = array<i64: 8, 64>}, {pipeline_mode = #tpu.pipeline_mode<synchronous>, transform_indices = @transform_25, window_bounds = array<i64: 1, 64>}, {pipeline_mode = #tpu.pipeline_mode<synchronous>, transform_indices = @transform_26, window_bounds = array<i64: 64, 1>}, {pipeline_mode = #tpu.pipeline_mode<synchronous>, transform_indices = @transform_27, window_bounds = array<i64: 1, 1>}, {pipeline_mode = #tpu.pipeline_mode<synchronous>, transform_indices = @transform_28, window_bounds = array<i64: 2, 1>}]} {
    %c0_i32 = arith.constant 0 : i32
    %0 = arith.cmpi eq, %arg0, %c0_i32 : i32
    %1 = arith.extui %0 : i1 to i32
    %c0_i32_0 = arith.constant 0 : i32
    %2 = arith.cmpi ne, %1, %c0_i32_0 : i32
    scf.if %2 {
      %c0_79 = arith.constant 0 : index
      %c0_80 = arith.constant 0 : index
      %192 = vector.load %arg1[%c0_79, %c0_80] : memref<8x256xf32, #tpu.memory_space<vmem>>, vector<8x256xf32>
      %c0_81 = arith.constant 0 : index
      %c0_82 = arith.constant 0 : index
      %193 = vector.load %arg2[%c0_81, %c0_82] : memref<1x256xf32, #tpu.memory_space<vmem>>, vector<1x256xf32>
      %c0_83 = arith.constant 0 : index
      %c0_84 = arith.constant 0 : index
      %194 = vector.load %arg3[%c0_83, %c0_84] : memref<1x256xf32, #tpu.memory_space<vmem>>, vector<1x256xf32>
      %cst_85 = arith.constant dense<0.000000e+00> : vector<8xf32>
      %195 = vector.multi_reduction <add>, %192, %cst_85 [1] : vector<8x256xf32> to vector<8xf32>
      %196 = vector.shape_cast %195 : vector<8xf32> to vector<8x1xf32>
      %cst_86 = arith.constant 2.560000e+02 : f32
      %197 = vector.broadcast %cst_86 : f32 to vector<8x1xf32>
      %198 = arith.divf %196, %197 : vector<8x1xf32>
      %199 = vector.broadcast %198 : vector<8x1xf32> to vector<8x256xf32>
      %200 = arith.subf %192, %199 : vector<8x256xf32>
      %201 = arith.mulf %200, %200 : vector<8x256xf32>
      %cst_87 = arith.constant dense<0.000000e+00> : vector<8xf32>
      %202 = vector.multi_reduction <add>, %201, %cst_87 [1] : vector<8x256xf32> to vector<8xf32>
      %203 = vector.shape_cast %202 : vector<8xf32> to vector<8x1xf32>
      %cst_88 = arith.constant 2.560000e+02 : f32
      %204 = vector.broadcast %cst_88 : f32 to vector<8x1xf32>
      %205 = arith.divf %203, %204 : vector<8x1xf32>
      %206 = vector.broadcast %198 : vector<8x1xf32> to vector<8x256xf32>
      %207 = arith.subf %192, %206 : vector<8x256xf32>
      %cst_89 = arith.constant 9.99999974E-6 : f32
      %208 = vector.broadcast %cst_89 : f32 to vector<8x1xf32>
      %209 = arith.addf %205, %208 : vector<8x1xf32>
      %210 = math.rsqrt %209 : vector<8x1xf32>
      %211 = vector.broadcast %210 : vector<8x1xf32> to vector<8x256xf32>
      %212 = arith.mulf %207, %211 : vector<8x256xf32>
      %213 = vector.broadcast %193 : vector<1x256xf32> to vector<8x256xf32>
      %214 = arith.mulf %212, %213 : vector<8x256xf32>
      %215 = vector.broadcast %194 : vector<1x256xf32> to vector<8x256xf32>
      %216 = arith.addf %214, %215 : vector<8x256xf32>
      %217 = arith.truncf %216 : vector<8x256xf32> to vector<8x256xbf16>
      %c0_90 = arith.constant 0 : index
      %c0_91 = arith.constant 0 : index
      %218 = vector.load %arg4[%c0_90, %c0_91] : memref<256x32xbf16, #tpu.memory_space<vmem>>, vector<256x32xbf16>
      %cst_92 = arith.constant dense<0.000000e+00> : vector<8x32xf32>
      %219 = tpu.matmul %217, %218, %cst_92 {dimension_numbers = #tpu.dot_dimension_numbers<[1], [0], [0], [1], [0, 0, 1, 1], [], []>} : vector<8x256xbf16>, vector<256x32xbf16>, vector<8x32xf32> -> vector<8x32xf32>
      %c0_93 = arith.constant 0 : index
      %c0_94 = arith.constant 0 : index
      %220 = vector.load %arg5[%c0_93, %c0_94] : memref<1x32xf32, #tpu.memory_space<vmem>>, vector<1x32xf32>
      %221 = vector.broadcast %220 : vector<1x32xf32> to vector<8x32xf32>
      %222 = arith.addf %219, %221 : vector<8x32xf32>
      %c0_95 = arith.constant 0 : index
      %c0_96 = arith.constant 0 : index
      %223 = vector.load %arg6[%c0_95, %c0_96] : memref<1x32xf32, #tpu.memory_space<vmem>>, vector<1x32xf32>
      %c0_97 = arith.constant 0 : index
      %c0_98 = arith.constant 0 : index
      %224 = vector.load %arg7[%c0_97, %c0_98] : memref<1x32xf32, #tpu.memory_space<vmem>>, vector<1x32xf32>
      %cst_99 = arith.constant dense<0.000000e+00> : vector<8xf32>
      %225 = vector.multi_reduction <add>, %222, %cst_99 [1] : vector<8x32xf32> to vector<8xf32>
      %226 = vector.shape_cast %225 : vector<8xf32> to vector<8x1xf32>
      %cst_100 = arith.constant 3.200000e+01 : f32
      %227 = vector.broadcast %cst_100 : f32 to vector<8x1xf32>
      %228 = arith.divf %226, %227 : vector<8x1xf32>
      %229 = vector.broadcast %228 : vector<8x1xf32> to vector<8x32xf32>
      %230 = arith.subf %222, %229 : vector<8x32xf32>
      %231 = arith.mulf %230, %230 : vector<8x32xf32>
      %cst_101 = arith.constant dense<0.000000e+00> : vector<8xf32>
      %232 = vector.multi_reduction <add>, %231, %cst_101 [1] : vector<8x32xf32> to vector<8xf32>
      %233 = vector.shape_cast %232 : vector<8xf32> to vector<8x1xf32>
      %cst_102 = arith.constant 3.200000e+01 : f32
      %234 = vector.broadcast %cst_102 : f32 to vector<8x1xf32>
      %235 = arith.divf %233, %234 : vector<8x1xf32>
      %236 = vector.broadcast %228 : vector<8x1xf32> to vector<8x32xf32>
      %237 = arith.subf %222, %236 : vector<8x32xf32>
      %cst_103 = arith.constant 9.99999974E-6 : f32
      %238 = vector.broadcast %cst_103 : f32 to vector<8x1xf32>
      %239 = arith.addf %235, %238 : vector<8x1xf32>
      %240 = math.rsqrt %239 : vector<8x1xf32>
      %241 = vector.broadcast %240 : vector<8x1xf32> to vector<8x32xf32>
      %242 = arith.mulf %237, %241 : vector<8x32xf32>
      %243 = vector.broadcast %223 : vector<1x32xf32> to vector<8x32xf32>
      %244 = arith.mulf %242, %243 : vector<8x32xf32>
      %245 = vector.broadcast %224 : vector<1x32xf32> to vector<8x32xf32>
      %246 = arith.addf %244, %245 : vector<8x32xf32>
      %c0_104 = arith.constant 0 : index
      %c0_105 = arith.constant 0 : index
      %247 = vector.load %arg8[%c0_104, %c0_105] : memref<1x32xf32, #tpu.memory_space<vmem>>, vector<1x32xf32>
      %c0_106 = arith.constant 0 : index
      %c0_107 = arith.constant 0 : index
      %248 = vector.load %arg9[%c0_106, %c0_107] : memref<5x32xf32, #tpu.memory_space<vmem>>, vector<1x32xf32>
      %249 = arith.addf %247, %248 : vector<1x32xf32>
      %c1 = arith.constant 1 : index
      %c0_108 = arith.constant 0 : index
      %250 = vector.load %arg9[%c1, %c0_108] : memref<5x32xf32, #tpu.memory_space<vmem>>, vector<4x32xf32>
      %cst_109 = arith.constant 0.000000e+00 : f32
      %251 = vector.broadcast %cst_109 : f32 to vector<16x32xf32>
      %c0_110 = arith.constant 0 : index
      %c0_111 = arith.constant 0 : index
      %252 = vector.load %arg30[%c0_110, %c0_111] : memref<16x32xf32, #tpu.memory_space<vmem>>, vector<16x32xf32>
      tpu.vector_store %arg30[%c0_110, %c0_111], %251 {strides = array<i32>} : memref<16x32xf32, #tpu.memory_space<vmem>>, vector<16x32xf32>,
      %c0_112 = arith.constant 0 : index
      %c0_113 = arith.constant 0 : index
      %253 = vector.load %arg30[%c0_112, %c0_113] : memref<16x32xf32, #tpu.memory_space<vmem>>, vector<1x32xf32>
      tpu.vector_store %arg30[%c0_112, %c0_113], %249 {strides = array<i32>} : memref<16x32xf32, #tpu.memory_space<vmem>>, vector<1x32xf32>,
      %254 = vector.extract_strided_slice %246 {offsets = [0, 0], sizes = [4, 32], strides = [1, 1]} : vector<8x32xf32> to vector<4x32xf32>
      %255 = arith.addf %254, %250 : vector<4x32xf32>
      %c1_114 = arith.constant 1 : index
      %c0_115 = arith.constant 0 : index
      %256 = vector.load %arg30[%c1_114, %c0_115] : memref<16x32xf32, #tpu.memory_space<vmem>>, vector<4x32xf32>
      tpu.vector_store %arg30[%c1_114, %c0_115], %255 {strides = array<i32>} : memref<16x32xf32, #tpu.memory_space<vmem>>, vector<4x32xf32>,
      %c8 = arith.constant 8 : index
      %c0_116 = arith.constant 0 : index
      %257 = vector.load %arg30[%c8, %c0_116] : memref<16x32xf32, #tpu.memory_space<vmem>>, vector<1x32xf32>
      tpu.vector_store %arg30[%c8, %c0_116], %249 {strides = array<i32>} : memref<16x32xf32, #tpu.memory_space<vmem>>, vector<1x32xf32>,
      %258 = vector.extract_strided_slice %246 {offsets = [4, 0], sizes = [4, 32], strides = [1, 1]} : vector<8x32xf32> to vector<4x32xf32>
      %259 = arith.addf %258, %250 : vector<4x32xf32>
      %c9 = arith.constant 9 : index
      %c0_117 = arith.constant 0 : index
      %260 = vector.load %arg30[%c9, %c0_117] : memref<16x32xf32, #tpu.memory_space<vmem>>, vector<4x32xf32>
      tpu.vector_store %arg30[%c9, %c0_117], %259 {strides = array<i32>} : memref<16x32xf32, #tpu.memory_space<vmem>>, vector<4x32xf32>,
    } else {
    }
    %c0 = arith.constant 0 : index
    %c0_1 = arith.constant 0 : index
    %3 = vector.load %arg30[%c0, %c0_1] : memref<16x32xf32, #tpu.memory_space<vmem>>, vector<16x32xf32>
    %c0_2 = arith.constant 0 : index
    %c0_3 = arith.constant 0 : index
    %c0_4 = arith.constant 0 : index
    %4 = vector.load %arg10[%c0_2, %c0_3, %c0_4] : memref<1x1x32xf32, #tpu.memory_space<vmem>>, vector<1x1x32xf32>
    %5 = vector.shape_cast %4 : vector<1x1x32xf32> to vector<1x32xf32>
    %c0_5 = arith.constant 0 : index
    %c0_6 = arith.constant 0 : index
    %c0_7 = arith.constant 0 : index
    %6 = vector.load %arg11[%c0_5, %c0_6, %c0_7] : memref<1x1x32xf32, #tpu.memory_space<vmem>>, vector<1x1x32xf32>
    %7 = vector.shape_cast %6 : vector<1x1x32xf32> to vector<1x32xf32>
    %cst = arith.constant dense<0.000000e+00> : vector<16xf32>
    %8 = vector.multi_reduction <add>, %3, %cst [1] : vector<16x32xf32> to vector<16xf32>
    %9 = vector.shape_cast %8 : vector<16xf32> to vector<16x1xf32>
    %cst_8 = arith.constant 3.200000e+01 : f32
    %10 = vector.broadcast %cst_8 : f32 to vector<16x1xf32>
    %11 = arith.divf %9, %10 : vector<16x1xf32>
    %12 = vector.broadcast %11 : vector<16x1xf32> to vector<16x32xf32>
    %13 = arith.subf %3, %12 : vector<16x32xf32>
    %14 = arith.mulf %13, %13 : vector<16x32xf32>
    %cst_9 = arith.constant dense<0.000000e+00> : vector<16xf32>
    %15 = vector.multi_reduction <add>, %14, %cst_9 [1] : vector<16x32xf32> to vector<16xf32>
    %16 = vector.shape_cast %15 : vector<16xf32> to vector<16x1xf32>
    %cst_10 = arith.constant 3.200000e+01 : f32
    %17 = vector.broadcast %cst_10 : f32 to vector<16x1xf32>
    %18 = arith.divf %16, %17 : vector<16x1xf32>
    %19 = vector.broadcast %11 : vector<16x1xf32> to vector<16x32xf32>
    %20 = arith.subf %3, %19 : vector<16x32xf32>
    %cst_11 = arith.constant 9.99999974E-6 : f32
    %21 = vector.broadcast %cst_11 : f32 to vector<16x1xf32>
    %22 = arith.addf %18, %21 : vector<16x1xf32>
    %23 = math.rsqrt %22 : vector<16x1xf32>
    %24 = vector.broadcast %23 : vector<16x1xf32> to vector<16x32xf32>
    %25 = arith.mulf %20, %24 : vector<16x32xf32>
    %26 = vector.broadcast %5 : vector<1x32xf32> to vector<16x32xf32>
    %27 = arith.mulf %25, %26 : vector<16x32xf32>
    %28 = vector.broadcast %7 : vector<1x32xf32> to vector<16x32xf32>
    %29 = arith.addf %27, %28 : vector<16x32xf32>
    %30 = arith.truncf %29 : vector<16x32xf32> to vector<16x32xbf16>
    %c0_12 = arith.constant 0 : index
    %c0_13 = arith.constant 0 : index
    %c0_14 = arith.constant 0 : index
    %31 = vector.load %arg12[%c0_12, %c0_13, %c0_14] : memref<1x32x384xbf16, #tpu.memory_space<vmem>>, vector<1x32x384xbf16>
    %32 = vector.shape_cast %31 : vector<1x32x384xbf16> to vector<32x384xbf16>
    %cst_15 = arith.constant dense<0.000000e+00> : vector<16x384xf32>
    %33 = tpu.matmul %30, %32, %cst_15 {dimension_numbers = #tpu.dot_dimension_numbers<[1], [0], [0], [1], [0, 0, 1, 1], [], []>} : vector<16x32xbf16>, vector<32x384xbf16>, vector<16x384xf32> -> vector<16x384xf32>
    %34 = tpu.iota {dimensions = array<i32: 2>} : vector<1x8x8xi32>
    %c5_i32 = arith.constant 5 : i32
    %35 = vector.broadcast %c5_i32 : i32 to vector<1x8x8xi32>
    %36 = arith.cmpi slt, %34, %35 : vector<1x8x8xi32>
    %cst_16 = arith.constant 0.000000e+00 : f32
    %cst_17 = arith.constant -1.000000e+30 : f32
    %37 = vector.broadcast %cst_16 : f32 to vector<1x8x8xf32>
    %38 = vector.broadcast %cst_17 : f32 to vector<1x8x8xf32>
    %39 = arith.select %36, %37, %38 : vector<1x8x8xi1>, vector<1x8x8xf32>
    %40 = vector.extract_strided_slice %33 {offsets = [0, 0], sizes = [16, 64], strides = [1, 1]} : vector<16x384xf32> to vector<16x64xf32>
    %41 = vector.extract_strided_slice %33 {offsets = [0, 128], sizes = [16, 64], strides = [1, 1]} : vector<16x384xf32> to vector<16x64xf32>
    %42 = vector.extract_strided_slice %33 {offsets = [0, 256], sizes = [16, 64], strides = [1, 1]} : vector<16x384xf32> to vector<16x64xf32>
    %43 = vector.shape_cast %40 : vector<16x64xf32> to vector<2x8x64xf32>
    %44 = arith.truncf %43 : vector<2x8x64xf32> to vector<2x8x64xbf16>
    %45 = vector.shape_cast %41 : vector<16x64xf32> to vector<2x8x64xf32>
    %46 = arith.truncf %45 : vector<2x8x64xf32> to vector<2x8x64xbf16>
    %47 = vector.shape_cast %42 : vector<16x64xf32> to vector<2x8x64xf32>
    %48 = arith.truncf %47 : vector<2x8x64xf32> to vector<2x8x64xbf16>
    "tpu.trace_start"() <{level = 10 : i32, message = "bqd,bkd->bqk"}> : () -> ()
    %cst_18 = arith.constant dense<0.000000e+00> : vector<2x8x8xf32>
    %49 = tpu.matmul %44, %46, %cst_18 {dimension_numbers = #tpu.dot_dimension_numbers<[2], [2], [1], [1], [0, 0, 0, 1, 1, 1], [0], [0]>} : vector<2x8x64xbf16>, vector<2x8x64xbf16>, vector<2x8x8xf32> -> vector<2x8x8xf32>
    "tpu.trace_stop"() : () -> ()
    %cst_19 = arith.constant 1.250000e-01 : f32
    %50 = vector.broadcast %cst_19 : f32 to vector<2x8x8xf32>
    %51 = arith.mulf %49, %50 : vector<2x8x8xf32>
    %52 = vector.broadcast %39 : vector<1x8x8xf32> to vector<2x8x8xf32>
    %53 = arith.addf %51, %52 : vector<2x8x8xf32>
    %cst_20 = arith.constant dense<0xFF800000> : vector<2x8xf32>
    %54 = vector.multi_reduction <maximumf>, %53, %cst_20 [2] : vector<2x8x8xf32> to vector<2x8xf32>
    %55 = vector.shape_cast %54 : vector<2x8xf32> to vector<2x8x1xf32>
    %56 = vector.broadcast %55 : vector<2x8x1xf32> to vector<2x8x8xf32>
    %57 = arith.subf %53, %56 : vector<2x8x8xf32>
    %58 = math.exp %57 : vector<2x8x8xf32>
    %cst_21 = arith.constant dense<0.000000e+00> : vector<2x8xf32>
    %59 = vector.multi_reduction <add>, %58, %cst_21 [2] : vector<2x8x8xf32> to vector<2x8xf32>
    %60 = vector.shape_cast %59 : vector<2x8xf32> to vector<2x8x1xf32>
    %61 = tpu.reciprocal %60 {approx = true} : vector<2x8x1xf32> -> vector<2x8x1xf32>
    %62 = vector.broadcast %61 : vector<2x8x1xf32> to vector<2x8x8xf32>
    %63 = arith.mulf %58, %62 : vector<2x8x8xf32>
    %64 = arith.truncf %63 : vector<2x8x8xf32> to vector<2x8x8xbf16>
    "tpu.trace_start"() <{level = 10 : i32, message = "bqk,bkd->bqd"}> : () -> ()
    %cst_22 = arith.constant dense<0.000000e+00> : vector<2x8x64xf32>
    %65 = tpu.matmul %64, %48, %cst_22 {dimension_numbers = #tpu.dot_dimension_numbers<[2], [1], [1], [2], [0, 0, 0, 1, 1, 2], [0], [0]>} : vector<2x8x8xbf16>, vector<2x8x64xbf16>, vector<2x8x64xf32> -> vector<2x8x64xf32>
    "tpu.trace_stop"() : () -> ()
    %66 = vector.shape_cast %65 : vector<2x8x64xf32> to vector<16x64xf32>
    %67 = vector.extract_strided_slice %33 {offsets = [0, 64], sizes = [16, 64], strides = [1, 1]} : vector<16x384xf32> to vector<16x64xf32>
    %68 = vector.extract_strided_slice %33 {offsets = [0, 192], sizes = [16, 64], strides = [1, 1]} : vector<16x384xf32> to vector<16x64xf32>
    %69 = vector.extract_strided_slice %33 {offsets = [0, 320], sizes = [16, 64], strides = [1, 1]} : vector<16x384xf32> to vector<16x64xf32>
    %70 = vector.shape_cast %67 : vector<16x64xf32> to vector<2x8x64xf32>
    %71 = arith.truncf %70 : vector<2x8x64xf32> to vector<2x8x64xbf16>
    %72 = vector.shape_cast %68 : vector<16x64xf32> to vector<2x8x64xf32>
    %73 = arith.truncf %72 : vector<2x8x64xf32> to vector<2x8x64xbf16>
    %74 = vector.shape_cast %69 : vector<16x64xf32> to vector<2x8x64xf32>
    %75 = arith.truncf %74 : vector<2x8x64xf32> to vector<2x8x64xbf16>
    "tpu.trace_start"() <{level = 10 : i32, message = "bqd,bkd->bqk"}> : () -> ()
    %cst_23 = arith.constant dense<0.000000e+00> : vector<2x8x8xf32>
    %76 = tpu.matmul %71, %73, %cst_23 {dimension_numbers = #tpu.dot_dimension_numbers<[2], [2], [1], [1], [0, 0, 0, 1, 1, 1], [0], [0]>} : vector<2x8x64xbf16>, vector<2x8x64xbf16>, vector<2x8x8xf32> -> vector<2x8x8xf32>
    "tpu.trace_stop"() : () -> ()
    %cst_24 = arith.constant 1.250000e-01 : f32
    %77 = vector.broadcast %cst_24 : f32 to vector<2x8x8xf32>
    %78 = arith.mulf %76, %77 : vector<2x8x8xf32>
    %79 = vector.broadcast %39 : vector<1x8x8xf32> to vector<2x8x8xf32>
    %80 = arith.addf %78, %79 : vector<2x8x8xf32>
    %cst_25 = arith.constant dense<0xFF800000> : vector<2x8xf32>
    %81 = vector.multi_reduction <maximumf>, %80, %cst_25 [2] : vector<2x8x8xf32> to vector<2x8xf32>
    %82 = vector.shape_cast %81 : vector<2x8xf32> to vector<2x8x1xf32>
    %83 = vector.broadcast %82 : vector<2x8x1xf32> to vector<2x8x8xf32>
    %84 = arith.subf %80, %83 : vector<2x8x8xf32>
    %85 = math.exp %84 : vector<2x8x8xf32>
    %cst_26 = arith.constant dense<0.000000e+00> : vector<2x8xf32>
    %86 = vector.multi_reduction <add>, %85, %cst_26 [2] : vector<2x8x8xf32> to vector<2x8xf32>
    %87 = vector.shape_cast %86 : vector<2x8xf32> to vector<2x8x1xf32>
    %88 = tpu.reciprocal %87 {approx = true} : vector<2x8x1xf32> -> vector<2x8x1xf32>
    %89 = vector.broadcast %88 : vector<2x8x1xf32> to vector<2x8x8xf32>
    %90 = arith.mulf %85, %89 : vector<2x8x8xf32>
    %91 = arith.truncf %90 : vector<2x8x8xf32> to vector<2x8x8xbf16>
    "tpu.trace_start"() <{level = 10 : i32, message = "bqk,bkd->bqd"}> : () -> ()
    %cst_27 = arith.constant dense<0.000000e+00> : vector<2x8x64xf32>
    %92 = tpu.matmul %91, %75, %cst_27 {dimension_numbers = #tpu.dot_dimension_numbers<[2], [1], [1], [2], [0, 0, 0, 1, 1, 2], [0], [0]>} : vector<2x8x8xbf16>, vector<2x8x64xbf16>, vector<2x8x64xf32> -> vector<2x8x64xf32>
    "tpu.trace_stop"() : () -> ()
    %93 = vector.shape_cast %92 : vector<2x8x64xf32> to vector<16x64xf32>
    %94 = tpu.concatenate %66, %93 in 1 : vector<16x64xf32>, vector<16x64xf32> -> vector<16x128xf32>
    %95 = arith.truncf %94 : vector<16x128xf32> to vector<16x128xbf16>
    %c0_28 = arith.constant 0 : index
    %c0_29 = arith.constant 0 : index
    %c0_30 = arith.constant 0 : index
    %96 = vector.load %arg13[%c0_28, %c0_29, %c0_30] : memref<1x128x32xbf16, #tpu.memory_space<vmem>>, vector<1x128x32xbf16>
    %97 = vector.shape_cast %96 : vector<1x128x32xbf16> to vector<128x32xbf16>
    %cst_31 = arith.constant dense<0.000000e+00> : vector<16x32xf32>
    %98 = tpu.matmul %95, %97, %cst_31 {dimension_numbers = #tpu.dot_dimension_numbers<[1], [0], [0], [1], [0, 0, 1, 1], [], []>} : vector<16x128xbf16>, vector<128x32xbf16>, vector<16x32xf32> -> vector<16x32xf32>
    %99 = arith.addf %3, %98 : vector<16x32xf32>
    %c0_32 = arith.constant 0 : index
    %c0_33 = arith.constant 0 : index
    %c0_34 = arith.constant 0 : index
    %100 = vector.load %arg14[%c0_32, %c0_33, %c0_34] : memref<1x1x32xf32, #tpu.memory_space<vmem>>, vector<1x1x32xf32>
    %101 = vector.shape_cast %100 : vector<1x1x32xf32> to vector<1x32xf32>
    %102 = vector.broadcast %101 : vector<1x32xf32> to vector<16x32xf32>
    %103 = arith.addf %99, %102 : vector<16x32xf32>
    %c0_35 = arith.constant 0 : index
    %c0_36 = arith.constant 0 : index
    %c0_37 = arith.constant 0 : index
    %104 = vector.load %arg15[%c0_35, %c0_36, %c0_37] : memref<1x1x32xf32, #tpu.memory_space<vmem>>, vector<1x1x32xf32>
    %105 = vector.shape_cast %104 : vector<1x1x32xf32> to vector<1x32xf32>
    %c0_38 = arith.constant 0 : index
    %c0_39 = arith.constant 0 : index
    %c0_40 = arith.constant 0 : index
    %106 = vector.load %arg16[%c0_38, %c0_39, %c0_40] : memref<1x1x32xf32, #tpu.memory_space<vmem>>, vector<1x1x32xf32>
    %107 = vector.shape_cast %106 : vector<1x1x32xf32> to vector<1x32xf32>
    %cst_41 = arith.constant dense<0.000000e+00> : vector<16xf32>
    %108 = vector.multi_reduction <add>, %103, %cst_41 [1] : vector<16x32xf32> to vector<16xf32>
    %109 = vector.shape_cast %108 : vector<16xf32> to vector<16x1xf32>
    %cst_42 = arith.constant 3.200000e+01 : f32
    %110 = vector.broadcast %cst_42 : f32 to vector<16x1xf32>
    %111 = arith.divf %109, %110 : vector<16x1xf32>
    %112 = vector.broadcast %111 : vector<16x1xf32> to vector<16x32xf32>
    %113 = arith.subf %103, %112 : vector<16x32xf32>
    %114 = arith.mulf %113, %113 : vector<16x32xf32>
    %cst_43 = arith.constant dense<0.000000e+00> : vector<16xf32>
    %115 = vector.multi_reduction <add>, %114, %cst_43 [1] : vector<16x32xf32> to vector<16xf32>
    %116 = vector.shape_cast %115 : vector<16xf32> to vector<16x1xf32>
    %cst_44 = arith.constant 3.200000e+01 : f32
    %117 = vector.broadcast %cst_44 : f32 to vector<16x1xf32>
    %118 = arith.divf %116, %117 : vector<16x1xf32>
    %119 = vector.broadcast %111 : vector<16x1xf32> to vector<16x32xf32>
    %120 = arith.subf %103, %119 : vector<16x32xf32>
    %cst_45 = arith.constant 9.99999974E-6 : f32
    %121 = vector.broadcast %cst_45 : f32 to vector<16x1xf32>
    %122 = arith.addf %118, %121 : vector<16x1xf32>
    %123 = math.rsqrt %122 : vector<16x1xf32>
    %124 = vector.broadcast %123 : vector<16x1xf32> to vector<16x32xf32>
    %125 = arith.mulf %120, %124 : vector<16x32xf32>
    %126 = vector.broadcast %105 : vector<1x32xf32> to vector<16x32xf32>
    %127 = arith.mulf %125, %126 : vector<16x32xf32>
    %128 = vector.broadcast %107 : vector<1x32xf32> to vector<16x32xf32>
    %129 = arith.addf %127, %128 : vector<16x32xf32>
    %130 = arith.truncf %129 : vector<16x32xf32> to vector<16x32xbf16>
    %c0_46 = arith.constant 0 : index
    %c0_47 = arith.constant 0 : index
    %c0_48 = arith.constant 0 : index
    %131 = vector.load %arg17[%c0_46, %c0_47, %c0_48] : memref<1x32x64xbf16, #tpu.memory_space<vmem>>, vector<1x32x64xbf16>
    %132 = vector.shape_cast %131 : vector<1x32x64xbf16> to vector<32x64xbf16>
    %cst_49 = arith.constant dense<0.000000e+00> : vector<16x64xf32>
    %133 = tpu.matmul %130, %132, %cst_49 {dimension_numbers = #tpu.dot_dimension_numbers<[1], [0], [0], [1], [0, 0, 1, 1], [], []>} : vector<16x32xbf16>, vector<32x64xbf16>, vector<16x64xf32> -> vector<16x64xf32>
    %c0_50 = arith.constant 0 : index
    %c0_51 = arith.constant 0 : index
    %c0_52 = arith.constant 0 : index
    %134 = vector.load %arg18[%c0_50, %c0_51, %c0_52] : memref<1x1x64xf32, #tpu.memory_space<vmem>>, vector<1x1x64xf32>
    %135 = vector.shape_cast %134 : vector<1x1x64xf32> to vector<1x64xf32>
    %136 = vector.broadcast %135 : vector<1x64xf32> to vector<16x64xf32>
    %137 = arith.addf %133, %136 : vector<16x64xf32>
    %cst_53 = arith.constant 5.000000e-01 : f32
    %138 = vector.broadcast %cst_53 : f32 to vector<16x64xf32>
    %139 = arith.mulf %138, %137 : vector<16x64xf32>
    %cst_54 = arith.constant 0.707106769 : f32
    %140 = vector.broadcast %cst_54 : f32 to vector<16x64xf32>
    %141 = arith.mulf %137, %140 : vector<16x64xf32>
    %cst_55 = arith.constant 0.000000e+00 : f32
    %142 = vector.broadcast %cst_55 : f32 to vector<16x64xf32>
    %143 = arith.cmpf oge, %141, %142 : vector<16x64xf32>
    %cst_56 = arith.constant 1.000000e+00 : f32
    %cst_57 = arith.constant -1.000000e+00 : f32
    %144 = vector.broadcast %cst_56 : f32 to vector<16x64xf32>
    %145 = vector.broadcast %cst_57 : f32 to vector<16x64xf32>
    %146 = arith.select %143, %144, %145 : vector<16x64xi1>, vector<16x64xf32>
    %147 = math.absf %141 : vector<16x64xf32>
    %cst_58 = arith.constant 0.327591091 : f32
    %148 = vector.broadcast %cst_58 : f32 to vector<16x64xf32>
    %149 = arith.mulf %148, %147 : vector<16x64xf32>
    %cst_59 = arith.constant 1.000000e+00 : f32
    %150 = vector.broadcast %cst_59 : f32 to vector<16x64xf32>
    %151 = arith.addf %150, %149 : vector<16x64xf32>
    %cst_60 = arith.constant 1.000000e+00 : f32
    %152 = vector.broadcast %cst_60 : f32 to vector<16x64xf32>
    %153 = arith.divf %152, %151 : vector<16x64xf32>
    %cst_61 = arith.constant 1.06140542 : f32
    %154 = vector.broadcast %cst_61 : f32 to vector<16x64xf32>
    %155 = arith.mulf %153, %154 : vector<16x64xf32>
    %cst_62 = arith.constant -1.45315206 : f32
    %156 = vector.broadcast %cst_62 : f32 to vector<16x64xf32>
    %157 = arith.addf %156, %155 : vector<16x64xf32>
    %158 = arith.mulf %153, %157 : vector<16x64xf32>
    %cst_63 = arith.constant 1.42141378 : f32
    %159 = vector.broadcast %cst_63 : f32 to vector<16x64xf32>
    %160 = arith.addf %159, %158 : vector<16x64xf32>
    %161 = arith.mulf %153, %160 : vector<16x64xf32>
    %cst_64 = arith.constant -0.284496725 : f32
    %162 = vector.broadcast %cst_64 : f32 to vector<16x64xf32>
    %163 = arith.addf %162, %161 : vector<16x64xf32>
    %164 = arith.mulf %153, %163 : vector<16x64xf32>
    %cst_65 = arith.constant 0.254829586 : f32
    %165 = vector.broadcast %cst_65 : f32 to vector<16x64xf32>
    %166 = arith.addf %165, %164 : vector<16x64xf32>
    %167 = arith.mulf %153, %166 : vector<16x64xf32>
    %cst_66 = arith.constant 0.000000e+00 : f32
    %168 = vector.broadcast %cst_66 : f32 to vector<16x64xf32>
    %169 = arith.subf %168, %147 : vector<16x64xf32>
    %170 = arith.mulf %169, %147 : vector<16x64xf32>
    %171 = math.exp %170 : vector<16x64xf32>
    %172 = arith.mulf %167, %171 : vector<16x64xf32>
    %cst_67 = arith.constant 1.000000e+00 : f32
    %173 = vector.broadcast %cst_67 : f32 to vector<16x64xf32>
    %174 = arith.subf %173, %172 : vector<16x64xf32>
    %175 = arith.mulf %146, %174 : vector<16x64xf32>
    %cst_68 = arith.constant 1.000000e+00 : f32
    %176 = vector.broadcast %cst_68 : f32 to vector<16x64xf32>
    %177 = arith.addf %176, %175 : vector<16x64xf32>
    %178 = arith.mulf %139, %177 : vector<16x64xf32>
    %179 = arith.truncf %178 : vector<16x64xf32> to vector<16x64xbf16>
    %c0_69 = arith.constant 0 : index
    %c0_70 = arith.constant 0 : index
    %c0_71 = arith.constant 0 : index
    %180 = vector.load %arg19[%c0_69, %c0_70, %c0_71] : memref<1x64x32xbf16, #tpu.memory_space<vmem>>, vector<1x64x32xbf16>
    %181 = vector.shape_cast %180 : vector<1x64x32xbf16> to vector<64x32xbf16>
    %cst_72 = arith.constant dense<0.000000e+00> : vector<16x32xf32>
    %182 = tpu.matmul %179, %181, %cst_72 {dimension_numbers = #tpu.dot_dimension_numbers<[1], [0], [0], [1], [0, 0, 1, 1], [], []>} : vector<16x64xbf16>, vector<64x32xbf16>, vector<16x32xf32> -> vector<16x32xf32>
    %c0_73 = arith.constant 0 : index
    %c0_74 = arith.constant 0 : index
    %c0_75 = arith.constant 0 : index
    %183 = vector.load %arg20[%c0_73, %c0_74, %c0_75] : memref<1x1x32xf32, #tpu.memory_space<vmem>>, vector<1x1x32xf32>
    %184 = vector.shape_cast %183 : vector<1x1x32xf32> to vector<1x32xf32>
    %185 = vector.broadcast %184 : vector<1x32xf32> to vector<16x32xf32>
    %186 = arith.addf %182, %185 : vector<16x32xf32>
    %187 = arith.addf %103, %186 : vector<16x32xf32>
    %c0_76 = arith.constant 0 : index
    %c0_77 = arith.constant 0 : index
    %188 = vector.load %arg30[%c0_76, %c0_77] : memref<16x32xf32, #tpu.memory_space<vmem>>, vector<16x32xf32>
    tpu.vector_store %arg30[%c0_76, %c0_77], %187 {strides = array<i32>} : memref<16x32xf32, #tpu.memory_space<vmem>>, vector<16x32xf32>,
    %c1_i32 = arith.constant 1 : i32
    %189 = arith.cmpi eq, %arg0, %c1_i32 : i32
    %190 = arith.extui %189 : i1 to i32
    %c0_i32_78 = arith.constant 0 : i32
    %191 = arith.cmpi ne, %190, %c0_i32_78 : i32
    scf.if %191 {
      %192 = vector.extract_strided_slice %187 {offsets = [0, 0], sizes = [1, 32], strides = [1, 1]} : vector<16x32xf32> to vector<1x32xf32>
      %193 = vector.extract_strided_slice %187 {offsets = [8, 0], sizes = [1, 32], strides = [1, 1]} : vector<16x32xf32> to vector<1x32xf32>
      %194 = tpu.concatenate %192, %193 in 0 : vector<1x32xf32>, vector<1x32xf32> -> vector<2x32xf32>
      %c0_79 = arith.constant 0 : index
      %c0_80 = arith.constant 0 : index
      %195 = vector.load %arg21[%c0_79, %c0_80] : memref<1x32xf32, #tpu.memory_space<vmem>>, vector<1x32xf32>
      %c0_81 = arith.constant 0 : index
      %c0_82 = arith.constant 0 : index
      %196 = vector.load %arg22[%c0_81, %c0_82] : memref<1x32xf32, #tpu.memory_space<vmem>>, vector<1x32xf32>
      %cst_83 = arith.constant dense<0.000000e+00> : vector<2xf32>
      %197 = vector.multi_reduction <add>, %194, %cst_83 [1] : vector<2x32xf32> to vector<2xf32>
      %198 = vector.shape_cast %197 : vector<2xf32> to vector<2x1xf32>
      %cst_84 = arith.constant 3.200000e+01 : f32
      %199 = vector.broadcast %cst_84 : f32 to vector<2x1xf32>
      %200 = arith.divf %198, %199 : vector<2x1xf32>
      %201 = vector.broadcast %200 : vector<2x1xf32> to vector<2x32xf32>
      %202 = arith.subf %194, %201 : vector<2x32xf32>
      %203 = arith.mulf %202, %202 : vector<2x32xf32>
      %cst_85 = arith.constant dense<0.000000e+00> : vector<2xf32>
      %204 = vector.multi_reduction <add>, %203, %cst_85 [1] : vector<2x32xf32> to vector<2xf32>
      %205 = vector.shape_cast %204 : vector<2xf32> to vector<2x1xf32>
      %cst_86 = arith.constant 3.200000e+01 : f32
      %206 = vector.broadcast %cst_86 : f32 to vector<2x1xf32>
      %207 = arith.divf %205, %206 : vector<2x1xf32>
      %208 = vector.broadcast %200 : vector<2x1xf32> to vector<2x32xf32>
      %209 = arith.subf %194, %208 : vector<2x32xf32>
      %cst_87 = arith.constant 9.99999974E-6 : f32
      %210 = vector.broadcast %cst_87 : f32 to vector<2x1xf32>
      %211 = arith.addf %207, %210 : vector<2x1xf32>
      %212 = math.rsqrt %211 : vector<2x1xf32>
      %213 = vector.broadcast %212 : vector<2x1xf32> to vector<2x32xf32>
      %214 = arith.mulf %209, %213 : vector<2x32xf32>
      %215 = vector.broadcast %195 : vector<1x32xf32> to vector<2x32xf32>
      %216 = arith.mulf %214, %215 : vector<2x32xf32>
      %217 = vector.broadcast %196 : vector<1x32xf32> to vector<2x32xf32>
      %218 = arith.addf %216, %217 : vector<2x32xf32>
      %c0_88 = arith.constant 0 : index
      %c0_89 = arith.constant 0 : index
      %219 = vector.load %arg23[%c0_88, %c0_89] : memref<32x8xf32, #tpu.memory_space<vmem>>, vector<32x8xf32>
      %cst_90 = arith.constant dense<0.000000e+00> : vector<2x8xf32>
      %220 = tpu.matmul %218, %219, %cst_90 {dimension_numbers = #tpu.dot_dimension_numbers<[1], [0], [0], [1], [0, 0, 1, 1], [], []>} : vector<2x32xf32>, vector<32x8xf32>, vector<2x8xf32> -> vector<2x8xf32>
      %c0_91 = arith.constant 0 : index
      %c0_92 = arith.constant 0 : index
      %221 = vector.load %arg24[%c0_91, %c0_92] : memref<1x8xf32, #tpu.memory_space<vmem>>, vector<1x8xf32>
      %222 = vector.broadcast %221 : vector<1x8xf32> to vector<2x8xf32>
      %223 = arith.addf %220, %222 : vector<2x8xf32>
      %c0_93 = arith.constant 0 : index
      %c0_94 = arith.constant 0 : index
      %224 = vector.load %arg25[%c0_93, %c0_94] : memref<8x64xf32, #tpu.memory_space<vmem>>, vector<8x64xf32>
      %cst_95 = arith.constant dense<0.000000e+00> : vector<2x64xf32>
      %225 = tpu.matmul %223, %224, %cst_95 {dimension_numbers = #tpu.dot_dimension_numbers<[1], [0], [0], [1], [0, 0, 1, 1], [], []>} : vector<2x8xf32>, vector<8x64xf32>, vector<2x64xf32> -> vector<2x64xf32>
      %c0_96 = arith.constant 0 : index
      %c0_97 = arith.constant 0 : index
      %226 = vector.load %arg26[%c0_96, %c0_97] : memref<1x64xf32, #tpu.memory_space<vmem>>, vector<1x64xf32>
      %227 = vector.broadcast %226 : vector<1x64xf32> to vector<2x64xf32>
      %228 = arith.addf %225, %227 : vector<2x64xf32>
      %cst_98 = arith.constant 0.000000e+00 : f32
      %229 = vector.broadcast %cst_98 : f32 to vector<2x64xf32>
      %230 = arith.maximumf %228, %229 : vector<2x64xf32>
      %c0_99 = arith.constant 0 : index
      %c0_100 = arith.constant 0 : index
      %231 = vector.load %arg27[%c0_99, %c0_100] : memref<64x1xf32, #tpu.memory_space<vmem>>, vector<64x1xf32>
      %cst_101 = arith.constant dense<0.000000e+00> : vector<2x1xf32>
      %232 = tpu.matmul %230, %231, %cst_101 {dimension_numbers = #tpu.dot_dimension_numbers<[1], [0], [0], [1], [0, 0, 1, 1], [], []>} : vector<2x64xf32>, vector<64x1xf32>, vector<2x1xf32> -> vector<2x1xf32>
      %c0_102 = arith.constant 0 : index
      %c0_103 = arith.constant 0 : index
      %233 = vector.load %arg28[%c0_102, %c0_103] : memref<1x1xf32, #tpu.memory_space<vmem>>, vector<1x1xf32>
      %234 = vector.broadcast %233 : vector<1x1xf32> to vector<2x1xf32>
      %235 = arith.addf %232, %234 : vector<2x1xf32>
      %c0_104 = arith.constant 0 : index
      %c0_105 = arith.constant 0 : index
      %236 = vector.load %arg29[%c0_104, %c0_105] : memref<2x1xf32, #tpu.memory_space<vmem>>, vector<2x1xf32>
      tpu.vector_store %arg29[%c0_104, %c0_105], %235 {strides = array<i32>} : memref<2x1xf32, #tpu.memory_space<vmem>>, vector<2x1xf32>,
    } else {
    }
    return
  }
  func.func @transform_0(%arg0: i32) -> (i32, i32) {
    %c0_i32 = arith.constant 0 : i32
    %c0_i32_0 = arith.constant 0 : i32
    %c0_i32_1 = arith.constant 0 : i32
    return %c0_i32, %c0_i32_0 : i32, i32
  }
  func.func @transform_1(%arg0: i32) -> (i32, i32) {
    %c0_i32 = arith.constant 0 : i32
    %c0_i32_0 = arith.constant 0 : i32
    %c0_i32_1 = arith.constant 0 : i32
    return %c0_i32, %c0_i32_0 : i32, i32
  }
  func.func @transform_2(%arg0: i32) -> (i32, i32) {
    %c0_i32 = arith.constant 0 : i32
    %c0_i32_0 = arith.constant 0 : i32
    %c0_i32_1 = arith.constant 0 : i32
    return %c0_i32, %c0_i32_0 : i32, i32
  }
  func.func @transform_3(%arg0: i32) -> (i32, i32) {
    %c0_i32 = arith.constant 0 : i32
    %c0_i32_0 = arith.constant 0 : i32
    %c0_i32_1 = arith.constant 0 : i32
    return %c0_i32, %c0_i32_0 : i32, i32
  }
  func.func @transform_4(%arg0: i32) -> (i32, i32) {
    %c0_i32 = arith.constant 0 : i32
    %c0_i32_0 = arith.constant 0 : i32
    %c0_i32_1 = arith.constant 0 : i32
    return %c0_i32, %c0_i32_0 : i32, i32
  }
  func.func @transform_5(%arg0: i32) -> (i32, i32) {
    %c0_i32 = arith.constant 0 : i32
    %c0_i32_0 = arith.constant 0 : i32
    %c0_i32_1 = arith.constant 0 : i32
    return %c0_i32, %c0_i32_0 : i32, i32
  }
  func.func @transform_6(%arg0: i32) -> (i32, i32) {
    %c0_i32 = arith.constant 0 : i32
    %c0_i32_0 = arith.constant 0 : i32
    %c0_i32_1 = arith.constant 0 : i32
    return %c0_i32, %c0_i32_0 : i32, i32
  }
  func.func @transform_7(%arg0: i32) -> (i32, i32) {
    %c0_i32 = arith.constant 0 : i32
    %c0_i32_0 = arith.constant 0 : i32
    %c0_i32_1 = arith.constant 0 : i32
    return %c0_i32, %c0_i32_0 : i32, i32
  }
  func.func @transform_8(%arg0: i32) -> (i32, i32) {
    %c0_i32 = arith.constant 0 : i32
    %c0_i32_0 = arith.constant 0 : i32
    %c0_i32_1 = arith.constant 0 : i32
    return %c0_i32, %c0_i32_0 : i32, i32
  }
  func.func @transform_9(%arg0: i32) -> (i32, i32, i32) {
    %c0_i32 = arith.constant 0 : i32
    %c0_i32_0 = arith.constant 0 : i32
    %c0_i32_1 = arith.constant 0 : i32
    return %arg0, %c0_i32, %c0_i32_0 : i32, i32, i32
  }
  func.func @transform_10(%arg0: i32) -> (i32, i32, i32) {
    %c0_i32 = arith.constant 0 : i32
    %c0_i32_0 = arith.constant 0 : i32
    %c0_i32_1 = arith.constant 0 : i32
    return %arg0, %c0_i32, %c0_i32_0 : i32, i32, i32
  }
  func.func @transform_11(%arg0: i32) -> (i32, i32, i32) {
    %c0_i32 = arith.constant 0 : i32
    %c0_i32_0 = arith.constant 0 : i32
    %c0_i32_1 = arith.constant 0 : i32
    return %arg0, %c0_i32, %c0_i32_0 : i32, i32, i32
  }
  func.func @transform_12(%arg0: i32) -> (i32, i32, i32) {
    %c0_i32 = arith.constant 0 : i32
    %c0_i32_0 = arith.constant 0 : i32
    %c0_i32_1 = arith.constant 0 : i32
    return %arg0, %c0_i32, %c0_i32_0 : i32, i32, i32
  }
  func.func @transform_13(%arg0: i32) -> (i32, i32, i32) {
    %c0_i32 = arith.constant 0 : i32
    %c0_i32_0 = arith.constant 0 : i32
    %c0_i32_1 = arith.constant 0 : i32
    return %arg0, %c0_i32, %c0_i32_0 : i32, i32, i32
  }
  func.func @transform_14(%arg0: i32) -> (i32, i32, i32) {
    %c0_i32 = arith.constant 0 : i32
    %c0_i32_0 = arith.constant 0 : i32
    %c0_i32_1 = arith.constant 0 : i32
    return %arg0, %c0_i32, %c0_i32_0 : i32, i32, i32
  }
  func.func @transform_15(%arg0: i32) -> (i32, i32, i32) {
    %c0_i32 = arith.constant 0 : i32
    %c0_i32_0 = arith.constant 0 : i32
    %c0_i32_1 = arith.constant 0 : i32
    return %arg0, %c0_i32, %c0_i32_0 : i32, i32, i32
  }
  func.func @transform_16(%arg0: i32) -> (i32, i32, i32) {
    %c0_i32 = arith.constant 0 : i32
    %c0_i32_0 = arith.constant 0 : i32
    %c0_i32_1 = arith.constant 0 : i32
    return %arg0, %c0_i32, %c0_i32_0 : i32, i32, i32
  }
  func.func @transform_17(%arg0: i32) -> (i32, i32, i32) {
    %c0_i32 = arith.constant 0 : i32
    %c0_i32_0 = arith.constant 0 : i32
    %c0_i32_1 = arith.constant 0 : i32
    return %arg0, %c0_i32, %c0_i32_0 : i32, i32, i32
  }
  func.func @transform_18(%arg0: i32) -> (i32, i32, i32) {
    %c0_i32 = arith.constant 0 : i32
    %c0_i32_0 = arith.constant 0 : i32
    %c0_i32_1 = arith.constant 0 : i32
    return %arg0, %c0_i32, %c0_i32_0 : i32, i32, i32
  }
  func.func @transform_19(%arg0: i32) -> (i32, i32, i32) {
    %c0_i32 = arith.constant 0 : i32
    %c0_i32_0 = arith.constant 0 : i32
    %c0_i32_1 = arith.constant 0 : i32
    return %arg0, %c0_i32, %c0_i32_0 : i32, i32, i32
  }
  func.func @transform_20(%arg0: i32) -> (i32, i32) {
    %c0_i32 = arith.constant 0 : i32
    %c0_i32_0 = arith.constant 0 : i32
    %c0_i32_1 = arith.constant 0 : i32
    return %c0_i32, %c0_i32_0 : i32, i32
  }
  func.func @transform_21(%arg0: i32) -> (i32, i32) {
    %c0_i32 = arith.constant 0 : i32
    %c0_i32_0 = arith.constant 0 : i32
    %c0_i32_1 = arith.constant 0 : i32
    return %c0_i32, %c0_i32_0 : i32, i32
  }
  func.func @transform_22(%arg0: i32) -> (i32, i32) {
    %c0_i32 = arith.constant 0 : i32
    %c0_i32_0 = arith.constant 0 : i32
    %c0_i32_1 = arith.constant 0 : i32
    return %c0_i32, %c0_i32_0 : i32, i32
  }
  func.func @transform_23(%arg0: i32) -> (i32, i32) {
    %c0_i32 = arith.constant 0 : i32
    %c0_i32_0 = arith.constant 0 : i32
    %c0_i32_1 = arith.constant 0 : i32
    return %c0_i32, %c0_i32_0 : i32, i32
  }
  func.func @transform_24(%arg0: i32) -> (i32, i32) {
    %c0_i32 = arith.constant 0 : i32
    %c0_i32_0 = arith.constant 0 : i32
    %c0_i32_1 = arith.constant 0 : i32
    return %c0_i32, %c0_i32_0 : i32, i32
  }
  func.func @transform_25(%arg0: i32) -> (i32, i32) {
    %c0_i32 = arith.constant 0 : i32
    %c0_i32_0 = arith.constant 0 : i32
    %c0_i32_1 = arith.constant 0 : i32
    return %c0_i32, %c0_i32_0 : i32, i32
  }
  func.func @transform_26(%arg0: i32) -> (i32, i32) {
    %c0_i32 = arith.constant 0 : i32
    %c0_i32_0 = arith.constant 0 : i32
    %c0_i32_1 = arith.constant 0 : i32
    return %c0_i32, %c0_i32_0 : i32, i32
  }
  func.func @transform_27(%arg0: i32) -> (i32, i32) {
    %c0_i32 = arith.constant 0 : i32
    %c0_i32_0 = arith.constant 0 : i32
    %c0_i32_1 = arith.constant 0 : i32
    return %c0_i32, %c0_i32_0 : i32, i32
  }
  func.func @transform_28(%arg0: i32) -> (i32, i32) {
    %c0_i32 = arith.constant 0 : i32
    %c0_i32_0 = arith.constant 0 : i32
    %c0_i32_1 = arith.constant 0 : i32
    return %c0_i32, %c0_i32_0 : i32, i32
  }
}

</mosaic_0001>

<llo_original>
// kernel: vit_regressor_forward.1
$region0: #{vit_regressor_forward.1}
  #allocation0 [shape = 'u32[]', space=smem, size = 0x4, offset = 0x4, fixed_abs, tag = 'smem constant byte address 0x4 - core index']
  #allocation1 [shape = 'u32[144,128]{1,0:T(1,128)}', space=vmem, size = 0x12000, scoped, tag = 'internal scratch']
  #allocation2 [shape = 'f32[16,32]{1,0:T(8,128)}', space=vmem, size = 0x2000, scoped, tag = 'scratch operand']
  #allocation3 [shape = 'f32[1,1]{1,0:T(1,128)S(1)}', space=vmem, size = 0x200, scoped, tag = 'scoped memory for vit_regressor_forward.1']
  %s0 = inlined_call_operand.vmem [shape: f32[8,256], index: 0, kind: input, shape index: {}]
  %s1 = inlined_call_operand.vmem [shape: f32[1,256], index: 1, kind: input, shape index: {}]
  %s2 = inlined_call_operand.vmem [shape: f32[1,256], index: 2, kind: input, shape index: {}]
  %s3 = inlined_call_operand.vmem [shape: bf16[256,32], index: 3, kind: input, shape index: {}]
  %s4 = inlined_call_operand.vmem [shape: f32[1,32], index: 4, kind: input, shape index: {}]
  %s5 = inlined_call_operand.vmem [shape: f32[1,32], index: 5, kind: input, shape index: {}]
  %s6 = inlined_call_operand.vmem [shape: f32[1,32], index: 6, kind: input, shape index: {}]
  %s7 = inlined_call_operand.vmem [shape: f32[1,32], index: 7, kind: input, shape index: {}]
  %s8 = inlined_call_operand.vmem [shape: f32[5,32], index: 8, kind: input, shape index: {}]
  %s9 = inlined_call_operand.vmem [shape: f32[2,1,32], index: 9, kind: input, shape index: {}]
  %s10 = inlined_call_operand.vmem [shape: f32[2,1,32], index: 10, kind: input, shape index: {}]
  %s11 = inlined_call_operand.vmem [shape: bf16[2,32,384], index: 11, kind: input, shape index: {}]
  %s12 = inlined_call_operand.vmem [shape: bf16[2,128,32], index: 12, kind: input, shape index: {}]
  %s13 = inlined_call_operand.vmem [shape: f32[2,1,32], index: 13, kind: input, shape index: {}]
  %s14 = inlined_call_operand.vmem [shape: f32[2,1,32], index: 14, kind: input, shape index: {}]
  %s15 = inlined_call_operand.vmem [shape: f32[2,1,32], index: 15, kind: input, shape index: {}]
  %s16 = inlined_call_operand.vmem [shape: bf16[2,32,64], index: 16, kind: input, shape index: {}]
  %s17 = inlined_call_operand.vmem [shape: f32[2,1,64], index: 17, kind: input, shape index: {}]
  %s18 = inlined_call_operand.vmem [shape: bf16[2,64,32], index: 18, kind: input, shape index: {}]
  %s19 = inlined_call_operand.vmem [shape: f32[2,1,32], index: 19, kind: input, shape index: {}]
  %s20 = inlined_call_operand.vmem [shape: f32[1,32], index: 20, kind: input, shape index: {}]
  %s21 = inlined_call_operand.vmem [shape: f32[1,32], index: 21, kind: input, shape index: {}]
  %s22 = inlined_call_operand.vmem [shape: f32[32,8], index: 22, kind: input, shape index: {}]
  %s23 = inlined_call_operand.vmem [shape: f32[1,8], index: 23, kind: input, shape index: {}]
  %s24 = inlined_call_operand.vmem [shape: f32[8,64], index: 24, kind: input, shape index: {}]
  %s25 = inlined_call_operand.vmem [shape: f32[1,64], index: 25, kind: input, shape index: {}]
  %s26 = inlined_call_operand.vmem [shape: f32[64,1], index: 26, kind: input, shape index: {}]
  %s27 = inlined_call_operand.<no memory space> [shape: f32[1,1], index: 27, kind: input, shape index: {}]
  %s28 = inlined_call_operand.vmem [shape: f32[2,1], index: 28, kind: output, shape index: {}]
  %s29 = sld [smem:[#allocation0]]
  $region153: #{vit_regressor_forward.1} parent=0
    _
  %s31 = ssub.s32 1, %s29
  %s32 = scalar_select 0, %s31, %s29
  %v33 = vstv %s27
  %34 = vst [vmem:[#allocation3] sm:$0x1] %v33
  loop: start=0, step=1, limit=4
  $region2: #{vit_regressor_forward.1} parent=0 // loop_pre_header
    _
  $region3: #{vit_regressor_forward.1} parent=0 // loop_header
    %s36 = sphi 0, %s40
    %p37 = scmp.ge.s32.totalorder %s36, 4
    %s44 = sphi 0, %s44
    %s46 = sphi 0, %s44
    %s47 = sphi 0, %s46
    %s61 = sphi 0, %s47
    %s65 = sphi 0, %s65
    %s67 = sphi 0, %s65
    %s68 = sphi 0, %s67
    %s82 = sphi 0, %s68
    %s86 = sphi 0, %s86
    %s88 = sphi 0, %s86
    %s89 = sphi 0, %s88
    %s103 = sphi 0, %s89
    %s107 = sphi 0, %s107
    %s109 = sphi 0, %s107
    %s110 = sphi 0, %s109
    %s124 = sphi 0, %s110
    %s128 = sphi 0, %s128
    %s130 = sphi 0, %s128
    %s131 = sphi 0, %s130
    %s145 = sphi 0, %s131
    %s149 = sphi 0, %s149
    %s151 = sphi 0, %s149
    %s152 = sphi 0, %s151
    %s166 = sphi 0, %s152
    %s170 = sphi 0, %s170
    %s172 = sphi 0, %s170
    %s173 = sphi 0, %s172
    %s187 = sphi 0, %s173
    %s191 = sphi 0, %s191
    %s193 = sphi 0, %s191
    %s194 = sphi 0, %s193
    %s208 = sphi 0, %s194
    %s212 = sphi 0, %s212
    %s214 = sphi 0, %s212
    %s215 = sphi 0, %s214
    %s229 = sphi 0, %s215
    %s235 = sphi 0, %s237
    %s238 = sphi 0, %s235
    %s239 = sphi 0, %s238
    %s255 = sphi 0, %s239
    %s261 = sphi 0, %s263
    %s264 = sphi 0, %s261
    %s265 = sphi 0, %s264
    %s281 = sphi 0, %s265
    %s287 = sphi 0, %s289
    %s290 = sphi 0, %s287
    %s291 = sphi 0, %s290
    %s307 = sphi 0, %s291
    %s313 = sphi 0, %s315
    %s316 = sphi 0, %s313
    %s317 = sphi 0, %s316
    %s333 = sphi 0, %s317
    %s339 = sphi 0, %s341
    %s342 = sphi 0, %s339
    %s343 = sphi 0, %s342
    %s359 = sphi 0, %s343
    %s365 = sphi 0, %s367
    %s368 = sphi 0, %s365
    %s369 = sphi 0, %s368
    %s385 = sphi 0, %s369
    %s391 = sphi 0, %s393
    %s394 = sphi 0, %s391
    %s395 = sphi 0, %s394
    %s411 = sphi 0, %s395
    %s417 = sphi 0, %s419
    %s420 = sphi 0, %s417
    %s421 = sphi 0, %s420
    %s437 = sphi 0, %s421
    %s443 = sphi 0, %s445
    %s446 = sphi 0, %s443
    %s447 = sphi 0, %s446
    %s463 = sphi 0, %s447
    %s469 = sphi 0, %s471
    %s472 = sphi 0, %s469
    %s473 = sphi 0, %s472
    %s489 = sphi 0, %s473
    %s495 = sphi 0, %s497
    %s498 = sphi 0, %s495
    %s499 = sphi 0, %s498
    %s515 = sphi 0, %s499
    %s519 = sphi 0, %s519
    %s521 = sphi 0, %s519
    %s522 = sphi 0, %s521
    %s536 = sphi 0, %s522
    %s540 = sphi 0, %s540
    %s542 = sphi 0, %s540
    %s543 = sphi 0, %s542
    %s557 = sphi 0, %s543
    %s561 = sphi 0, %s561
    %s563 = sphi 0, %s561
    %s564 = sphi 0, %s563
    %s578 = sphi 0, %s564
    %s582 = sphi 0, %s582
    %s584 = sphi 0, %s582
    %s585 = sphi 0, %s584
    %s599 = sphi 0, %s585
    %s603 = sphi 0, %s603
    %s605 = sphi 0, %s603
    %s606 = sphi 0, %s605
    %s620 = sphi 0, %s606
    %s624 = sphi 0, %s624
    %s626 = sphi 0, %s624
    %s627 = sphi 0, %s626
    %s641 = sphi 0, %s627
    %s645 = sphi 0, %s645
    %s647 = sphi 0, %s645
    %s648 = sphi 0, %s647
    %s662 = sphi 0, %s648
    %s666 = sphi 0, %s666
    %s668 = sphi 0, %s666
    %s669 = sphi 0, %s668
    %s683 = sphi 0, %s669
    %s687 = sphi 0, %s687
    %s689 = sphi 0, %s687
    %s690 = sphi 0, %s689
    %s704 = sphi 0, %s690
  $region4: #{vit_regressor_forward.1} parent=0 // loop_header_branch
    %39 = sbr.rel (%p37) target = $region8
  $region5: #{vit_regressor_forward.1} parent=0 // loop_body
    %s41 = ssub.s32 %s36, 1
    %s42 = ssub.s32 %s36, 2
    %s43 = sadd.s32 %s36, 1
    %s45 = sadd.s32 %s44, 1
    %p48 = scmp.eq.s32.totalorder %s36, 1
    %p49 = scmp.ne.s32.totalorder %s44, %s46
    %p50 = scmp.eq.s32.totalorder %s36, 0
    %p51 = por %p49, %p50
    %p52 = scmp.ne.s32.totalorder %s44, %s46
    %p53 = scmp.eq.s32.totalorder %s41, 1
    %p54 = por %p52, %p53
    %p55 = scmp.ne.s32.totalorder %s46, %s47
    %p56 = scmp.eq.s32.totalorder %s41, 0
    %p57 = por %p55, %p56
    %p58 = scmp.ne.s32.totalorder %s46, %s47
    %p59 = scmp.eq.s32.totalorder %s42, 1
    %p60 = por %p58, %p59
    %p62 = scmp.ne.s32.totalorder %s47, %s61
    %p63 = scmp.eq.s32.totalorder %s42, 0
    %p64 = por %p62, %p63
    %s66 = sadd.s32 %s65, 1
    %p69 = scmp.eq.s32.totalorder %s36, 1
    %p70 = scmp.ne.s32.totalorder %s65, %s67
    %p71 = scmp.eq.s32.totalorder %s36, 0
    %p72 = por %p70, %p71
    %p73 = scmp.ne.s32.totalorder %s65, %s67
    %p74 = scmp.eq.s32.totalorder %s41, 1
    %p75 = por %p73, %p74
    %p76 = scmp.ne.s32.totalorder %s67, %s68
    %p77 = scmp.eq.s32.totalorder %s41, 0
    %p78 = por %p76, %p77
    %p79 = scmp.ne.s32.totalorder %s67, %s68
    %p80 = scmp.eq.s32.totalorder %s42, 1
    %p81 = por %p79, %p80
    %p83 = scmp.ne.s32.totalorder %s68, %s82
    %p84 = scmp.eq.s32.totalorder %s42, 0
    %p85 = por %p83, %p84
    %s87 = sadd.s32 %s86, 1
    %p90 = scmp.eq.s32.totalorder %s36, 1
    %p91 = scmp.ne.s32.totalorder %s86, %s88
    %p92 = scmp.eq.s32.totalorder %s36, 0
    %p93 = por %p91, %p92
    %p94 = scmp.ne.s32.totalorder %s86, %s88
    %p95 = scmp.eq.s32.totalorder %s41, 1
    %p96 = por %p94, %p95
    %p97 = scmp.ne.s32.totalorder %s88, %s89
    %p98 = scmp.eq.s32.totalorder %s41, 0
    %p99 = por %p97, %p98
    %p100 = scmp.ne.s32.totalorder %s88, %s89
    %p101 = scmp.eq.s32.totalorder %s42, 1
    %p102 = por %p100, %p101
    %p104 = scmp.ne.s32.totalorder %s89, %s103
    %p105 = scmp.eq.s32.totalorder %s42, 0
    %p106 = por %p104, %p105
    %s108 = sadd.s32 %s107, 1
    %p111 = scmp.eq.s32.totalorder %s36, 1
    %p112 = scmp.ne.s32.totalorder %s107, %s109
    %p113 = scmp.eq.s32.totalorder %s36, 0
    %p114 = por %p112, %p113
    %p115 = scmp.ne.s32.totalorder %s107, %s109
    %p116 = scmp.eq.s32.totalorder %s41, 1
    %p117 = por %p115, %p116
    %p118 = scmp.ne.s32.totalorder %s109, %s110
    %p119 = scmp.eq.s32.totalorder %s41, 0
    %p120 = por %p118, %p119
    %p121 = scmp.ne.s32.totalorder %s109, %s110
    %p122 = scmp.eq.s32.totalorder %s42, 1
    %p123 = por %p121, %p122
    %p125 = scmp.ne.s32.totalorder %s110, %s124
    %p126 = scmp.eq.s32.totalorder %s42, 0
    %p127 = por %p125, %p126
    %s129 = sadd.s32 %s128, 1
    %p132 = scmp.eq.s32.totalorder %s36, 1
    %p133 = scmp.ne.s32.totalorder %s128, %s130
    %p134 = scmp.eq.s32.totalorder %s36, 0
    %p135 = por %p133, %p134
    %p136 = scmp.ne.s32.totalorder %s128, %s130
    %p137 = scmp.eq.s32.totalorder %s41, 1
    %p138 = por %p136, %p137
    %p139 = scmp.ne.s32.totalorder %s130, %s131
    %p140 = scmp.eq.s32.totalorder %s41, 0
    %p141 = por %p139, %p140
    %p142 = scmp.ne.s32.totalorder %s130, %s131
    %p143 = scmp.eq.s32.totalorder %s42, 1
    %p144 = por %p142, %p143
    %p146 = scmp.ne.s32.totalorder %s131, %s145
    %p147 = scmp.eq.s32.totalorder %s42, 0
    %p148 = por %p146, %p147
    %s150 = sadd.s32 %s149, 1
    %p153 = scmp.eq.s32.totalorder %s36, 1
    %p154 = scmp.ne.s32.totalorder %s149, %s151
    %p155 = scmp.eq.s32.totalorder %s36, 0
    %p156 = por %p154, %p155
    %p157 = scmp.ne.s32.totalorder %s149, %s151
    %p158 = scmp.eq.s32.totalorder %s41, 1
    %p159 = por %p157, %p158
    %p160 = scmp.ne.s32.totalorder %s151, %s152
    %p161 = scmp.eq.s32.totalorder %s41, 0
    %p162 = por %p160, %p161
    %p163 = scmp.ne.s32.totalorder %s151, %s152
    %p164 = scmp.eq.s32.totalorder %s42, 1
    %p165 = por %p163, %p164
    %p167 = scmp.ne.s32.totalorder %s152, %s166
    %p168 = scmp.eq.s32.totalorder %s42, 0
    %p169 = por %p167, %p168
    %s171 = sadd.s32 %s170, 1
    %p174 = scmp.eq.s32.totalorder %s36, 1
    %p175 = scmp.ne.s32.totalorder %s170, %s172
    %p176 = scmp.eq.s32.totalorder %s36, 0
    %p177 = por %p175, %p176
    %p178 = scmp.ne.s32.totalorder %s170, %s172
    %p179 = scmp.eq.s32.totalorder %s41, 1
    %p180 = por %p178, %p179
    %p181 = scmp.ne.s32.totalorder %s172, %s173
    %p182 = scmp.eq.s32.totalorder %s41, 0
    %p183 = por %p181, %p182
    %p184 = scmp.ne.s32.totalorder %s172, %s173
    %p185 = scmp.eq.s32.totalorder %s42, 1
    %p186 = por %p184, %p185
    %p188 = scmp.ne.s32.totalorder %s173, %s187
    %p189 = scmp.eq.s32.totalorder %s42, 0
    %p190 = por %p188, %p189
    %s192 = sadd.s32 %s191, 1
    %p195 = scmp.eq.s32.totalorder %s36, 1
    %p196 = scmp.ne.s32.totalorder %s191, %s193
    %p197 = scmp.eq.s32.totalorder %s36, 0
    %p198 = por %p196, %p197
    %p199 = scmp.ne.s32.totalorder %s191, %s193
    %p200 = scmp.eq.s32.totalorder %s41, 1
    %p201 = por %p199, %p200
    %p202 = scmp.ne.s32.totalorder %s193, %s194
    %p203 = scmp.eq.s32.totalorder %s41, 0
    %p204 = por %p202, %p203
    %p205 = scmp.ne.s32.totalorder %s193, %s194
    %p206 = scmp.eq.s32.totalorder %s42, 1
    %p207 = por %p205, %p206
    %p209 = scmp.ne.s32.totalorder %s194, %s208
    %p210 = scmp.eq.s32.totalorder %s42, 0
    %p211 = por %p209, %p210
    %s213 = sadd.s32 %s212, 1
    %p216 = scmp.eq.s32.totalorder %s36, 1
    %p217 = scmp.ne.s32.totalorder %s212, %s214
    %p218 = scmp.eq.s32.totalorder %s36, 0
    %p219 = por %p217, %p218
    %p220 = scmp.ne.s32.totalorder %s212, %s214
    %p221 = scmp.eq.s32.totalorder %s41, 1
    %p222 = por %p220, %p221
    %p223 = scmp.ne.s32.totalorder %s214, %s215
    %p224 = scmp.eq.s32.totalorder %s41, 0
    %p225 = por %p223, %p224
    %p226 = scmp.ne.s32.totalorder %s214, %s215
    %p227 = scmp.eq.s32.totalorder %s42, 1
    %p228 = por %p226, %p227
    %p230 = scmp.ne.s32.totalorder %s215, %s229
    %p231 = scmp.eq.s32.totalorder %s42, 0
    %p232 = por %p230, %p231
    %s233 = ssub.s32 %s36, %s43
    %p234 = scmp.eq.s32.totalorder %s233, 0
    %s236 = sadd.s32 %s235, 1
    %s237 = scalar_select %p234, %s235, %s236
    %p240 = pneg %p234
    %p241 = scmp.eq.s32.totalorder %s36, 1
    %p242 = por %p240, %p241
    %p243 = scmp.ne.s32.totalorder %s235, %s238
    %p244 = scmp.eq.s32.totalorder %s36, 0
    %p245 = por %p243, %p244
    %p246 = scmp.ne.s32.totalorder %s235, %s238
    %p247 = scmp.eq.s32.totalorder %s41, 1
    %p248 = por %p246, %p247
    %p249 = scmp.ne.s32.totalorder %s238, %s239
    %p250 = scmp.eq.s32.totalorder %s41, 0
    %p251 = por %p249, %p250
    %p252 = scmp.ne.s32.totalorder %s238, %s239
    %p253 = scmp.eq.s32.totalorder %s42, 1
    %p254 = por %p252, %p253
    %p256 = scmp.ne.s32.totalorder %s239, %s255
    %p257 = scmp.eq.s32.totalorder %s42, 0
    %p258 = por %p256, %p257
    %s259 = ssub.s32 %s36, %s43
    %p260 = scmp.eq.s32.totalorder %s259, 0
    %s262 = sadd.s32 %s261, 1
    %s263 = scalar_select %p260, %s261, %s262
    %p266 = pneg %p260
    %p267 = scmp.eq.s32.totalorder %s36, 1
    %p268 = por %p266, %p267
    %p269 = scmp.ne.s32.totalorder %s261, %s264
    %p270 = scmp.eq.s32.totalorder %s36, 0
    %p271 = por %p269, %p270
    %p272 = scmp.ne.s32.totalorder %s261, %s264
    %p273 = scmp.eq.s32.totalorder %s41, 1
    %p274 = por %p272, %p273
    %p275 = scmp.ne.s32.totalorder %s264, %s265
    %p276 = scmp.eq.s32.totalorder %s41, 0
    %p277 = por %p275, %p276
    %p278 = scmp.ne.s32.totalorder %s264, %s265
    %p279 = scmp.eq.s32.totalorder %s42, 1
    %p280 = por %p278, %p279
    %p282 = scmp.ne.s32.totalorder %s265, %s281
    %p283 = scmp.eq.s32.totalorder %s42, 0
    %p284 = por %p282, %p283
    %s285 = ssub.s32 %s36, %s43
    %p286 = scmp.eq.s32.totalorder %s285, 0
    %s288 = sadd.s32 %s287, 1
    %s289 = scalar_select %p286, %s287, %s288
    %p292 = pneg %p286
    %p293 = scmp.eq.s32.totalorder %s36, 1
    %p294 = por %p292, %p293
    %p295 = scmp.ne.s32.totalorder %s287, %s290
    %p296 = scmp.eq.s32.totalorder %s36, 0
    %p297 = por %p295, %p296
    %p298 = scmp.ne.s32.totalorder %s287, %s290
    %p299 = scmp.eq.s32.totalorder %s41, 1
    %p300 = por %p298, %p299
    %p301 = scmp.ne.s32.totalorder %s290, %s291
    %p302 = scmp.eq.s32.totalorder %s41, 0
    %p303 = por %p301, %p302
    %p304 = scmp.ne.s32.totalorder %s290, %s291
    %p305 = scmp.eq.s32.totalorder %s42, 1
    %p306 = por %p304, %p305
    %p308 = scmp.ne.s32.totalorder %s291, %s307
    %p309 = scmp.eq.s32.totalorder %s42, 0
    %p310 = por %p308, %p309
    %s311 = ssub.s32 %s36, %s43
    %p312 = scmp.eq.s32.totalorder %s311, 0
    %s314 = sadd.s32 %s313, 1
    %s315 = scalar_select %p312, %s313, %s314
    %p318 = pneg %p312
    %p319 = scmp.eq.s32.totalorder %s36, 1
    %p320 = por %p318, %p319
    %p321 = scmp.ne.s32.totalorder %s313, %s316
    %p322 = scmp.eq.s32.totalorder %s36, 0
    %p323 = por %p321, %p322
    %p324 = scmp.ne.s32.totalorder %s313, %s316
    %p325 = scmp.eq.s32.totalorder %s41, 1
    %p326 = por %p324, %p325
    %p327 = scmp.ne.s32.totalorder %s316, %s317
    %p328 = scmp.eq.s32.totalorder %s41, 0
    %p329 = por %p327, %p328
    %p330 = scmp.ne.s32.totalorder %s316, %s317
    %p331 = scmp.eq.s32.totalorder %s42, 1
    %p332 = por %p330, %p331
    %p334 = scmp.ne.s32.totalorder %s317, %s333
    %p335 = scmp.eq.s32.totalorder %s42, 0
    %p336 = por %p334, %p335
    %s337 = ssub.s32 %s36, %s43
    %p338 = scmp.eq.s32.totalorder %s337, 0
    %s340 = sadd.s32 %s339, 1
    %s341 = scalar_select %p338, %s339, %s340
    %p344 = pneg %p338
    %p345 = scmp.eq.s32.totalorder %s36, 1
    %p346 = por %p344, %p345
    %p347 = scmp.ne.s32.totalorder %s339, %s342
    %p348 = scmp.eq.s32.totalorder %s36, 0
    %p349 = por %p347, %p348
    %p350 = scmp.ne.s32.totalorder %s339, %s342
    %p351 = scmp.eq.s32.totalorder %s41, 1
    %p352 = por %p350, %p351
    %p353 = scmp.ne.s32.totalorder %s342, %s343
    %p354 = scmp.eq.s32.totalorder %s41, 0
    %p355 = por %p353, %p354
    %p356 = scmp.ne.s32.totalorder %s342, %s343
    %p357 = scmp.eq.s32.totalorder %s42, 1
    %p358 = por %p356, %p357
    %p360 = scmp.ne.s32.totalorder %s343, %s359
    %p361 = scmp.eq.s32.totalorder %s42, 0
    %p362 = por %p360, %p361
    %s363 = ssub.s32 %s36, %s43
    %p364 = scmp.eq.s32.totalorder %s363, 0
    %s366 = sadd.s32 %s365, 1
    %s367 = scalar_select %p364, %s365, %s366
    %p370 = pneg %p364
    %p371 = scmp.eq.s32.totalorder %s36, 1
    %p372 = por %p370, %p371
    %p373 = scmp.ne.s32.totalorder %s365, %s368
    %p374 = scmp.eq.s32.totalorder %s36, 0
    %p375 = por %p373, %p374
    %p376 = scmp.ne.s32.totalorder %s365, %s368
    %p377 = scmp.eq.s32.totalorder %s41, 1
    %p378 = por %p376, %p377
    %p379 = scmp.ne.s32.totalorder %s368, %s369
    %p380 = scmp.eq.s32.totalorder %s41, 0
    %p381 = por %p379, %p380
    %p382 = scmp.ne.s32.totalorder %s368, %s369
    %p383 = scmp.eq.s32.totalorder %s42, 1
    %p384 = por %p382, %p383
    %p386 = scmp.ne.s32.totalorder %s369, %s385
    %p387 = scmp.eq.s32.totalorder %s42, 0
    %p388 = por %p386, %p387
    %s389 = ssub.s32 %s36, %s43
    %p390 = scmp.eq.s32.totalorder %s389, 0
    %s392 = sadd.s32 %s391, 1
    %s393 = scalar_select %p390, %s391, %s392
    %p396 = pneg %p390
    %p397 = scmp.eq.s32.totalorder %s36, 1
    %p398 = por %p396, %p397
    %p399 = scmp.ne.s32.totalorder %s391, %s394
    %p400 = scmp.eq.s32.totalorder %s36, 0
    %p401 = por %p399, %p400
    %p402 = scmp.ne.s32.totalorder %s391, %s394
    %p403 = scmp.eq.s32.totalorder %s41, 1
    %p404 = por %p402, %p403
    %p405 = scmp.ne.s32.totalorder %s394, %s395
    %p406 = scmp.eq.s32.totalorder %s41, 0
    %p407 = por %p405, %p406
    %p408 = scmp.ne.s32.totalorder %s394, %s395
    %p409 = scmp.eq.s32.totalorder %s42, 1
    %p410 = por %p408, %p409
    %p412 = scmp.ne.s32.totalorder %s395, %s411
    %p413 = scmp.eq.s32.totalorder %s42, 0
    %p414 = por %p412, %p413
    %s415 = ssub.s32 %s36, %s43
    %p416 = scmp.eq.s32.totalorder %s415, 0
    %s418 = sadd.s32 %s417, 1
    %s419 = scalar_select %p416, %s417, %s418
    %p422 = pneg %p416
    %p423 = scmp.eq.s32.totalorder %s36, 1
    %p424 = por %p422, %p423
    %p425 = scmp.ne.s32.totalorder %s417, %s420
    %p426 = scmp.eq.s32.totalorder %s36, 0
    %p427 = por %p425, %p426
    %p428 = scmp.ne.s32.totalorder %s417, %s420
    %p429 = scmp.eq.s32.totalorder %s41, 1
    %p430 = por %p428, %p429
    %p431 = scmp.ne.s32.totalorder %s420, %s421
    %p432 = scmp.eq.s32.totalorder %s41, 0
    %p433 = por %p431, %p432
    %p434 = scmp.ne.s32.totalorder %s420, %s421
    %p435 = scmp.eq.s32.totalorder %s42, 1
    %p436 = por %p434, %p435
    %p438 = scmp.ne.s32.totalorder %s421, %s437
    %p439 = scmp.eq.s32.totalorder %s42, 0
    %p440 = por %p438, %p439
    %s441 = ssub.s32 %s36, %s43
    %p442 = scmp.eq.s32.totalorder %s441, 0
    %s444 = sadd.s32 %s443, 1
    %s445 = scalar_select %p442, %s443, %s444
    %p448 = pneg %p442
    %p449 = scmp.eq.s32.totalorder %s36, 1
    %p450 = por %p448, %p449
    %p451 = scmp.ne.s32.totalorder %s443, %s446
    %p452 = scmp.eq.s32.totalorder %s36, 0
    %p453 = por %p451, %p452
    %p454 = scmp.ne.s32.totalorder %s443, %s446
    %p455 = scmp.eq.s32.totalorder %s41, 1
    %p456 = por %p454, %p455
    %p457 = scmp.ne.s32.totalorder %s446, %s447
    %p458 = scmp.eq.s32.totalorder %s41, 0
    %p459 = por %p457, %p458
    %p460 = scmp.ne.s32.totalorder %s446, %s447
    %p461 = scmp.eq.s32.totalorder %s42, 1
    %p462 = por %p460, %p461
    %p464 = scmp.ne.s32.totalorder %s447, %s463
    %p465 = scmp.eq.s32.totalorder %s42, 0
    %p466 = por %p464, %p465
    %s467 = ssub.s32 %s36, %s43
    %p468 = scmp.eq.s32.totalorder %s467, 0
    %s470 = sadd.s32 %s469, 1
    %s471 = scalar_select %p468, %s469, %s470
    %p474 = pneg %p468
    %p475 = scmp.eq.s32.totalorder %s36, 1
    %p476 = por %p474, %p475
    %p477 = scmp.ne.s32.totalorder %s469, %s472
    %p478 = scmp.eq.s32.totalorder %s36, 0
    %p479 = por %p477, %p478
    %p480 = scmp.ne.s32.totalorder %s469, %s472
    %p481 = scmp.eq.s32.totalorder %s41, 1
    %p482 = por %p480, %p481
    %p483 = scmp.ne.s32.totalorder %s472, %s473
    %p484 = scmp.eq.s32.totalorder %s41, 0
    %p485 = por %p483, %p484
    %p486 = scmp.ne.s32.totalorder %s472, %s473
    %p487 = scmp.eq.s32.totalorder %s42, 1
    %p488 = por %p486, %p487
    %p490 = scmp.ne.s32.totalorder %s473, %s489
    %p491 = scmp.eq.s32.totalorder %s42, 0
    %p492 = por %p490, %p491
    %s493 = ssub.s32 %s36, %s43
    %p494 = scmp.eq.s32.totalorder %s493, 0
    %s496 = sadd.s32 %s495, 1
    %s497 = scalar_select %p494, %s495, %s496
    %p500 = pneg %p494
    %p501 = scmp.eq.s32.totalorder %s36, 1
    %p502 = por %p500, %p501
    %p503 = scmp.ne.s32.totalorder %s495, %s498
    %p504 = scmp.eq.s32.totalorder %s36, 0
    %p505 = por %p503, %p504
    %p506 = scmp.ne.s32.totalorder %s495, %s498
    %p507 = scmp.eq.s32.totalorder %s41, 1
    %p508 = por %p506, %p507
    %p509 = scmp.ne.s32.totalorder %s498, %s499
    %p510 = scmp.eq.s32.totalorder %s41, 0
    %p511 = por %p509, %p510
    %p512 = scmp.ne.s32.totalorder %s498, %s499
    %p513 = scmp.eq.s32.totalorder %s42, 1
    %p514 = por %p512, %p513
    %p516 = scmp.ne.s32.totalorder %s499, %s515
    %p517 = scmp.eq.s32.totalorder %s42, 0
    %p518 = por %p516, %p517
    %s520 = sadd.s32 %s519, 1
    %p523 = scmp.eq.s32.totalorder %s36, 1
    %p524 = scmp.ne.s32.totalorder %s519, %s521
    %p525 = scmp.eq.s32.totalorder %s36, 0
    %p526 = por %p524, %p525
    %p527 = scmp.ne.s32.totalorder %s519, %s521
    %p528 = scmp.eq.s32.totalorder %s41, 1
    %p529 = por %p527, %p528
    %p530 = scmp.ne.s32.totalorder %s521, %s522
    %p531 = scmp.eq.s32.totalorder %s41, 0
    %p532 = por %p530, %p531
    %p533 = scmp.ne.s32.totalorder %s521, %s522
    %p534 = scmp.eq.s32.totalorder %s42, 1
    %p535 = por %p533, %p534
    %p537 = scmp.ne.s32.totalorder %s522, %s536
    %p538 = scmp.eq.s32.totalorder %s42, 0
    %p539 = por %p537, %p538
    %s541 = sadd.s32 %s540, 1
    %p544 = scmp.eq.s32.totalorder %s36, 1
    %p545 = scmp.ne.s32.totalorder %s540, %s542
    %p546 = scmp.eq.s32.totalorder %s36, 0
    %p547 = por %p545, %p546
    %p548 = scmp.ne.s32.totalorder %s540, %s542
    %p549 = scmp.eq.s32.totalorder %s41, 1
    %p550 = por %p548, %p549
    %p551 = scmp.ne.s32.totalorder %s542, %s543
    %p552 = scmp.eq.s32.totalorder %s41, 0
    %p553 = por %p551, %p552
    %p554 = scmp.ne.s32.totalorder %s542, %s543
    %p555 = scmp.eq.s32.totalorder %s42, 1
    %p556 = por %p554, %p555
    %p558 = scmp.ne.s32.totalorder %s543, %s557
    %p559 = scmp.eq.s32.totalorder %s42, 0
    %p560 = por %p558, %p559
    %s562 = sadd.s32 %s561, 1
    %p565 = scmp.eq.s32.totalorder %s36, 1
    %p566 = scmp.ne.s32.totalorder %s561, %s563
    %p567 = scmp.eq.s32.totalorder %s36, 0
    %p568 = por %p566, %p567
    %p569 = scmp.ne.s32.totalorder %s561, %s563
    %p570 = scmp.eq.s32.totalorder %s41, 1
    %p571 = por %p569, %p570
    %p572 = scmp.ne.s32.totalorder %s563, %s564
    %p573 = scmp.eq.s32.totalorder %s41, 0
    %p574 = por %p572, %p573
    %p575 = scmp.ne.s32.totalorder %s563, %s564
    %p576 = scmp.eq.s32.totalorder %s42, 1
    %p577 = por %p575, %p576
    %p579 = scmp.ne.s32.totalorder %s564, %s578
    %p580 = scmp.eq.s32.totalorder %s42, 0
    %p581 = por %p579, %p580
    %s583 = sadd.s32 %s582, 1
    %p586 = scmp.eq.s32.totalorder %s36, 1
    %p587 = scmp.ne.s32.totalorder %s582, %s584
    %p588 = scmp.eq.s32.totalorder %s36, 0
    %p589 = por %p587, %p588
    %p590 = scmp.ne.s32.totalorder %s582, %s584
    %p591 = scmp.eq.s32.totalorder %s41, 1
    %p592 = por %p590, %p591
    %p593 = scmp.ne.s32.totalorder %s584, %s585
    %p594 = scmp.eq.s32.totalorder %s41, 0
    %p595 = por %p593, %p594
    %p596 = scmp.ne.s32.totalorder %s584, %s585
    %p597 = scmp.eq.s32.totalorder %s42, 1
    %p598 = por %p596, %p597
    %p600 = scmp.ne.s32.totalorder %s585, %s599
    %p601 = scmp.eq.s32.totalorder %s42, 0
    %p602 = por %p600, %p601
    %s604 = sadd.s32 %s603, 1
    %p607 = scmp.eq.s32.totalorder %s36, 1
    %p608 = scmp.ne.s32.totalorder %s603, %s605
    %p609 = scmp.eq.s32.totalorder %s36, 0
    %p610 = por %p608, %p609
    %p611 = scmp.ne.s32.totalorder %s603, %s605
    %p612 = scmp.eq.s32.totalorder %s41, 1
    %p613 = por %p611, %p612
    %p614 = scmp.ne.s32.totalorder %s605, %s606
    %p615 = scmp.eq.s32.totalorder %s41, 0
    %p616 = por %p614, %p615
    %p617 = scmp.ne.s32.totalorder %s605, %s606
    %p618 = scmp.eq.s32.totalorder %s42, 1
    %p619 = por %p617, %p618
    %p621 = scmp.ne.s32.totalorder %s606, %s620
    %p622 = scmp.eq.s32.totalorder %s42, 0
    %p623 = por %p621, %p622
    %s625 = sadd.s32 %s624, 1
    %p628 = scmp.eq.s32.totalorder %s36, 1
    %p629 = scmp.ne.s32.totalorder %s624, %s626
    %p630 = scmp.eq.s32.totalorder %s36, 0
    %p631 = por %p629, %p630
    %p632 = scmp.ne.s32.totalorder %s624, %s626
    %p633 = scmp.eq.s32.totalorder %s41, 1
    %p634 = por %p632, %p633
    %p635 = scmp.ne.s32.totalorder %s626, %s627
    %p636 = scmp.eq.s32.totalorder %s41, 0
    %p637 = por %p635, %p636
    %p638 = scmp.ne.s32.totalorder %s626, %s627
    %p639 = scmp.eq.s32.totalorder %s42, 1
    %p640 = por %p638, %p639
    %p642 = scmp.ne.s32.totalorder %s627, %s641
    %p643 = scmp.eq.s32.totalorder %s42, 0
    %p644 = por %p642, %p643
    %s646 = sadd.s32 %s645, 1
    %p649 = scmp.eq.s32.totalorder %s36, 1
    %p650 = scmp.ne.s32.totalorder %s645, %s647
    %p651 = scmp.eq.s32.totalorder %s36, 0
    %p652 = por %p650, %p651
    %p653 = scmp.ne.s32.totalorder %s645, %s647
    %p654 = scmp.eq.s32.totalorder %s41, 1
    %p655 = por %p653, %p654
    %p656 = scmp.ne.s32.totalorder %s647, %s648
    %p657 = scmp.eq.s32.totalorder %s41, 0
    %p658 = por %p656, %p657
    %p659 = scmp.ne.s32.totalorder %s647, %s648
    %p660 = scmp.eq.s32.totalorder %s42, 1
    %p661 = por %p659, %p660
    %p663 = scmp.ne.s32.totalorder %s648, %s662
    %p664 = scmp.eq.s32.totalorder %s42, 0
    %p665 = por %p663, %p664
    %s667 = sadd.s32 %s666, 1
    %p670 = scmp.eq.s32.totalorder %s36, 1
    %p671 = scmp.ne.s32.totalorder %s666, %s668
    %p672 = scmp.eq.s32.totalorder %s36, 0
    %p673 = por %p671, %p672
    %p674 = scmp.ne.s32.totalorder %s666, %s668
    %p675 = scmp.eq.s32.totalorder %s41, 1
    %p676 = por %p674, %p675
    %p677 = scmp.ne.s32.totalorder %s668, %s669
    %p678 = scmp.eq.s32.totalorder %s41, 0
    %p679 = por %p677, %p678
    %p680 = scmp.ne.s32.totalorder %s668, %s669
    %p681 = scmp.eq.s32.totalorder %s42, 1
    %p682 = por %p680, %p681
    %p684 = scmp.ne.s32.totalorder %s669, %s683
    %p685 = scmp.eq.s32.totalorder %s42, 0
    %p686 = por %p684, %p685
    %s688 = sadd.s32 %s687, 1
    %p691 = scmp.eq.s32.totalorder %s36, 1
    %p692 = scmp.ne.s32.totalorder %s687, %s689
    %p693 = scmp.eq.s32.totalorder %s36, 0
    %p694 = por %p692, %p693
    %p695 = scmp.ne.s32.totalorder %s687, %s689
    %p696 = scmp.eq.s32.totalorder %s41, 1
    %p697 = por %p695, %p696
    %p698 = scmp.ne.s32.totalorder %s689, %s690
    %p699 = scmp.eq.s32.totalorder %s41, 0
    %p700 = por %p698, %p699
    %p701 = scmp.ne.s32.totalorder %s689, %s690
    %p702 = scmp.eq.s32.totalorder %s42, 1
    %p703 = por %p701, %p702
    %p705 = scmp.ne.s32.totalorder %s690, %s704
    %p706 = scmp.eq.s32.totalorder %s42, 0
    %p707 = por %p705, %p706
    %p708 = scmp.le.s32.totalorder 1, %s36
    %p709 = scmp.lt.s32.totalorder %s36, 3
    %p710 = pnand %p708, %p709
    %p711 = pneg %p710
    // Predicated region
    $region9: #{vit_regressor_forward.1} parent=5 // pred_check
      _
    $region10: #{vit_regressor_forward.1} parent=5 // pred_check_branch
      %713 = sbr.rel (%p710) target = $region12
    $region11: #{vit_regressor_forward.1} parent=5 // pred_region
      %s714 = ssub.s32 %s36, 1
      // Predicated region
      $region13: #{vit_regressor_forward.1} parent=11 // pred_check
        %p715 = pneg %p57
      $region14: #{vit_regressor_forward.1} parent=11 // pred_check_branch
        %717 = sbr.rel (%p715) target = $region16
      $region15: #{vit_regressor_forward.1} parent=11 // pred_region
        _
      $region16: #{vit_regressor_forward.1} parent=11 // pred_fallthru
        _
      // Predicated region
      $region17: #{vit_regressor_forward.1} parent=11 // pred_check
        %p718 = pneg %p78
      $region18: #{vit_regressor_forward.1} parent=11 // pred_check_branch
        %720 = sbr.rel (%p718) target = $region20
      $region19: #{vit_regressor_forward.1} parent=11 // pred_region
        _
      $region20: #{vit_regressor_forward.1} parent=11 // pred_fallthru
        _
      // Predicated region
      $region21: #{vit_regressor_forward.1} parent=11 // pred_check
        %p721 = pneg %p99
      $region22: #{vit_regressor_forward.1} parent=11 // pred_check_branch
        %723 = sbr.rel (%p721) target = $region24
      $region23: #{vit_regressor_forward.1} parent=11 // pred_region
        _
      $region24: #{vit_regressor_forward.1} parent=11 // pred_fallthru
        _
      // Predicated region
      $region25: #{vit_regressor_forward.1} parent=11 // pred_check
        %p724 = pneg %p120
      $region26: #{vit_regressor_forward.1} parent=11 // pred_check_branch
        %726 = sbr.rel (%p724) target = $region28
      $region27: #{vit_regressor_forward.1} parent=11 // pred_region
        _
      $region28: #{vit_regressor_forward.1} parent=11 // pred_fallthru
        _
      // Predicated region
      $region29: #{vit_regressor_forward.1} parent=11 // pred_check
        %p727 = pneg %p141
      $region30: #{vit_regressor_forward.1} parent=11 // pred_check_branch
        %729 = sbr.rel (%p727) target = $region32
      $region31: #{vit_regressor_forward.1} parent=11 // pred_region
        _
      $region32: #{vit_regressor_forward.1} parent=11 // pred_fallthru
        _
      // Predicated region
      $region33: #{vit_regressor_forward.1} parent=11 // pred_check
        %p730 = pneg %p162
      $region34: #{vit_regressor_forward.1} parent=11 // pred_check_branch
        %732 = sbr.rel (%p730) target = $region36
      $region35: #{vit_regressor_forward.1} parent=11 // pred_region
        _
      $region36: #{vit_regressor_forward.1} parent=11 // pred_fallthru
        _
      // Predicated region
      $region37: #{vit_regressor_forward.1} parent=11 // pred_check
        %p733 = pneg %p183
      $region38: #{vit_regressor_forward.1} parent=11 // pred_check_branch
        %735 = sbr.rel (%p733) target = $region40
      $region39: #{vit_regressor_forward.1} parent=11 // pred_region
        _
      $region40: #{vit_regressor_forward.1} parent=11 // pred_fallthru
        _
      // Predicated region
      $region41: #{vit_regressor_forward.1} parent=11 // pred_check
        %p736 = pneg %p204
      $region42: #{vit_regressor_forward.1} parent=11 // pred_check_branch
        %738 = sbr.rel (%p736) target = $region44
      $region43: #{vit_regressor_forward.1} parent=11 // pred_region
        _
      $region44: #{vit_regressor_forward.1} parent=11 // pred_fallthru
        _
      // Predicated region
      $region45: #{vit_regressor_forward.1} parent=11 // pred_check
        %p739 = pneg %p225
      $region46: #{vit_regressor_forward.1} parent=11 // pred_check_branch
        %741 = sbr.rel (%p739) target = $region48
      $region47: #{vit_regressor_forward.1} parent=11 // pred_region
        _
      $region48: #{vit_regressor_forward.1} parent=11 // pred_fallthru
        _
      // Predicated region
      $region49: #{vit_regressor_forward.1} parent=11 // pred_check
        %p742 = pneg %p532
      $region50: #{vit_regressor_forward.1} parent=11 // pred_check_branch
        %744 = sbr.rel (%p742) target = $region52
      $region51: #{vit_regressor_forward.1} parent=11 // pred_region
        _
      $region52: #{vit_regressor_forward.1} parent=11 // pred_fallthru
        _
      // Predicated region
      $region53: #{vit_regressor_forward.1} parent=11 // pred_check
        %p745 = pneg %p553
      $region54: #{vit_regressor_forward.1} parent=11 // pred_check_branch
        %747 = sbr.rel (%p745) target = $region56
      $region55: #{vit_regressor_forward.1} parent=11 // pred_region
        _
      $region56: #{vit_regressor_forward.1} parent=11 // pred_fallthru
        _
      // Predicated region
      $region57: #{vit_regressor_forward.1} parent=11 // pred_check
        %p748 = pneg %p574
      $region58: #{vit_regressor_forward.1} parent=11 // pred_check_branch
        %750 = sbr.rel (%p748) target = $region60
      $region59: #{vit_regressor_forward.1} parent=11 // pred_region
        _
      $region60: #{vit_regressor_forward.1} parent=11 // pred_fallthru
        _
      // Predicated region
      $region61: #{vit_regressor_forward.1} parent=11 // pred_check
        %p751 = pneg %p595
      $region62: #{vit_regressor_forward.1} parent=11 // pred_check_branch
        %753 = sbr.rel (%p751) target = $region64
      $region63: #{vit_regressor_forward.1} parent=11 // pred_region
        _
      $region64: #{vit_regressor_forward.1} parent=11 // pred_fallthru
        _
      // Predicated region
      $region65: #{vit_regressor_forward.1} parent=11 // pred_check
        %p754 = pneg %p616
      $region66: #{vit_regressor_forward.1} parent=11 // pred_check_branch
        %756 = sbr.rel (%p754) target = $region68
      $region67: #{vit_regressor_forward.1} parent=11 // pred_region
        _
      $region68: #{vit_regressor_forward.1} parent=11 // pred_fallthru
        _
      // Predicated region
      $region69: #{vit_regressor_forward.1} parent=11 // pred_check
        %p757 = pneg %p637
      $region70: #{vit_regressor_forward.1} parent=11 // pred_check_branch
        %759 = sbr.rel (%p757) target = $region72
      $region71: #{vit_regressor_forward.1} parent=11 // pred_region
        _
      $region72: #{vit_regressor_forward.1} parent=11 // pred_fallthru
        _
      // Predicated region
      $region73: #{vit_regressor_forward.1} parent=11 // pred_check
        %p760 = pneg %p658
      $region74: #{vit_regressor_forward.1} parent=11 // pred_check_branch
        %762 = sbr.rel (%p760) target = $region76
      $region75: #{vit_regressor_forward.1} parent=11 // pred_region
        _
      $region76: #{vit_regressor_forward.1} parent=11 // pred_fallthru
        _
      // Predicated region
      $region77: #{vit_regressor_forward.1} parent=11 // pred_check
        %p763 = pneg %p679
      $region78: #{vit_regressor_forward.1} parent=11 // pred_check_branch
        %765 = sbr.rel (%p763) target = $region80
      $region79: #{vit_regressor_forward.1} parent=11 // pred_region
        _
      $region80: #{vit_regressor_forward.1} parent=11 // pred_fallthru
        _
    $region12: #{vit_regressor_forward.1} parent=5 // pred_fallthru
      _
    %p766 = scmp.lt.s32.totalorder %s36, 2
    // Predicated region
    $region81: #{vit_regressor_forward.1} parent=5 // pred_check
      %p767 = pneg %p766
    $region82: #{vit_regressor_forward.1} parent=5 // pred_check_branch
      %769 = sbr.rel (%p767) target = $region84
    $region83: #{vit_regressor_forward.1} parent=5 // pred_region
      // Predicated region
      $region85: #{vit_regressor_forward.1} parent=83 // pred_check
        %p770 = pneg %p245
      $region86: #{vit_regressor_forward.1} parent=83 // pred_check_branch
        %772 = sbr.rel (%p770) target = $region88
      $region87: #{vit_regressor_forward.1} parent=83 // pred_region
        %p773 = scmp.lt.s32.totalorder %s36, 1
        %s774 = scalar_select %p773, %s36, 1
        %s775 = scalar_lea.vmem %s9, %s774
      $region88: #{vit_regressor_forward.1} parent=83 // pred_fallthru
        _
      // Predicated region
      $region89: #{vit_regressor_forward.1} parent=83 // pred_check
        %p776 = pneg %p271
      $region90: #{vit_regressor_forward.1} parent=83 // pred_check_branch
        %778 = sbr.rel (%p776) target = $region92
      $region91: #{vit_regressor_forward.1} parent=83 // pred_region
        %p779 = scmp.lt.s32.totalorder %s36, 1
        %s780 = scalar_select %p779, %s36, 1
        %s781 = scalar_lea.vmem %s10, %s780
      $region92: #{vit_regressor_forward.1} parent=83 // pred_fallthru
        _
      // Predicated region
      $region93: #{vit_regressor_forward.1} parent=83 // pred_check
        %p782 = pneg %p297
      $region94: #{vit_regressor_forward.1} parent=83 // pred_check_branch
        %784 = sbr.rel (%p782) target = $region96
      $region95: #{vit_regressor_forward.1} parent=83 // pred_region
        %p785 = scmp.lt.s32.totalorder %s36, 1
        %s786 = scalar_select %p785, %s36, 1
        %s787 = smul.addr %s786, 12
        %s788 = smul.addr %s787, 4
        %s789 = scalar_lea.vmem %s11, %s788
      $region96: #{vit_regressor_forward.1} parent=83 // pred_fallthru
        _
      // Predicated region
      $region97: #{vit_regressor_forward.1} parent=83 // pred_check
        %p790 = pneg %p323
      $region98: #{vit_regressor_forward.1} parent=83 // pred_check_branch
        %792 = sbr.rel (%p790) target = $region100
      $region99: #{vit_regressor_forward.1} parent=83 // pred_region
        %p793 = scmp.lt.s32.totalorder %s36, 1
        %s794 = scalar_select %p793, %s36, 1
        %s795 = smul.addr %s794, 16
        %s796 = smul.addr %s795, 4
        %s797 = scalar_lea.vmem %s12, %s796
      $region100: #{vit_regressor_forward.1} parent=83 // pred_fallthru
        _
      // Predicated region
      $region101: #{vit_regressor_forward.1} parent=83 // pred_check
        %p798 = pneg %p349
      $region102: #{vit_regressor_forward.1} parent=83 // pred_check_branch
        %800 = sbr.rel (%p798) target = $region104
      $region103: #{vit_regressor_forward.1} parent=83 // pred_region
        %p801 = scmp.lt.s32.totalorder %s36, 1
        %s802 = scalar_select %p801, %s36, 1
        %s803 = scalar_lea.vmem %s13, %s802
      $region104: #{vit_regressor_forward.1} parent=83 // pred_fallthru
        _
      // Predicated region
      $region105: #{vit_regressor_forward.1} parent=83 // pred_check
        %p804 = pneg %p375
      $region106: #{vit_regressor_forward.1} parent=83 // pred_check_branch
        %806 = sbr.rel (%p804) target = $region108
      $region107: #{vit_regressor_forward.1} parent=83 // pred_region
        %p807 = scmp.lt.s32.totalorder %s36, 1
        %s808 = scalar_select %p807, %s36, 1
        %s809 = scalar_lea.vmem %s14, %s808
      $region108: #{vit_regressor_forward.1} parent=83 // pred_fallthru
        _
      // Predicated region
      $region109: #{vit_regressor_forward.1} parent=83 // pred_check
        %p810 = pneg %p401
      $region110: #{vit_regressor_forward.1} parent=83 // pred_check_branch
        %812 = sbr.rel (%p810) target = $region112
      $region111: #{vit_regressor_forward.1} parent=83 // pred_region
        %p813 = scmp.lt.s32.totalorder %s36, 1
        %s814 = scalar_select %p813, %s36, 1
        %s815 = scalar_lea.vmem %s15, %s814
      $region112: #{vit_regressor_forward.1} parent=83 // pred_fallthru
        _
      // Predicated region
      $region113: #{vit_regressor_forward.1} parent=83 // pred_check
        %p816 = pneg %p427
      $region114: #{vit_regressor_forward.1} parent=83 // pred_check_branch
        %818 = sbr.rel (%p816) target = $region116
      $region115: #{vit_regressor_forward.1} parent=83 // pred_region
        %p819 = scmp.lt.s32.totalorder %s36, 1
        %s820 = scalar_select %p819, %s36, 1
        %s821 = smul.addr %s820, 4
        %s822 = smul.addr %s821, 4
        %s823 = scalar_lea.vmem %s16, %s822
      $region116: #{vit_regressor_forward.1} parent=83 // pred_fallthru
        _
      // Predicated region
      $region117: #{vit_regressor_forward.1} parent=83 // pred_check
        %p824 = pneg %p453
      $region118: #{vit_regressor_forward.1} parent=83 // pred_check_branch
        %826 = sbr.rel (%p824) target = $region120
      $region119: #{vit_regressor_forward.1} parent=83 // pred_region
        %p827 = scmp.lt.s32.totalorder %s36, 1
        %s828 = scalar_select %p827, %s36, 1
        %s829 = scalar_lea.vmem %s17, %s828
      $region120: #{vit_regressor_forward.1} parent=83 // pred_fallthru
        _
      // Predicated region
      $region121: #{vit_regressor_forward.1} parent=83 // pred_check
        %p830 = pneg %p479
      $region122: #{vit_regressor_forward.1} parent=83 // pred_check_branch
        %832 = sbr.rel (%p830) target = $region124
      $region123: #{vit_regressor_forward.1} parent=83 // pred_region
        %p833 = scmp.lt.s32.totalorder %s36, 1
        %s834 = scalar_select %p833, %s36, 1
        %s835 = smul.addr %s834, 8
        %s836 = smul.addr %s835, 4
        %s837 = scalar_lea.vmem %s18, %s836
      $region124: #{vit_regressor_forward.1} parent=83 // pred_fallthru
        _
      // Predicated region
      $region125: #{vit_regressor_forward.1} parent=83 // pred_check
        %p838 = pneg %p505
      $region126: #{vit_regressor_forward.1} parent=83 // pred_check_branch
        %840 = sbr.rel (%p838) target = $region128
      $region127: #{vit_regressor_forward.1} parent=83 // pred_region
        %p841 = scmp.lt.s32.totalorder %s36, 1
        %s842 = scalar_select %p841, %s36, 1
        %s843 = scalar_lea.vmem %s19, %s842
      $region128: #{vit_regressor_forward.1} parent=83 // pred_fallthru
        _
    $region84: #{vit_regressor_forward.1} parent=5 // pred_fallthru
      _
    %p844 = scmp.le.s32.totalorder 1, %s36
    %p845 = scmp.lt.s32.totalorder %s36, 3
    %p846 = pnand %p844, %p845
    %p847 = pneg %p846
    // Predicated region
    $region129: #{vit_regressor_forward.1} parent=5 // pred_check
      _
    $region130: #{vit_regressor_forward.1} parent=5 // pred_check_branch
      %849 = sbr.rel (%p846) target = $region132
    $region131: #{vit_regressor_forward.1} parent=5 // pred_region
      %s850 = ssub.s32 %s36, 1
      %p851 = pneg %p57
      %p852 = pneg %p54
      %p853 = pneg %p78
      %p854 = pneg %p75
      %p855 = pneg %p99
      %p856 = pneg %p96
      %p857 = pneg %p120
      %p858 = pneg %p117
      %p859 = pneg %p141
      %p860 = pneg %p138
      %p861 = pneg %p162
      %p862 = pneg %p159
      %p863 = pneg %p183
      %p864 = pneg %p180
      %p865 = pneg %p204
      %p866 = pneg %p201
      %p867 = pneg %p225
      %p868 = pneg %p222
      %p869 = scmp.lt.s32.totalorder %s41, 1
      %s870 = scalar_select %p869, %s41, 1
      %s871 = scalar_lea.vmem %s9, %s870
      %p872 = pneg %p251
      %p873 = pneg %p248
      %p874 = scmp.lt.s32.totalorder %s41, 1
      %s875 = scalar_select %p874, %s41, 1
      %s876 = scalar_lea.vmem %s10, %s875
      %p877 = pneg %p277
      %p878 = pneg %p274
      %p879 = scmp.lt.s32.totalorder %s41, 1
      %s880 = scalar_select %p879, %s41, 1
      %s881 = smul.addr %s880, 12
      %s882 = smul.addr %s881, 4
      %s883 = scalar_lea.vmem %s11, %s882
      %p884 = pneg %p303
      %p885 = pneg %p300
      %p886 = scmp.lt.s32.totalorder %s41, 1
      %s887 = scalar_select %p886, %s41, 1
      %s888 = smul.addr %s887, 16
      %s889 = smul.addr %s888, 4
      %s890 = scalar_lea.vmem %s12, %s889
      %p891 = pneg %p329
      %p892 = pneg %p326
      %p893 = scmp.lt.s32.totalorder %s41, 1
      %s894 = scalar_select %p893, %s41, 1
      %s895 = scalar_lea.vmem %s13, %s894
      %p896 = pneg %p355
      %p897 = pneg %p352
      %p898 = scmp.lt.s32.totalorder %s41, 1
      %s899 = scalar_select %p898, %s41, 1
      %s900 = scalar_lea.vmem %s14, %s899
      %p901 = pneg %p381
      %p902 = pneg %p378
      %p903 = scmp.lt.s32.totalorder %s41, 1
      %s904 = scalar_select %p903, %s41, 1
      %s905 = scalar_lea.vmem %s15, %s904
      %p906 = pneg %p407
      %p907 = pneg %p404
      %p908 = scmp.lt.s32.totalorder %s41, 1
      %s909 = scalar_select %p908, %s41, 1
      %s910 = smul.addr %s909, 4
      %s911 = smul.addr %s910, 4
      %s912 = scalar_lea.vmem %s16, %s911
      %p913 = pneg %p433
      %p914 = pneg %p430
      %p915 = scmp.lt.s32.totalorder %s41, 1
      %s916 = scalar_select %p915, %s41, 1
      %s917 = scalar_lea.vmem %s17, %s916
      %p918 = pneg %p459
      %p919 = pneg %p456
      %p920 = scmp.lt.s32.totalorder %s41, 1
      %s921 = scalar_select %p920, %s41, 1
      %s922 = smul.addr %s921, 8
      %s923 = smul.addr %s922, 4
      %s924 = scalar_lea.vmem %s18, %s923
      %p925 = pneg %p485
      %p926 = pneg %p482
      %p927 = scmp.lt.s32.totalorder %s41, 1
      %s928 = scalar_select %p927, %s41, 1
      %s929 = scalar_lea.vmem %s19, %s928
      %p930 = pneg %p511
      %p931 = pneg %p508
      %p932 = pneg %p532
      %p933 = pneg %p529
      %p934 = pneg %p553
      %p935 = pneg %p550
      %p936 = pneg %p574
      %p937 = pneg %p571
      %p938 = pneg %p595
      %p939 = pneg %p592
      %p940 = pneg %p616
      %p941 = pneg %p613
      %p942 = pneg %p637
      %p943 = pneg %p634
      %p944 = pneg %p658
      %p945 = pneg %p655
      %p946 = pneg %p679
      %p947 = pneg %p676
      %p948 = pneg %p700
      %p949 = pneg %p697
      %p950 = scmp.lt.s32.totalorder %s41, 1
      %s951 = scalar_select %p950, %s41, 1
      %s952 = scalar_lea.vmem %s9, %s951
      %p953 = scmp.lt.s32.totalorder %s41, 1
      %s954 = scalar_select %p953, %s41, 1
      %s955 = scalar_lea.vmem %s10, %s954
      %p956 = scmp.lt.s32.totalorder %s41, 1
      %s957 = scalar_select %p956, %s41, 1
      %s958 = smul.addr %s957, 12
      %s959 = smul.addr %s958, 4
      %s960 = scalar_lea.vmem %s11, %s959
      %p961 = scmp.lt.s32.totalorder %s41, 1
      %s962 = scalar_select %p961, %s41, 1
      %s963 = smul.addr %s962, 16
      %s964 = smul.addr %s963, 4
      %s965 = scalar_lea.vmem %s12, %s964
      %p966 = scmp.lt.s32.totalorder %s41, 1
      %s967 = scalar_select %p966, %s41, 1
      %s968 = scalar_lea.vmem %s13, %s967
      %p969 = scmp.lt.s32.totalorder %s41, 1
      %s970 = scalar_select %p969, %s41, 1
      %s971 = scalar_lea.vmem %s14, %s970
      %p972 = scmp.lt.s32.totalorder %s41, 1
      %s973 = scalar_select %p972, %s41, 1
      %s974 = scalar_lea.vmem %s15, %s973
      %p975 = scmp.lt.s32.totalorder %s41, 1
      %s976 = scalar_select %p975, %s41, 1
      %s977 = smul.addr %s976, 4
      %s978 = smul.addr %s977, 4
      %s979 = scalar_lea.vmem %s16, %s978
      %p980 = scmp.lt.s32.totalorder %s41, 1
      %s981 = scalar_select %p980, %s41, 1
      %s982 = scalar_lea.vmem %s17, %s981
      %p983 = scmp.lt.s32.totalorder %s41, 1
      %s984 = scalar_select %p983, %s41, 1
      %s985 = smul.addr %s984, 8
      %s986 = smul.addr %s985, 4
      %s987 = scalar_lea.vmem %s18, %s986
      %p988 = scmp.lt.s32.totalorder %s41, 1
      %s989 = scalar_select %p988, %s41, 1
      %s990 = scalar_lea.vmem %s19, %s989
      %p992 = scmp.eq.s32.totalorder %s41, 0
      // Predicated region
      $region133: #{vit_regressor_forward.1} parent=131 // pred_check
        %p993 = pneg %p992
      $region134: #{vit_regressor_forward.1} parent=131 // pred_check_branch
        %995 = sbr.rel (%p993) target = $region136
      $region135: #{vit_regressor_forward.1} parent=131 // pred_region
        %v996 = vld [vmem:[%s0] sm:$0xff]
        %v997 = vld [vmem:[%s0 + $0x8] sm:$0xff]
        %v998 = vld [vmem:[%s1] sm:$0x3]
        %v999 = vld [vmem:[%s2] sm:$0x3]
        %v1000 = vadd.f32 %v996, %v997
        %1001 = vadd.xlane.f32.xlu0 %v1000
        %v1002 = vpop.xlane.xlu0 %1001
        %v1003 = vrcp.pop 256.0
        %v1004 = vmul.f32 %v1002, %v1003
        %v1005 = vsub.f32 %v996, %v1004
        %v1006 = vsub.f32 %v997, %v1004
        %v1007 = vmul.f32 %v1005, %v1005
        %v1008 = vmul.f32 %v1006, %v1006
        %v1009 = vadd.f32 %v1007, %v1008
        %1010 = vadd.xlane.f32.xlu0 %v1009
        %v1011 = vpop.xlane.xlu0 %1010
        %v1012 = vmul.f32 %v1011, %v1003
        %v1013 = vadd.f32 %v1012, 1e-05
        %v1014 = vrsqrt.pop %v1013
        %v1015 = vmul.f32 %v1005, %v1014
        %v1016 = vmul.f32 %v1006, %v1014
        %v1018 = vlaneseq
        %v1019 = vshrl.u32 %v1018, 7
        %v1020 = vsub.s32 0, %v1019
        %v1021 = vrot.slane %v998, %v1020
        %v1022 = vlaneseq
        %v1023 = vshrl.u32 %v1022, 7
        %v1024 = vsub.s32 1, %v1023
        %v1025 = vrot.slane %v998, %v1024
        %v1028 = vmul.f32 %v1015, %v1021
        %v1029 = vmul.f32 %v1016, %v1025
        %v1031 = vlaneseq
        %v1032 = vshrl.u32 %v1031, 7
        %v1033 = vsub.s32 0, %v1032
        %v1034 = vrot.slane %v999, %v1033
        %v1035 = vlaneseq
        %v1036 = vshrl.u32 %v1035, 7
        %v1037 = vsub.s32 1, %v1036
        %v1038 = vrot.slane %v999, %v1037
        %v1041 = vadd.f32 %v1028, %v1034
        %v1042 = vadd.f32 %v1029, %v1038
        %v1043 = vpack.c.bf16 %v1041, %v1041
        %v1044 = vpack.c.bf16 %v1042, %v1042
        %v1045 = vld [vmem:[%s3] sm:$0xf]
        %v1046 = vld [vmem:[%s3 + $0x4] sm:$0xf]
        %v1047 = vld [vmem:[%s3 + $0x8] sm:$0xf]
        %v1048 = vld [vmem:[%s3 + $0xc] sm:$0xf]
        %v1049 = vld [vmem:[%s3 + $0x10] sm:$0xf]
        %v1050 = vld [vmem:[%s3 + $0x14] sm:$0xf]
        %v1051 = vld [vmem:[%s3 + $0x18] sm:$0xf]
        %v1052 = vld [vmem:[%s3 + $0x1c] sm:$0xf]
        %v1053 = vld [vmem:[%s3 + $0x20] sm:$0xf]
        %v1054 = vld [vmem:[%s3 + $0x24] sm:$0xf]
        %v1055 = vld [vmem:[%s3 + $0x28] sm:$0xf]
        %v1056 = vld [vmem:[%s3 + $0x2c] sm:$0xf]
        %v1057 = vld [vmem:[%s3 + $0x30] sm:$0xf]
        %v1058 = vld [vmem:[%s3 + $0x34] sm:$0xf]
        %v1059 = vld [vmem:[%s3 + $0x38] sm:$0xf]
        %v1060 = vld [vmem:[%s3 + $0x3c] sm:$0xf]
        %v1061 = vld [vmem:[%s3 + $0x40] sm:$0xf]
        %v1062 = vld [vmem:[%s3 + $0x44] sm:$0xf]
        %v1063 = vld [vmem:[%s3 + $0x48] sm:$0xf]
        %v1064 = vld [vmem:[%s3 + $0x4c] sm:$0xf]
        %v1065 = vld [vmem:[%s3 + $0x50] sm:$0xf]
        %v1066 = vld [vmem:[%s3 + $0x54] sm:$0xf]
        %v1067 = vld [vmem:[%s3 + $0x58] sm:$0xf]
        %v1068 = vld [vmem:[%s3 + $0x5c] sm:$0xf]
        %v1069 = vld [vmem:[%s3 + $0x60] sm:$0xf]
        %v1070 = vld [vmem:[%s3 + $0x64] sm:$0xf]
        %v1071 = vld [vmem:[%s3 + $0x68] sm:$0xf]
        %v1072 = vld [vmem:[%s3 + $0x6c] sm:$0xf]
        %v1073 = vld [vmem:[%s3 + $0x70] sm:$0xf]
        %v1074 = vld [vmem:[%s3 + $0x74] sm:$0xf]
        %v1075 = vld [vmem:[%s3 + $0x78] sm:$0xf]
        %v1076 = vld [vmem:[%s3 + $0x7c] sm:$0xf]
        %v1077 = vld [vmem:[%s4] sm:$0x1]
        %v1079 = vlaneseq
        %v1080 = vshrl.u32 %v1079, 7
        %v1081 = vsub.s32 0, %v1080
        %v1082 = vrot.slane %v1077, %v1081
        %v1116 = vunpack.c.l.b16 %v1045
        %v1117 = vunpack.c.l.b16 %v1046
        %v1118 = vunpack.c.l.b16 %v1047
        %v1119 = vunpack.c.l.b16 %v1048
        %v1120 = vunpack.c.l.b16 %v1049
        %v1121 = vunpack.c.l.b16 %v1050
        %v1122 = vunpack.c.l.b16 %v1051
        %v1123 = vunpack.c.l.b16 %v1052
        %v1124 = vunpack.c.l.b16 %v1053
        %v1125 = vunpack.c.l.b16 %v1054
        %v1126 = vunpack.c.l.b16 %v1055
        %v1127 = vunpack.c.l.b16 %v1056
        %v1128 = vunpack.c.l.b16 %v1057
        %v1129 = vunpack.c.l.b16 %v1058
        %v1130 = vunpack.c.l.b16 %v1059
        %v1131 = vunpack.c.l.b16 %v1060
        %v1132 = vunpack.c.l.b16 %v1061
        %v1133 = vunpack.c.l.b16 %v1062
        %v1134 = vunpack.c.l.b16 %v1063
        %v1135 = vunpack.c.l.b16 %v1064
        %v1136 = vunpack.c.l.b16 %v1065
        %v1137 = vunpack.c.l.b16 %v1066
        %v1138 = vunpack.c.l.b16 %v1067
        %v1139 = vunpack.c.l.b16 %v1068
        %v1140 = vunpack.c.l.b16 %v1069
        %v1141 = vunpack.c.l.b16 %v1070
        %v1142 = vunpack.c.l.b16 %v1071
        %v1143 = vunpack.c.l.b16 %v1072
        %v1144 = vunpack.c.l.b16 %v1073
        %v1145 = vunpack.c.l.b16 %v1074
        %v1146 = vunpack.c.l.b16 %v1075
        %v1147 = vunpack.c.l.b16 %v1076
        %v1148 = vpack.c.b16 %v1117, %v1116
        %v1149 = vpack.c.b16 %v1119, %v1118
        %v1150 = vpack.c.b16 %v1121, %v1120
        %v1151 = vpack.c.b16 %v1123, %v1122
        %v1152 = vpack.c.b16 %v1125, %v1124
        %v1153 = vpack.c.b16 %v1127, %v1126
        %v1154 = vpack.c.b16 %v1129, %v1128
        %v1155 = vpack.c.b16 %v1131, %v1130
        %v1156 = vpack.c.b16 %v1133, %v1132
        %v1157 = vpack.c.b16 %v1135, %v1134
        %v1158 = vpack.c.b16 %v1137, %v1136
        %v1159 = vpack.c.b16 %v1139, %v1138
        %v1160 = vpack.c.b16 %v1141, %v1140
        %v1161 = vpack.c.b16 %v1143, %v1142
        %v1162 = vpack.c.b16 %v1145, %v1144
        %v1163 = vpack.c.b16 %v1147, %v1146
        %1180 = vmatprep.subr.bf16.mxu0 0
        %1181 = vmatpush1.bf16.msra.mxu0 %v1155
        %1182 = vmatprep.subr.bf16.mxu0 0
        %1183 = vmatpush1.bf16.msra.mxu0 %v1154
        %1184 = vmatprep.subr.bf16.mxu0 0
        %1185 = vmatpush1.bf16.msra.mxu0 %v1153
        %1186 = vmatprep.subr.bf16.mxu0 0
        %1187 = vmatpush1.bf16.msra.mxu0 %v1152
        %1188 = vmatprep.subr.bf16.mxu0 0
        %1189 = vmatpush1.bf16.msra.mxu0 %v1151
        %1190 = vmatprep.subr.bf16.mxu0 0
        %1191 = vmatpush1.bf16.msra.mxu0 %v1150
        %1192 = vmatprep.subr.bf16.mxu0 0
        %1193 = vmatpush1.bf16.msra.mxu0 %v1149
        %1194 = vmatprep.subr.bf16.mxu0 0
        %1195 = vmatpush1.bf16.msra.mxu0 %v1148
        %1196 = vmatprep.subr.bf16.mxu0 0
        %1197 = vmatpush2.bf16.msra.mxu0 %v1163
        %1198 = vmatprep.subr.bf16.mxu0 0
        %1199 = vmatpush2.bf16.msra.mxu0 %v1162
        %1200 = vmatprep.subr.bf16.mxu0 0
        %1201 = vmatpush2.bf16.msra.mxu0 %v1161
        %1202 = vmatprep.subr.bf16.mxu0 0
        %1203 = vmatpush2.bf16.msra.mxu0 %v1160
        %1204 = vmatprep.subr.bf16.mxu0 0
        %1205 = vmatpush2.bf16.msra.mxu0 %v1159
        %1206 = vmatprep.subr.bf16.mxu0 0
        %1207 = vmatpush2.bf16.msra.mxu0 %v1158
        %1208 = vmatprep.subr.bf16.mxu0 0
        %1209 = vmatpush2.bf16.msra.mxu0 %v1157
        %1210 = vmatprep.subr.bf16.mxu0 0
        %1211 = vmatpush2.bf16.msra.mxu0 %v1156
        %1212 = vmatprep.mubr.bf16.mxu0 %v1044
        %1213 = vmatmul.mubr.bf16.gmra.mxu0 %v1043
        %v1214 = vpop.f32.mrf.mxu0
        %v1215 = vadd.f32 %v1082, %v1214
        %v1216 = vpop.f32.mrf.mxu0
        %v1217 = vpop.f32.mrf.mxu0
        %v1218 = vpop.f32.mrf.mxu0
        %1219 = vdwg.mxu0
        %v1220 = vld [vmem:[%s5] sm:$0x1]
        %v1221 = vld [vmem:[%s6] sm:$0x1]
        %vm1222 = vcmask 261120
        %v1223 = vsel %vm1222, %v1215, 0.0
        %1224 = vadd.xlane.f32.xlu0 %v1223
        %v1225 = vpop.xlane.xlu0 %1224
        %v1226 = vrcp.pop 32.0
        %v1227 = vmul.f32 %v1225, %v1226
        %v1228 = vsub.f32 %v1215, %v1227
        %v1229 = vmul.f32 %v1228, %v1228
        %v1230 = vsel %vm1222, %v1229, 0.0
        %1231 = vadd.xlane.f32.xlu0 %v1230
        %v1232 = vpop.xlane.xlu0 %1231
        %v1233 = vmul.f32 %v1232, %v1226
        %v1234 = vadd.f32 %v1233, 1e-05
        %v1235 = vrsqrt.pop %v1234
        %v1236 = vmul.f32 %v1228, %v1235
        %v1238 = vlaneseq
        %v1239 = vshrl.u32 %v1238, 7
        %v1240 = vsub.s32 0, %v1239
        %v1241 = vrot.slane %v1220, %v1240
        %v1243 = vmul.f32 %v1236, %v1241
        %v1245 = vlaneseq
        %v1246 = vshrl.u32 %v1245, 7
        %v1247 = vsub.s32 0, %v1246
        %v1248 = vrot.slane %v1221, %v1247
        %v1250 = vadd.f32 %v1243, %v1248
        %v1251 = vld [vmem:[%s7] sm:$0x1]
        %v1252 = vld [vmem:[%s8] sm:$0x1]
        %v1253 = vadd.f32 %v1251, %v1252
        %v1254 = vld [vmem:[%s8 + $0x1] sm:$0xf]
        %1255 = vst.msk [vmem:[#allocation2] sm:$0xff] %vm1222, 0.0
        %1256 = vst.msk [vmem:[#allocation2 + $0x8] sm:$0xff] %vm1222, 0.0
        %vm1257 = vcmask 253952
        %1258 = vst.msk [vmem:[#allocation2] sm:$0x1] %vm1257, %v1253
        %v1259 = vadd.f32 %v1250, %v1254
        %vm1260 = vcmask 257024
        %1261 = vst.msk [vmem:[#allocation2 + $0x1] sm:$0xf] %vm1260, %v1259
        %1262 = vst.msk [vmem:[#allocation2 + $0x8] sm:$0x1] %vm1257, %v1253
        %v1264 = vrot.slane %v1254, 4
        %v1266 = vadd.f32 %v1250, %v1264
        %vm1267 = vcmask 261124
        %1268 = vst.msk [vmem:[#allocation2 + $0x5] sm:$0xf0] %vm1267, %v1266
      $region136: #{vit_regressor_forward.1} parent=131 // pred_fallthru
        _
      %v1269 = vld [vmem:[#allocation2] sm:$0xff]
      %v1270 = vld [vmem:[#allocation2 + $0x8] sm:$0xff]
      %v1271 = vld [vmem:[%s952] sm:$0x1]
      %v1272 = vld [vmem:[%s955] sm:$0x1]
      %vm1273 = vcmask 261120
      %v1274 = vsel %vm1273, %v1269, 0.0
      %1275 = vadd.xlane.f32.xlu0 %v1274
      %v1276 = vpop.xlane.xlu0 %1275
      %v1277 = vsel %vm1273, %v1270, 0.0
      %1278 = vadd.xlane.f32.xlu0 %v1277
      %v1279 = vpop.xlane.xlu0 %1278
      %v1280 = vrcp.pop 32.0
      %v1281 = vmul.f32 %v1276, %v1280
      %v1282 = vmul.f32 %v1279, %v1280
      %v1283 = vsub.f32 %v1269, %v1281
      %v1284 = vsub.f32 %v1270, %v1282
      %v1285 = vmul.f32 %v1283, %v1283
      %v1286 = vmul.f32 %v1284, %v1284
      %v1287 = vsel %vm1273, %v1285, 0.0
      %1288 = vadd.xlane.f32.xlu0 %v1287
      %v1289 = vpop.xlane.xlu0 %1288
      %v1290 = vsel %vm1273, %v1286, 0.0
      %1291 = vadd.xlane.f32.xlu0 %v1290
      %v1292 = vpop.xlane.xlu0 %1291
      %v1293 = vmul.f32 %v1289, %v1280
      %v1294 = vmul.f32 %v1292, %v1280
      %v1295 = vadd.f32 %v1293, 1e-05
      %v1296 = vadd.f32 %v1294, 1e-05
      %v1297 = vrsqrt.pop %v1295
      %v1298 = vrsqrt.pop %v1296
      %v1299 = vmul.f32 %v1283, %v1297
      %v1300 = vmul.f32 %v1284, %v1298
      %v1302 = vlaneseq
      %v1303 = vshrl.u32 %v1302, 7
      %v1304 = vsub.s32 0, %v1303
      %v1305 = vrot.slane %v1271, %v1304
      %v1307 = vmul.f32 %v1299, %v1305
      %v1308 = vmul.f32 %v1300, %v1305
      %v1310 = vlaneseq
      %v1311 = vshrl.u32 %v1310, 7
      %v1312 = vsub.s32 0, %v1311
      %v1313 = vrot.slane %v1272, %v1312
      %v1315 = vadd.f32 %v1307, %v1313
      %v1316 = vadd.f32 %v1308, %v1313
      %v1317 = vpack.c.bf16 %v1316, %v1315
      %v1318 = vld [vmem:[%s960] sm:$0xff]
      %v1319 = vld [vmem:[%s960 + $0x8] sm:$0xf]
      %v1320 = vld [vmem:[%s960 + $0xc] sm:$0xff]
      %v1321 = vld [vmem:[%s960 + $0x14] sm:$0xf]
      %v1322 = vld [vmem:[%s960 + $0x18] sm:$0xff]
      %v1323 = vld [vmem:[%s960 + $0x20] sm:$0xf]
      %v1324 = vld [vmem:[%s960 + $0x24] sm:$0xff]
      %v1325 = vld [vmem:[%s960 + $0x2c] sm:$0xf]
      %v1334 = vunpack.c.l.b16 %v1318
      %v1335 = vunpack.c.h.b16 %v1318
      %v1336 = vunpack.c.l.b16 %v1319
      %v1337 = vunpack.c.l.b16 %v1320
      %v1338 = vunpack.c.h.b16 %v1320
      %v1339 = vunpack.c.l.b16 %v1321
      %v1340 = vunpack.c.l.b16 %v1322
      %v1341 = vunpack.c.h.b16 %v1322
      %v1342 = vunpack.c.l.b16 %v1323
      %v1343 = vunpack.c.l.b16 %v1324
      %v1344 = vunpack.c.h.b16 %v1324
      %v1345 = vunpack.c.l.b16 %v1325
      %v1346 = vpack.c.b16 %v1337, %v1334
      %v1347 = vpack.c.b16 %v1338, %v1335
      %v1348 = vpack.c.b16 %v1339, %v1336
      %v1349 = vpack.c.b16 %v1343, %v1340
      %v1350 = vpack.c.b16 %v1344, %v1341
      %v1351 = vpack.c.b16 %v1345, %v1342
      %v1359 = vsel %vm1273, %v1317, 0
      %1361 = vmatprep.subr.bf16.mxu0 0
      %1362 = vmatpush1.bf16.msra.mxu0 0
      %1363 = vmatprep.subr.bf16.mxu0 0
      %1364 = vmatpush1.bf16.msra.mxu0 0
      %1365 = vmatprep.subr.bf16.mxu0 0
      %1366 = vmatpush1.bf16.msra.mxu0 0
      %1367 = vmatprep.subr.bf16.mxu0 0
      %1368 = vmatpush1.bf16.msra.mxu0 0
      %1369 = vmatprep.subr.bf16.mxu0 0
      %1370 = vmatpush1.bf16.msra.mxu0 0
      %1371 = vmatprep.subr.bf16.mxu0 0
      %1372 = vmatpush1.bf16.msra.mxu0 0
      %1373 = vmatprep.subr.bf16.mxu0 %v1350
      %1374 = vmatpush1.bf16.msra.mxu0 %v1349
      %1375 = vmatprep.subr.bf16.mxu0 %v1347
      %1376 = vmatpush1.bf16.msra.mxu0 %v1346
      %1377 = vmatprep.subr.bf16.mxu0 0
      %1378 = vmatpush2.bf16.msra.mxu0 0
      %1379 = vmatprep.subr.bf16.mxu0 0
      %1380 = vmatpush2.bf16.msra.mxu0 0
      %1381 = vmatprep.subr.bf16.mxu0 0
      %1382 = vmatpush2.bf16.msra.mxu0 0
      %1383 = vmatprep.subr.bf16.mxu0 0
      %1384 = vmatpush2.bf16.msra.mxu0 0
      %1385 = vmatprep.subr.bf16.mxu0 0
      %1386 = vmatpush2.bf16.msra.mxu0 0
      %1387 = vmatprep.subr.bf16.mxu0 0
      %1388 = vmatpush2.bf16.msra.mxu0 0
      %1389 = vmatprep.subr.bf16.mxu0 0
      %1390 = vmatpush2.bf16.msra.mxu0 0
      %1391 = vmatprep.subr.bf16.mxu0 0
      %1392 = vmatpush2.bf16.msra.mxu0 0
      %1393 = vmatprep.mubr.bf16.mxu0 0
      %1394 = vmatmul.mubr.bf16.gmra.mxu0 %v1359
      %v1395 = vpop.f32.mrf.mxu0
      %v1396 = vadd.f32 0.0, %v1395
      %v1397 = vpop.f32.mrf.mxu0
      %v1398 = vadd.f32 0.0, %v1397
      %v1399 = vpop.f32.mrf.mxu0
      %v1400 = vadd.f32 0.0, %v1399
      %v1401 = vpop.f32.mrf.mxu0
      %v1402 = vadd.f32 0.0, %v1401
      %1403 = vdwg.mxu0
      %1404 = vmatprep.subr.bf16.mxu0 0
      %1405 = vmatpush1.bf16.msra.mxu0 0
      %1406 = vmatprep.subr.bf16.mxu0 0
      %1407 = vmatpush1.bf16.msra.mxu0 0
      %1408 = vmatprep.subr.bf16.mxu0 0
      %1409 = vmatpush1.bf16.msra.mxu0 0
      %1410 = vmatprep.subr.bf16.mxu0 0
      %1411 = vmatpush1.bf16.msra.mxu0 0
      %1412 = vmatprep.subr.bf16.mxu0 0
      %1413 = vmatpush1.bf16.msra.mxu0 0
      %1414 = vmatprep.subr.bf16.mxu0 0
      %1415 = vmatpush1.bf16.msra.mxu0 0
      %1416 = vmatprep.subr.bf16.mxu0 0
      %1417 = vmatpush1.bf16.msra.mxu0 %v1351
      %1418 = vmatprep.subr.bf16.mxu0 0
      %1419 = vmatpush1.bf16.msra.mxu0 %v1348
      %1420 = vmatprep.subr.bf16.mxu0 0
      %1421 = vmatpush2.bf16.msra.mxu0 0
      %1422 = vmatprep.subr.bf16.mxu0 0
      %1423 = vmatpush2.bf16.msra.mxu0 0
      %1424 = vmatprep.subr.bf16.mxu0 0
      %1425 = vmatpush2.bf16.msra.mxu0 0
      %1426 = vmatprep.subr.bf16.mxu0 0
      %1427 = vmatpush2.bf16.msra.mxu0 0
      %1428 = vmatprep.subr.bf16.mxu0 0
      %1429 = vmatpush2.bf16.msra.mxu0 0
      %1430 = vmatprep.subr.bf16.mxu0 0
      %1431 = vmatpush2.bf16.msra.mxu0 0
      %1432 = vmatprep.subr.bf16.mxu0 0
      %1433 = vmatpush2.bf16.msra.mxu0 0
      %1434 = vmatprep.subr.bf16.mxu0 0
      %1435 = vmatpush2.bf16.msra.mxu0 0
      %1436 = vmatprep.mubr.bf16.mxu0 0
      %1437 = vmatmul.mubr.bf16.gmra.mxu0 %v1359
      %v1438 = vpop.f32.mrf.mxu0
      %v1439 = vadd.f32 0.0, %v1438
      %v1440 = vpop.f32.mrf.mxu0
      %v1441 = vpop.f32.mrf.mxu0
      %v1442 = vadd.f32 0.0, %v1441
      %v1443 = vpop.f32.mrf.mxu0
      %1444 = vdwg.mxu0
      %v1445 = vlaneseq
      %v1446 = vand.u32 %v1445, 127
      %vm1447 = vcmp.lt.s32.totalorder %v1446, 5
      %v1448 = vsel %vm1447, 0.0, -1e+30
      %v1449 = vpack.c.bf16 %v1396, %v1396
      %v1450 = vpack.c.bf16 %v1400, %v1400
      %v1451 = vpack.c.bf16 %v1398, %v1398
      %v1452 = vpack.c.bf16 %v1402, %v1402
      %v1453 = vpack.c.bf16 %v1439, %v1439
      %v1454 = vpack.c.bf16 %v1442, %v1442
      %vm1455 = vcmask 523264
      %v1457 = vsel %vm1455, %v1449, 0
      %v1460 = vsel %vm1455, %v1451, 0
      %1462 = vmatprep.subr.bf16.mxu0 0
      %1463 = vmatpush1.bf16.xpose.msra.mxu0 0
      %1464 = vmatprep.subr.bf16.mxu0 0
      %1465 = vmatpush1.bf16.xpose.msra.mxu0 0
      %1466 = vmatprep.subr.bf16.mxu0 0
      %1467 = vmatpush1.bf16.xpose.msra.mxu0 0
      %1468 = vmatprep.subr.bf16.mxu0 0
      %1469 = vmatpush1.bf16.xpose.msra.mxu0 0
      %1470 = vmatprep.subr.bf16.mxu0 0
      %1471 = vmatpush1.bf16.xpose.msra.mxu0 0
      %1472 = vmatprep.subr.bf16.mxu0 0
      %1473 = vmatpush1.bf16.xpose.msra.mxu0 0
      %1474 = vmatprep.subr.bf16.mxu0 0
      %1475 = vmatpush1.bf16.xpose.msra.mxu0 0
      %1476 = vmatprep.subr.bf16.mxu0 0
      %1477 = vmatpush1.bf16.xpose.msra.mxu0 %v1460
      %1478 = vmatprep.subr.bf16.mxu0 0
      %1479 = vmatpush2.bf16.xpose.msra.mxu0 0
      %1480 = vmatprep.subr.bf16.mxu0 0
      %1481 = vmatpush2.bf16.xpose.msra.mxu0 0
      %1482 = vmatprep.subr.bf16.mxu0 0
      %1483 = vmatpush2.bf16.xpose.msra.mxu0 0
      %1484 = vmatprep.subr.bf16.mxu0 0
      %1485 = vmatpush2.bf16.xpose.msra.mxu0 0
      %1486 = vmatprep.subr.bf16.mxu0 0
      %1487 = vmatpush2.bf16.xpose.msra.mxu0 0
      %1488 = vmatprep.subr.bf16.mxu0 0
      %1489 = vmatpush2.bf16.xpose.msra.mxu0 0
      %1490 = vmatprep.subr.bf16.mxu0 0
      %1491 = vmatpush2.bf16.xpose.msra.mxu0 0
      %1492 = vmatprep.subr.bf16.mxu0 0
      %1493 = vmatpush2.bf16.xpose.msra.mxu0 0
      %1494 = vmatprep.mubr.bf16.mxu0 0
      %1495 = vmatmul.mubr.bf16.gmra.mxu0 %v1457
      %v1496 = vpop.f32.mrf.mxu0
      %v1497 = vadd.f32 0.0, %v1496
      %v1498 = vpop.f32.mrf.mxu0
      %v1499 = vpop.f32.mrf.mxu0
      %v1500 = vpop.f32.mrf.mxu0
      %1501 = vdwg.mxu0
      %v1503 = vsel %vm1455, %v1450, 0
      %v1506 = vsel %vm1455, %v1452, 0
      %1508 = vmatprep.subr.bf16.mxu0 0
      %1509 = vmatpush1.bf16.xpose.msra.mxu0 0
      %1510 = vmatprep.subr.bf16.mxu0 0
      %1511 = vmatpush1.bf16.xpose.msra.mxu0 0
      %1512 = vmatprep.subr.bf16.mxu0 0
      %1513 = vmatpush1.bf16.xpose.msra.mxu0 0
      %1514 = vmatprep.subr.bf16.mxu0 0
      %1515 = vmatpush1.bf16.xpose.msra.mxu0 0
      %1516 = vmatprep.subr.bf16.mxu0 0
      %1517 = vmatpush1.bf16.xpose.msra.mxu0 0
      %1518 = vmatprep.subr.bf16.mxu0 0
      %1519 = vmatpush1.bf16.xpose.msra.mxu0 0
      %1520 = vmatprep.subr.bf16.mxu0 0
      %1521 = vmatpush1.bf16.xpose.msra.mxu0 0
      %1522 = vmatprep.subr.bf16.mxu0 0
      %1523 = vmatpush1.bf16.xpose.msra.mxu0 %v1506
      %1524 = vmatprep.subr.bf16.mxu0 0
      %1525 = vmatpush2.bf16.xpose.msra.mxu0 0
      %1526 = vmatprep.subr.bf16.mxu0 0
      %1527 = vmatpush2.bf16.xpose.msra.mxu0 0
      %1528 = vmatprep.subr.bf16.mxu0 0
      %1529 = vmatpush2.bf16.xpose.msra.mxu0 0
      %1530 = vmatprep.subr.bf16.mxu0 0
      %1531 = vmatpush2.bf16.xpose.msra.mxu0 0
      %1532 = vmatprep.subr.bf16.mxu0 0
      %1533 = vmatpush2.bf16.xpose.msra.mxu0 0
      %1534 = vmatprep.subr.bf16.mxu0 0
      %1535 = vmatpush2.bf16.xpose.msra.mxu0 0
      %1536 = vmatprep.subr.bf16.mxu0 0
      %1537 = vmatpush2.bf16.xpose.msra.mxu0 0
      %1538 = vmatprep.subr.bf16.mxu0 0
      %1539 = vmatpush2.bf16.xpose.msra.mxu0 0
      %1540 = vmatprep.mubr.bf16.mxu0 0
      %1541 = vmatmul.mubr.bf16.gmra.mxu0 %v1503
      %v1542 = vpop.f32.mrf.mxu0
      %v1543 = vadd.f32 0.0, %v1542
      %v1544 = vpop.f32.mrf.mxu0
      %v1545 = vpop.f32.mrf.mxu0
      %v1546 = vpop.f32.mrf.mxu0
      %1547 = vdwg.mxu0
      %v1548 = vmul.f32 %v1497, 0.125
      %v1549 = vmul.f32 %v1543, 0.125
      %v1550 = vadd.f32 %v1548, %v1448
      %v1551 = vadd.f32 %v1549, %v1448
      %vm1552 = vcmask 64512
      %v1553 = vsel %vm1552, %v1550, -inf
      %1554 = vmax.xlane.f32.xlu0 %v1553
      %v1555 = vpop.xlane.xlu0 %1554
      %v1556 = vsel %vm1552, %v1551, -inf
      %1557 = vmax.xlane.f32.xlu0 %v1556
      %v1558 = vpop.xlane.xlu0 %1557
      %v1559 = vsub.f32 %v1550, %v1555
      %v1560 = vsub.f32 %v1551, %v1558
      %v1561 = vmul.f32 %v1559, 1.442695
      %v1562 = vpow.pop %v1561
      %v1563 = vmul.f32 %v1560, 1.442695
      %v1564 = vpow.pop %v1563
      %v1565 = vsel %vm1552, %v1562, 0.0
      %1566 = vadd.xlane.f32.xlu0 %v1565
      %v1567 = vpop.xlane.xlu0 %1566
      %v1568 = vsel %vm1552, %v1564, 0.0
      %1569 = vadd.xlane.f32.xlu0 %v1568
      %v1570 = vpop.xlane.xlu0 %1569
      %v1571 = vrcp.pop %v1567
      %v1572 = vrcp.pop %v1570
      %v1573 = vmul.f32 %v1562, %v1571
      %v1574 = vmul.f32 %v1564, %v1572
      %v1575 = vpack.c.bf16 %v1573, %v1573
      %v1576 = vpack.c.bf16 %v1574, %v1574
      %v1578 = vsel %vm1552, %v1575, 0
      %vm1580 = vcmask 1043456
      %v1582 = vsel %vm1580, %v1453, 0
      %1584 = vmatprep.subr.bf16.mxu0 0
      %1585 = vmatpush1.bf16.msra.mxu0 0
      %1586 = vmatprep.subr.bf16.mxu0 0
      %1587 = vmatpush1.bf16.msra.mxu0 0
      %1588 = vmatprep.subr.bf16.mxu0 0
      %1589 = vmatpush1.bf16.msra.mxu0 0
      %1590 = vmatprep.subr.bf16.mxu0 0
      %1591 = vmatpush1.bf16.msra.mxu0 0
      %1592 = vmatprep.subr.bf16.mxu0 0
      %1593 = vmatpush1.bf16.msra.mxu0 0
      %1594 = vmatprep.subr.bf16.mxu0 0
      %1595 = vmatpush1.bf16.msra.mxu0 0
      %1596 = vmatprep.subr.bf16.mxu0 0
      %1597 = vmatpush1.bf16.msra.mxu0 0
      %1598 = vmatprep.subr.bf16.mxu0 0
      %1599 = vmatpush1.bf16.msra.mxu0 %v1582
      %1600 = vmatprep.subr.bf16.mxu0 0
      %1601 = vmatpush2.bf16.msra.mxu0 0
      %1602 = vmatprep.subr.bf16.mxu0 0
      %1603 = vmatpush2.bf16.msra.mxu0 0
      %1604 = vmatprep.subr.bf16.mxu0 0
      %1605 = vmatpush2.bf16.msra.mxu0 0
      %1606 = vmatprep.subr.bf16.mxu0 0
      %1607 = vmatpush2.bf16.msra.mxu0 0
      %1608 = vmatprep.subr.bf16.mxu0 0
      %1609 = vmatpush2.bf16.msra.mxu0 0
      %1610 = vmatprep.subr.bf16.mxu0 0
      %1611 = vmatpush2.bf16.msra.mxu0 0
      %1612 = vmatprep.subr.bf16.mxu0 0
      %1613 = vmatpush2.bf16.msra.mxu0 0
      %1614 = vmatprep.subr.bf16.mxu0 0
      %1615 = vmatpush2.bf16.msra.mxu0 0
      %1616 = vmatprep.mubr.bf16.mxu0 0
      %1617 = vmatmul.mubr.bf16.gmra.mxu0 %v1578
      %v1618 = vpop.f32.mrf.mxu0
      %v1619 = vadd.f32 0.0, %v1618
      %v1620 = vpop.f32.mrf.mxu0
      %v1621 = vpop.f32.mrf.mxu0
      %v1622 = vpop.f32.mrf.mxu0
      %1623 = vdwg.mxu0
      %v1625 = vsel %vm1552, %v1576, 0
      %v1628 = vsel %vm1580, %v1454, 0
      %1630 = vmatprep.subr.bf16.mxu0 0
      %1631 = vmatpush1.bf16.msra.mxu0 0
      %1632 = vmatprep.subr.bf16.mxu0 0
      %1633 = vmatpush1.bf16.msra.mxu0 0
      %1634 = vmatprep.subr.bf16.mxu0 0
      %1635 = vmatpush1.bf16.msra.mxu0 0
      %1636 = vmatprep.subr.bf16.mxu0 0
      %1637 = vmatpush1.bf16.msra.mxu0 0
      %1638 = vmatprep.subr.bf16.mxu0 0
      %1639 = vmatpush1.bf16.msra.mxu0 0
      %1640 = vmatprep.subr.bf16.mxu0 0
      %1641 = vmatpush1.bf16.msra.mxu0 0
      %1642 = vmatprep.subr.bf16.mxu0 0
      %1643 = vmatpush1.bf16.msra.mxu0 0
      %1644 = vmatprep.subr.bf16.mxu0 0
      %1645 = vmatpush1.bf16.msra.mxu0 %v1628
      %1646 = vmatprep.subr.bf16.mxu0 0
      %1647 = vmatpush2.bf16.msra.mxu0 0
      %1648 = vmatprep.subr.bf16.mxu0 0
      %1649 = vmatpush2.bf16.msra.mxu0 0
      %1650 = vmatprep.subr.bf16.mxu0 0
      %1651 = vmatpush2.bf16.msra.mxu0 0
      %1652 = vmatprep.subr.bf16.mxu0 0
      %1653 = vmatpush2.bf16.msra.mxu0 0
      %1654 = vmatprep.subr.bf16.mxu0 0
      %1655 = vmatpush2.bf16.msra.mxu0 0
      %1656 = vmatprep.subr.bf16.mxu0 0
      %1657 = vmatpush2.bf16.msra.mxu0 0
      %1658 = vmatprep.subr.bf16.mxu0 0
      %1659 = vmatpush2.bf16.msra.mxu0 0
      %1660 = vmatprep.subr.bf16.mxu0 0
      %1661 = vmatpush2.bf16.msra.mxu0 0
      %1662 = vmatprep.mubr.bf16.mxu0 0
      %1663 = vmatmul.mubr.bf16.gmra.mxu0 %v1625
      %v1664 = vpop.f32.mrf.mxu0
      %v1665 = vadd.f32 0.0, %v1664
      %v1666 = vpop.f32.mrf.mxu0
      %v1667 = vpop.f32.mrf.mxu0
      %v1668 = vpop.f32.mrf.mxu0
      %1669 = vdwg.mxu0
      %1671 = vrot.lane.b32.xlu0 %v1449, 64
      %v1672 = vpop.permute.xlu0 %1671
      %1674 = vrot.lane.b32.xlu0 %v1451, 64
      %v1675 = vpop.permute.xlu0 %1674
      %v1677 = vsel %vm1455, %v1672, 0
      %v1680 = vsel %vm1455, %v1675, 0
      %1682 = vmatprep.subr.bf16.mxu0 0
      %1683 = vmatpush1.bf16.xpose.msra.mxu0 0
      %1684 = vmatprep.subr.bf16.mxu0 0
      %1685 = vmatpush1.bf16.xpose.msra.mxu0 0
      %1686 = vmatprep.subr.bf16.mxu0 0
      %1687 = vmatpush1.bf16.xpose.msra.mxu0 0
      %1688 = vmatprep.subr.bf16.mxu0 0
      %1689 = vmatpush1.bf16.xpose.msra.mxu0 0
      %1690 = vmatprep.subr.bf16.mxu0 0
      %1691 = vmatpush1.bf16.xpose.msra.mxu0 0
      %1692 = vmatprep.subr.bf16.mxu0 0
      %1693 = vmatpush1.bf16.xpose.msra.mxu0 0
      %1694 = vmatprep.subr.bf16.mxu0 0
      %1695 = vmatpush1.bf16.xpose.msra.mxu0 0
      %1696 = vmatprep.subr.bf16.mxu0 0
      %1697 = vmatpush1.bf16.xpose.msra.mxu0 %v1680
      %1698 = vmatprep.subr.bf16.mxu0 0
      %1699 = vmatpush2.bf16.xpose.msra.mxu0 0
      %1700 = vmatprep.subr.bf16.mxu0 0
      %1701 = vmatpush2.bf16.xpose.msra.mxu0 0
      %1702 = vmatprep.subr.bf16.mxu0 0
      %1703 = vmatpush2.bf16.xpose.msra.mxu0 0
      %1704 = vmatprep.subr.bf16.mxu0 0
      %1705 = vmatpush2.bf16.xpose.msra.mxu0 0
      %1706 = vmatprep.subr.bf16.mxu0 0
      %1707 = vmatpush2.bf16.xpose.msra.mxu0 0
      %1708 = vmatprep.subr.bf16.mxu0 0
      %1709 = vmatpush2.bf16.xpose.msra.mxu0 0
      %1710 = vmatprep.subr.bf16.mxu0 0
      %1711 = vmatpush2.bf16.xpose.msra.mxu0 0
      %1712 = vmatprep.subr.bf16.mxu0 0
      %1713 = vmatpush2.bf16.xpose.msra.mxu0 0
      %1714 = vmatprep.mubr.bf16.mxu0 0
      %1715 = vmatmul.mubr.bf16.gmra.mxu0 %v1677
      %v1716 = vpop.f32.mrf.mxu0
      %v1717 = vadd.f32 0.0, %v1716
      %v1718 = vpop.f32.mrf.mxu0
      %v1719 = vpop.f32.mrf.mxu0
      %v1720 = vpop.f32.mrf.mxu0
      %1721 = vdwg.mxu0
      %1723 = vrot.lane.b32.xlu0 %v1450, 64
      %v1724 = vpop.permute.xlu0 %1723
      %1726 = vrot.lane.b32.xlu0 %v1452, 64
      %v1727 = vpop.permute.xlu0 %1726
      %v1729 = vsel %vm1455, %v1724, 0
      %v1732 = vsel %vm1455, %v1727, 0
      %1734 = vmatprep.subr.bf16.mxu0 0
      %1735 = vmatpush1.bf16.xpose.msra.mxu0 0
      %1736 = vmatprep.subr.bf16.mxu0 0
      %1737 = vmatpush1.bf16.xpose.msra.mxu0 0
      %1738 = vmatprep.subr.bf16.mxu0 0
      %1739 = vmatpush1.bf16.xpose.msra.mxu0 0
      %1740 = vmatprep.subr.bf16.mxu0 0
      %1741 = vmatpush1.bf16.xpose.msra.mxu0 0
      %1742 = vmatprep.subr.bf16.mxu0 0
      %1743 = vmatpush1.bf16.xpose.msra.mxu0 0
      %1744 = vmatprep.subr.bf16.mxu0 0
      %1745 = vmatpush1.bf16.xpose.msra.mxu0 0
      %1746 = vmatprep.subr.bf16.mxu0 0
      %1747 = vmatpush1.bf16.xpose.msra.mxu0 0
      %1748 = vmatprep.subr.bf16.mxu0 0
      %1749 = vmatpush1.bf16.xpose.msra.mxu0 %v1732
      %1750 = vmatprep.subr.bf16.mxu0 0
      %1751 = vmatpush2.bf16.xpose.msra.mxu0 0
      %1752 = vmatprep.subr.bf16.mxu0 0
      %1753 = vmatpush2.bf16.xpose.msra.mxu0 0
      %1754 = vmatprep.subr.bf16.mxu0 0
      %1755 = vmatpush2.bf16.xpose.msra.mxu0 0
      %1756 = vmatprep.subr.bf16.mxu0 0
      %1757 = vmatpush2.bf16.xpose.msra.mxu0 0
      %1758 = vmatprep.subr.bf16.mxu0 0
      %1759 = vmatpush2.bf16.xpose.msra.mxu0 0
      %1760 = vmatprep.subr.bf16.mxu0 0
      %1761 = vmatpush2.bf16.xpose.msra.mxu0 0
      %1762 = vmatprep.subr.bf16.mxu0 0
      %1763 = vmatpush2.bf16.xpose.msra.mxu0 0
      %1764 = vmatprep.subr.bf16.mxu0 0
      %1765 = vmatpush2.bf16.xpose.msra.mxu0 0
      %1766 = vmatprep.mubr.bf16.mxu0 0
      %1767 = vmatmul.mubr.bf16.gmra.mxu0 %v1729
      %v1768 = vpop.f32.mrf.mxu0
      %v1769 = vadd.f32 0.0, %v1768
      %v1770 = vpop.f32.mrf.mxu0
      %v1771 = vpop.f32.mrf.mxu0
      %v1772 = vpop.f32.mrf.mxu0
      %1773 = vdwg.mxu0
      %v1774 = vmul.f32 %v1717, 0.125
      %v1775 = vmul.f32 %v1769, 0.125
      %v1776 = vadd.f32 %v1774, %v1448
      %v1777 = vadd.f32 %v1775, %v1448
      %v1778 = vsel %vm1552, %v1776, -inf
      %1779 = vmax.xlane.f32.xlu0 %v1778
      %v1780 = vpop.xlane.xlu0 %1779
      %v1781 = vsel %vm1552, %v1777, -inf
      %1782 = vmax.xlane.f32.xlu0 %v1781
      %v1783 = vpop.xlane.xlu0 %1782
      %v1784 = vsub.f32 %v1776, %v1780
      %v1785 = vsub.f32 %v1777, %v1783
      %v1786 = vmul.f32 %v1784, 1.442695
      %v1787 = vpow.pop %v1786
      %v1788 = vmul.f32 %v1785, 1.442695
      %v1789 = vpow.pop %v1788
      %v1790 = vsel %vm1552, %v1787, 0.0
      %1791 = vadd.xlane.f32.xlu0 %v1790
      %v1792 = vpop.xlane.xlu0 %1791
      %v1793 = vsel %vm1552, %v1789, 0.0
      %1794 = vadd.xlane.f32.xlu0 %v1793
      %v1795 = vpop.xlane.xlu0 %1794
      %v1796 = vrcp.pop %v1792
      %v1797 = vrcp.pop %v1795
      %v1798 = vmul.f32 %v1787, %v1796
      %v1799 = vmul.f32 %v1789, %v1797
      %v1800 = vpack.c.bf16 %v1798, %v1798
      %v1801 = vpack.c.bf16 %v1799, %v1799
      %1803 = vrot.lane.b32.xlu0 %v1453, 64
      %v1804 = vpop.permute.xlu0 %1803
      %v1806 = vsel %vm1552, %v1800, 0
      %v1809 = vsel %vm1580, %v1804, 0
      %1811 = vmatprep.subr.bf16.mxu0 0
      %1812 = vmatpush1.bf16.msra.mxu0 0
      %1813 = vmatprep.subr.bf16.mxu0 0
      %1814 = vmatpush1.bf16.msra.mxu0 0
      %1815 = vmatprep.subr.bf16.mxu0 0
      %1816 = vmatpush1.bf16.msra.mxu0 0
      %1817 = vmatprep.subr.bf16.mxu0 0
      %1818 = vmatpush1.bf16.msra.mxu0 0
      %1819 = vmatprep.subr.bf16.mxu0 0
      %1820 = vmatpush1.bf16.msra.mxu0 0
      %1821 = vmatprep.subr.bf16.mxu0 0
      %1822 = vmatpush1.bf16.msra.mxu0 0
      %1823 = vmatprep.subr.bf16.mxu0 0
      %1824 = vmatpush1.bf16.msra.mxu0 0
      %1825 = vmatprep.subr.bf16.mxu0 0
      %1826 = vmatpush1.bf16.msra.mxu0 %v1809
      %1827 = vmatprep.subr.bf16.mxu0 0
      %1828 = vmatpush2.bf16.msra.mxu0 0
      %1829 = vmatprep.subr.bf16.mxu0 0
      %1830 = vmatpush2.bf16.msra.mxu0 0
      %1831 = vmatprep.subr.bf16.mxu0 0
      %1832 = vmatpush2.bf16.msra.mxu0 0
      %1833 = vmatprep.subr.bf16.mxu0 0
      %1834 = vmatpush2.bf16.msra.mxu0 0
      %1835 = vmatprep.subr.bf16.mxu0 0
      %1836 = vmatpush2.bf16.msra.mxu0 0
      %1837 = vmatprep.subr.bf16.mxu0 0
      %1838 = vmatpush2.bf16.msra.mxu0 0
      %1839 = vmatprep.subr.bf16.mxu0 0
      %1840 = vmatpush2.bf16.msra.mxu0 0
      %1841 = vmatprep.subr.bf16.mxu0 0
      %1842 = vmatpush2.bf16.msra.mxu0 0
      %1843 = vmatprep.mubr.bf16.mxu0 0
      %1844 = vmatmul.mubr.bf16.gmra.mxu0 %v1806
      %v1845 = vpop.f32.mrf.mxu0
      %v1846 = vadd.f32 0.0, %v1845
      %v1847 = vpop.f32.mrf.mxu0
      %v1848 = vpop.f32.mrf.mxu0
      %v1849 = vpop.f32.mrf.mxu0
      %1850 = vdwg.mxu0
      %1852 = vrot.lane.b32.xlu0 %v1454, 64
      %v1853 = vpop.permute.xlu0 %1852
      %v1855 = vsel %vm1552, %v1801, 0
      %v1858 = vsel %vm1580, %v1853, 0
      %1860 = vmatprep.subr.bf16.mxu0 0
      %1861 = vmatpush1.bf16.msra.mxu0 0
      %1862 = vmatprep.subr.bf16.mxu0 0
      %1863 = vmatpush1.bf16.msra.mxu0 0
      %1864 = vmatprep.subr.bf16.mxu0 0
      %1865 = vmatpush1.bf16.msra.mxu0 0
      %1866 = vmatprep.subr.bf16.mxu0 0
      %1867 = vmatpush1.bf16.msra.mxu0 0
      %1868 = vmatprep.subr.bf16.mxu0 0
      %1869 = vmatpush1.bf16.msra.mxu0 0
      %1870 = vmatprep.subr.bf16.mxu0 0
      %1871 = vmatpush1.bf16.msra.mxu0 0
      %1872 = vmatprep.subr.bf16.mxu0 0
      %1873 = vmatpush1.bf16.msra.mxu0 0
      %1874 = vmatprep.subr.bf16.mxu0 0
      %1875 = vmatpush1.bf16.msra.mxu0 %v1858
      %1876 = vmatprep.subr.bf16.mxu0 0
      %1877 = vmatpush2.bf16.msra.mxu0 0
      %1878 = vmatprep.subr.bf16.mxu0 0
      %1879 = vmatpush2.bf16.msra.mxu0 0
      %1880 = vmatprep.subr.bf16.mxu0 0
      %1881 = vmatpush2.bf16.msra.mxu0 0
      %1882 = vmatprep.subr.bf16.mxu0 0
      %1883 = vmatpush2.bf16.msra.mxu0 0
      %1884 = vmatprep.subr.bf16.mxu0 0
      %1885 = vmatpush2.bf16.msra.mxu0 0
      %1886 = vmatprep.subr.bf16.mxu0 0
      %1887 = vmatpush2.bf16.msra.mxu0 0
      %1888 = vmatprep.subr.bf16.mxu0 0
      %1889 = vmatpush2.bf16.msra.mxu0 0
      %1890 = vmatprep.subr.bf16.mxu0 0
      %1891 = vmatpush2.bf16.msra.mxu0 0
      %1892 = vmatprep.mubr.bf16.mxu0 0
      %1893 = vmatmul.mubr.bf16.gmra.mxu0 %v1855
      %v1894 = vpop.f32.mrf.mxu0
      %v1895 = vadd.f32 0.0, %v1894
      %v1896 = vpop.f32.mrf.mxu0
      %v1897 = vpop.f32.mrf.mxu0
      %v1898 = vpop.f32.mrf.mxu0
      %1899 = vdwg.mxu0
      %1902 = vrot.lane.b32.xlu0 %v1846, 64
      %v1903 = vpop.permute.xlu0 %1902
      %1904 = vrot.lane.b32.xlu0 %v1895, 64
      %v1905 = vpop.permute.xlu0 %1904
      %v1908 = vsel %vm1455, %v1619, %v1903
      %v1909 = vsel %vm1455, %v1665, %v1905
      %v1910 = vpack.c.bf16 %v1909, %v1908
      %v1911 = vld [vmem:[%s965] sm:$0xf]
      %v1912 = vld [vmem:[%s965 + $0x4] sm:$0xf]
      %v1913 = vld [vmem:[%s965 + $0x8] sm:$0xf]
      %v1914 = vld [vmem:[%s965 + $0xc] sm:$0xf]
      %v1915 = vld [vmem:[%s965 + $0x10] sm:$0xf]
      %v1916 = vld [vmem:[%s965 + $0x14] sm:$0xf]
      %v1917 = vld [vmem:[%s965 + $0x18] sm:$0xf]
      %v1918 = vld [vmem:[%s965 + $0x1c] sm:$0xf]
      %v1919 = vld [vmem:[%s965 + $0x20] sm:$0xf]
      %v1920 = vld [vmem:[%s965 + $0x24] sm:$0xf]
      %v1921 = vld [vmem:[%s965 + $0x28] sm:$0xf]
      %v1922 = vld [vmem:[%s965 + $0x2c] sm:$0xf]
      %v1923 = vld [vmem:[%s965 + $0x30] sm:$0xf]
      %v1924 = vld [vmem:[%s965 + $0x34] sm:$0xf]
      %v1925 = vld [vmem:[%s965 + $0x38] sm:$0xf]
      %v1926 = vld [vmem:[%s965 + $0x3c] sm:$0xf]
      %v1943 = vunpack.c.l.b16 %v1911
      %v1944 = vunpack.c.l.b16 %v1912
      %v1945 = vunpack.c.l.b16 %v1913
      %v1946 = vunpack.c.l.b16 %v1914
      %v1947 = vunpack.c.l.b16 %v1915
      %v1948 = vunpack.c.l.b16 %v1916
      %v1949 = vunpack.c.l.b16 %v1917
      %v1950 = vunpack.c.l.b16 %v1918
      %v1951 = vunpack.c.l.b16 %v1919
      %v1952 = vunpack.c.l.b16 %v1920
      %v1953 = vunpack.c.l.b16 %v1921
      %v1954 = vunpack.c.l.b16 %v1922
      %v1955 = vunpack.c.l.b16 %v1923
      %v1956 = vunpack.c.l.b16 %v1924
      %v1957 = vunpack.c.l.b16 %v1925
      %v1958 = vunpack.c.l.b16 %v1926
      %v1959 = vpack.c.b16 %v1944, %v1943
      %v1960 = vpack.c.b16 %v1946, %v1945
      %v1961 = vpack.c.b16 %v1948, %v1947
      %v1962 = vpack.c.b16 %v1950, %v1949
      %v1963 = vpack.c.b16 %v1952, %v1951
      %v1964 = vpack.c.b16 %v1954, %v1953
      %v1965 = vpack.c.b16 %v1956, %v1955
      %v1966 = vpack.c.b16 %v1958, %v1957
      %1975 = vmatprep.subr.bf16.mxu0 0
      %1976 = vmatpush1.bf16.msra.mxu0 %v1966
      %1977 = vmatprep.subr.bf16.mxu0 0
      %1978 = vmatpush1.bf16.msra.mxu0 %v1965
      %1979 = vmatprep.subr.bf16.mxu0 0
      %1980 = vmatpush1.bf16.msra.mxu0 %v1964
      %1981 = vmatprep.subr.bf16.mxu0 0
      %1982 = vmatpush1.bf16.msra.mxu0 %v1963
      %1983 = vmatprep.subr.bf16.mxu0 0
      %1984 = vmatpush1.bf16.msra.mxu0 %v1962
      %1985 = vmatprep.subr.bf16.mxu0 0
      %1986 = vmatpush1.bf16.msra.mxu0 %v1961
      %1987 = vmatprep.subr.bf16.mxu0 0
      %1988 = vmatpush1.bf16.msra.mxu0 %v1960
      %1989 = vmatprep.subr.bf16.mxu0 0
      %1990 = vmatpush1.bf16.msra.mxu0 %v1959
      %1991 = vmatprep.subr.bf16.mxu0 0
      %1992 = vmatpush2.bf16.msra.mxu0 0
      %1993 = vmatprep.subr.bf16.mxu0 0
      %1994 = vmatpush2.bf16.msra.mxu0 0
      %1995 = vmatprep.subr.bf16.mxu0 0
      %1996 = vmatpush2.bf16.msra.mxu0 0
      %1997 = vmatprep.subr.bf16.mxu0 0
      %1998 = vmatpush2.bf16.msra.mxu0 0
      %1999 = vmatprep.subr.bf16.mxu0 0
      %2000 = vmatpush2.bf16.msra.mxu0 0
      %2001 = vmatprep.subr.bf16.mxu0 0
      %2002 = vmatpush2.bf16.msra.mxu0 0
      %2003 = vmatprep.subr.bf16.mxu0 0
      %2004 = vmatpush2.bf16.msra.mxu0 0
      %2005 = vmatprep.subr.bf16.mxu0 0
      %2006 = vmatpush2.bf16.msra.mxu0 0
      %2007 = vmatprep.mubr.bf16.mxu0 0
      %2008 = vmatmul.mubr.bf16.gmra.mxu0 %v1910
      %v2009 = vpop.f32.mrf.mxu0
      %v2010 = vadd.f32 0.0, %v2009
      %v2011 = vpop.f32.mrf.mxu0
      %v2012 = vpop.f32.mrf.mxu0
      %v2013 = vadd.f32 0.0, %v2012
      %v2014 = vpop.f32.mrf.mxu0
      %2015 = vdwg.mxu0
      %v2016 = vadd.f32 %v1269, %v2010
      %v2017 = vadd.f32 %v1270, %v2013
      %v2018 = vld [vmem:[%s968] sm:$0x1]
      %v2020 = vlaneseq
      %v2021 = vshrl.u32 %v2020, 7
      %v2022 = vsub.s32 0, %v2021
      %v2023 = vrot.slane %v2018, %v2022
      %v2025 = vadd.f32 %v2016, %v2023
      %v2026 = vadd.f32 %v2017, %v2023
      %v2027 = vld [vmem:[%s971] sm:$0x1]
      %v2028 = vld [vmem:[%s974] sm:$0x1]
      %v2029 = vsel %vm1273, %v2025, 0.0
      %2030 = vadd.xlane.f32.xlu0 %v2029
      %v2031 = vpop.xlane.xlu0 %2030
      %v2032 = vsel %vm1273, %v2026, 0.0
      %2033 = vadd.xlane.f32.xlu0 %v2032
      %v2034 = vpop.xlane.xlu0 %2033
      %v2035 = vmul.f32 %v2031, %v1280
      %v2036 = vmul.f32 %v2034, %v1280
      %v2037 = vsub.f32 %v2025, %v2035
      %v2038 = vsub.f32 %v2026, %v2036
      %v2039 = vmul.f32 %v2037, %v2037
      %v2040 = vmul.f32 %v2038, %v2038
      %v2041 = vsel %vm1273, %v2039, 0.0
      %2042 = vadd.xlane.f32.xlu0 %v2041
      %v2043 = vpop.xlane.xlu0 %2042
      %v2044 = vsel %vm1273, %v2040, 0.0
      %2045 = vadd.xlane.f32.xlu0 %v2044
      %v2046 = vpop.xlane.xlu0 %2045
      %v2047 = vmul.f32 %v2043, %v1280
      %v2048 = vmul.f32 %v2046, %v1280
      %v2049 = vadd.f32 %v2047, 1e-05
      %v2050 = vadd.f32 %v2048, 1e-05
      %v2051 = vrsqrt.pop %v2049
      %v2052 = vrsqrt.pop %v2050
      %v2053 = vmul.f32 %v2037, %v2051
      %v2054 = vmul.f32 %v2038, %v2052
      %v2056 = vlaneseq
      %v2057 = vshrl.u32 %v2056, 7
      %v2058 = vsub.s32 0, %v2057
      %v2059 = vrot.slane %v2027, %v2058
      %v2061 = vmul.f32 %v2053, %v2059
      %v2062 = vmul.f32 %v2054, %v2059
      %v2064 = vlaneseq
      %v2065 = vshrl.u32 %v2064, 7
      %v2066 = vsub.s32 0, %v2065
      %v2067 = vrot.slane %v2028, %v2066
      %v2069 = vadd.f32 %v2061, %v2067
      %v2070 = vadd.f32 %v2062, %v2067
      %v2071 = vpack.c.bf16 %v2070, %v2069
      %v2072 = vld [vmem:[%s979] sm:$0xf]
      %v2073 = vld [vmem:[%s979 + $0x4] sm:$0xf]
      %v2074 = vld [vmem:[%s979 + $0x8] sm:$0xf]
      %v2075 = vld [vmem:[%s979 + $0xc] sm:$0xf]
      %v2076 = vld [vmem:[%s982] sm:$0x1]
      %v2078 = vlaneseq
      %v2079 = vshrl.u32 %v2078, 7
      %v2080 = vsub.s32 0, %v2079
      %v2081 = vrot.slane %v2076, %v2080
      %v2087 = vunpack.c.l.b16 %v2072
      %v2088 = vunpack.c.l.b16 %v2073
      %v2089 = vunpack.c.l.b16 %v2074
      %v2090 = vunpack.c.l.b16 %v2075
      %v2091 = vpack.c.b16 %v2088, %v2087
      %v2092 = vpack.c.b16 %v2090, %v2089
      %v2096 = vsel %vm1273, %v2071, 0
      %2098 = vmatprep.subr.bf16.mxu0 0
      %2099 = vmatpush1.bf16.msra.mxu0 0
      %2100 = vmatprep.subr.bf16.mxu0 0
      %2101 = vmatpush1.bf16.msra.mxu0 0
      %2102 = vmatprep.subr.bf16.mxu0 0
      %2103 = vmatpush1.bf16.msra.mxu0 0
      %2104 = vmatprep.subr.bf16.mxu0 0
      %2105 = vmatpush1.bf16.msra.mxu0 0
      %2106 = vmatprep.subr.bf16.mxu0 0
      %2107 = vmatpush1.bf16.msra.mxu0 0
      %2108 = vmatprep.subr.bf16.mxu0 0
      %2109 = vmatpush1.bf16.msra.mxu0 0
      %2110 = vmatprep.subr.bf16.mxu0 0
      %2111 = vmatpush1.bf16.msra.mxu0 %v2092
      %2112 = vmatprep.subr.bf16.mxu0 0
      %2113 = vmatpush1.bf16.msra.mxu0 %v2091
      %2114 = vmatprep.subr.bf16.mxu0 0
      %2115 = vmatpush2.bf16.msra.mxu0 0
      %2116 = vmatprep.subr.bf16.mxu0 0
      %2117 = vmatpush2.bf16.msra.mxu0 0
      %2118 = vmatprep.subr.bf16.mxu0 0
      %2119 = vmatpush2.bf16.msra.mxu0 0
      %2120 = vmatprep.subr.bf16.mxu0 0
      %2121 = vmatpush2.bf16.msra.mxu0 0
      %2122 = vmatprep.subr.bf16.mxu0 0
      %2123 = vmatpush2.bf16.msra.mxu0 0
      %2124 = vmatprep.subr.bf16.mxu0 0
      %2125 = vmatpush2.bf16.msra.mxu0 0
      %2126 = vmatprep.subr.bf16.mxu0 0
      %2127 = vmatpush2.bf16.msra.mxu0 0
      %2128 = vmatprep.subr.bf16.mxu0 0
      %2129 = vmatpush2.bf16.msra.mxu0 0
      %2130 = vmatprep.mubr.bf16.mxu0 0
      %2131 = vmatmul.mubr.bf16.gmra.mxu0 %v2096
      %v2132 = vpop.f32.mrf.mxu0
      %v2133 = vadd.f32 %v2081, %v2132
      %v2134 = vpop.f32.mrf.mxu0
      %v2135 = vpop.f32.mrf.mxu0
      %v2136 = vadd.f32 %v2081, %v2135
      %v2137 = vpop.f32.mrf.mxu0
      %2138 = vdwg.mxu0
      %v2139 = vmul.f32 %v2133, 0.5
      %v2140 = vmul.f32 %v2136, 0.5
      %v2141 = vmul.f32 %v2133, 0.70710677
      %v2142 = vmul.f32 %v2136, 0.70710677
      %vm2143 = vcmp.ge.f32.partialorder %v2141, 0.0
      %vm2144 = vcmp.ge.f32.partialorder %v2142, 0.0
      %v2145 = vsel %vm2143, 1.0, -1.0
      %v2146 = vsel %vm2144, 1.0, -1.0
      %v2147 = vand.u32 2147483647, %v2141
      %v2148 = vand.u32 2147483647, %v2142
      %v2149 = vmul.f32 %v2147, 0.3275911
      %v2150 = vmul.f32 %v2148, 0.3275911
      %v2151 = vadd.f32 %v2149, 1.0
      %v2152 = vadd.f32 %v2150, 1.0
      %v2153 = vrcp.pop %v2151
      %v2154 = vmul.f32 1.0, %v2153
      %v2155 = vrcp.pop %v2152
      %v2156 = vmul.f32 1.0, %v2155
      %v2157 = vmul.f32 %v2154, 1.0614054
      %v2158 = vmul.f32 %v2156, 1.0614054
      %v2159 = vadd.f32 %v2157, -1.4531521
      %v2160 = vadd.f32 %v2158, -1.4531521
      %v2161 = vmul.f32 %v2154, %v2159
      %v2162 = vmul.f32 %v2156, %v2160
      %v2163 = vadd.f32 %v2161, 1.4214138
      %v2164 = vadd.f32 %v2162, 1.4214138
      %v2165 = vmul.f32 %v2154, %v2163
      %v2166 = vmul.f32 %v2156, %v2164
      %v2167 = vadd.f32 %v2165, -0.28449672
      %v2168 = vadd.f32 %v2166, -0.28449672
      %v2169 = vmul.f32 %v2154, %v2167
      %v2170 = vmul.f32 %v2156, %v2168
      %v2171 = vadd.f32 %v2169, 0.2548296
      %v2172 = vadd.f32 %v2170, 0.2548296
      %v2173 = vmul.f32 %v2154, %v2171
      %v2174 = vmul.f32 %v2156, %v2172
      %v2175 = vsub.f32 0.0, %v2147
      %v2176 = vsub.f32 0.0, %v2148
      %v2177 = vmul.f32 %v2175, %v2147
      %v2178 = vmul.f32 %v2176, %v2148
      %v2179 = vmul.f32 %v2177, 1.442695
      %v2180 = vpow.pop %v2179
      %v2181 = vmul.f32 %v2178, 1.442695
      %v2182 = vpow.pop %v2181
      %v2183 = vmul.f32 %v2173, %v2180
      %v2184 = vmul.f32 %v2174, %v2182
      %v2185 = vsub.f32 1.0, %v2183
      %v2186 = vsub.f32 1.0, %v2184
      %v2187 = vmul.f32 %v2145, %v2185
      %v2188 = vmul.f32 %v2146, %v2186
      %v2189 = vadd.f32 %v2187, 1.0
      %v2190 = vadd.f32 %v2188, 1.0
      %v2191 = vmul.f32 %v2139, %v2189
      %v2192 = vmul.f32 %v2140, %v2190
      %v2193 = vpack.c.bf16 %v2192, %v2191
      %v2194 = vld [vmem:[%s987] sm:$0xf]
      %v2195 = vld [vmem:[%s987 + $0x4] sm:$0xf]
      %v2196 = vld [vmem:[%s987 + $0x8] sm:$0xf]
      %v2197 = vld [vmem:[%s987 + $0xc] sm:$0xf]
      %v2198 = vld [vmem:[%s987 + $0x10] sm:$0xf]
      %v2199 = vld [vmem:[%s987 + $0x14] sm:$0xf]
      %v2200 = vld [vmem:[%s987 + $0x18] sm:$0xf]
      %v2201 = vld [vmem:[%s987 + $0x1c] sm:$0xf]
      %v2202 = vld [vmem:[%s990] sm:$0x1]
      %v2204 = vlaneseq
      %v2205 = vshrl.u32 %v2204, 7
      %v2206 = vsub.s32 0, %v2205
      %v2207 = vrot.slane %v2202, %v2206
      %v2217 = vunpack.c.l.b16 %v2194
      %v2218 = vunpack.c.l.b16 %v2195
      %v2219 = vunpack.c.l.b16 %v2196
      %v2220 = vunpack.c.l.b16 %v2197
      %v2221 = vunpack.c.l.b16 %v2198
      %v2222 = vunpack.c.l.b16 %v2199
      %v2223 = vunpack.c.l.b16 %v2200
      %v2224 = vunpack.c.l.b16 %v2201
      %v2225 = vpack.c.b16 %v2218, %v2217
      %v2226 = vpack.c.b16 %v2220, %v2219
      %v2227 = vpack.c.b16 %v2222, %v2221
      %v2228 = vpack.c.b16 %v2224, %v2223
      %v2234 = vsel %vm1455, %v2193, 0
      %2236 = vmatprep.subr.bf16.mxu0 0
      %2237 = vmatpush1.bf16.msra.mxu0 0
      %2238 = vmatprep.subr.bf16.mxu0 0
      %2239 = vmatpush1.bf16.msra.mxu0 0
      %2240 = vmatprep.subr.bf16.mxu0 0
      %2241 = vmatpush1.bf16.msra.mxu0 0
      %2242 = vmatprep.subr.bf16.mxu0 0
      %2243 = vmatpush1.bf16.msra.mxu0 0
      %2244 = vmatprep.subr.bf16.mxu0 0
      %2245 = vmatpush1.bf16.msra.mxu0 %v2228
      %2246 = vmatprep.subr.bf16.mxu0 0
      %2247 = vmatpush1.bf16.msra.mxu0 %v2227
      %2248 = vmatprep.subr.bf16.mxu0 0
      %2249 = vmatpush1.bf16.msra.mxu0 %v2226
      %2250 = vmatprep.subr.bf16.mxu0 0
      %2251 = vmatpush1.bf16.msra.mxu0 %v2225
      %2252 = vmatprep.subr.bf16.mxu0 0
      %2253 = vmatpush2.bf16.msra.mxu0 0
      %2254 = vmatprep.subr.bf16.mxu0 0
      %2255 = vmatpush2.bf16.msra.mxu0 0
      %2256 = vmatprep.subr.bf16.mxu0 0
      %2257 = vmatpush2.bf16.msra.mxu0 0
      %2258 = vmatprep.subr.bf16.mxu0 0
      %2259 = vmatpush2.bf16.msra.mxu0 0
      %2260 = vmatprep.subr.bf16.mxu0 0
      %2261 = vmatpush2.bf16.msra.mxu0 0
      %2262 = vmatprep.subr.bf16.mxu0 0
      %2263 = vmatpush2.bf16.msra.mxu0 0
      %2264 = vmatprep.subr.bf16.mxu0 0
      %2265 = vmatpush2.bf16.msra.mxu0 0
      %2266 = vmatprep.subr.bf16.mxu0 0
      %2267 = vmatpush2.bf16.msra.mxu0 0
      %2268 = vmatprep.mubr.bf16.mxu0 0
      %2269 = vmatmul.mubr.bf16.gmra.mxu0 %v2234
      %v2270 = vpop.f32.mrf.mxu0
      %v2271 = vadd.f32 %v2207, %v2270
      %v2272 = vpop.f32.mrf.mxu0
      %v2273 = vpop.f32.mrf.mxu0
      %v2274 = vadd.f32 %v2207, %v2273
      %v2275 = vpop.f32.mrf.mxu0
      %2276 = vdwg.mxu0
      %v2277 = vadd.f32 %v2025, %v2271
      %v2278 = vadd.f32 %v2026, %v2274
      %2279 = vst.msk [vmem:[#allocation2] sm:$0xff] %vm1273, %v2277
      %2280 = vst.msk [vmem:[#allocation2 + $0x8] sm:$0xff] %vm1273, %v2278
      %p2281 = scmp.eq.s32.totalorder %s41, 1
      // Predicated region
      $region137: #{vit_regressor_forward.1} parent=131 // pred_check
        %p2282 = pneg %p2281
      $region138: #{vit_regressor_forward.1} parent=131 // pred_check_branch
        %2284 = sbr.rel (%p2282) target = $region140
      $region139: #{vit_regressor_forward.1} parent=131 // pred_region
        %v2286 = vrot.slane %v2278, 7
        %vm2288 = vcmask 1040384
        %v2289 = vsel %vm2288, %v2277, %v2286
        %v2290 = vld [vmem:[%s20] sm:$0x1]
        %v2291 = vld [vmem:[%s21] sm:$0x1]
        %vm2292 = vcmask 254976
        %v2293 = vsel %vm2292, %v2289, 0.0
        %2294 = vadd.xlane.f32.xlu0 %v2293
        %v2295 = vpop.xlane.xlu0 %2294
        %v2296 = vmul.f32 %v2295, %v1280
        %v2297 = vsub.f32 %v2289, %v2296
        %v2298 = vmul.f32 %v2297, %v2297
        %v2299 = vsel %vm2292, %v2298, 0.0
        %2300 = vadd.xlane.f32.xlu0 %v2299
        %v2301 = vpop.xlane.xlu0 %2300
        %v2302 = vmul.f32 %v2301, %v1280
        %v2303 = vadd.f32 %v2302, 1e-05
        %v2304 = vrsqrt.pop %v2303
        %v2305 = vmul.f32 %v2297, %v2304
        %v2307 = vlaneseq
        %v2308 = vshrl.u32 %v2307, 7
        %v2309 = vsub.s32 0, %v2308
        %v2310 = vrot.slane %v2290, %v2309
        %v2312 = vmul.f32 %v2305, %v2310
        %v2314 = vlaneseq
        %v2315 = vshrl.u32 %v2314, 7
        %v2316 = vsub.s32 0, %v2315
        %v2317 = vrot.slane %v2291, %v2316
        %v2319 = vadd.f32 %v2312, %v2317
        %v2320 = vld [vmem:[%s22] sm:$0xff]
        %v2321 = vld [vmem:[%s22 + $0x8] sm:$0xff]
        %v2322 = vld [vmem:[%s22 + $0x10] sm:$0xff]
        %v2323 = vld [vmem:[%s22 + $0x18] sm:$0xff]
        %v2324 = vld [vmem:[%s23] sm:$0x1]
        %v2326 = vlaneseq
        %v2327 = vshrl.u32 %v2326, 7
        %v2328 = vsub.s32 0, %v2327
        %v2329 = vrot.slane %v2324, %v2328
        %v2332 = vsel %vm1273, %v2319, 0
        %2334 = vmatprep.subr.mxu0 0.0
        %2335 = vmatpush1.msra.mxu0 0.0
        %2336 = vmatprep.subr.mxu0 0.0
        %2337 = vmatpush1.msra.mxu0 0.0
        %2338 = vmatprep.subr.mxu0 0.0
        %2339 = vmatpush1.msra.mxu0 0.0
        %2340 = vmatprep.subr.mxu0 0.0
        %2341 = vmatpush1.msra.mxu0 0.0
        %2342 = vmatprep.subr.mxu0 0.0
        %2343 = vmatpush1.msra.mxu0 0.0
        %2344 = vmatprep.subr.mxu0 0.0
        %2345 = vmatpush1.msra.mxu0 0.0
        %2346 = vmatprep.subr.mxu0 0.0
        %2347 = vmatpush1.msra.mxu0 0.0
        %2348 = vmatprep.subr.mxu0 0.0
        %2349 = vmatpush1.msra.mxu0 0.0
        %2350 = vmatprep.subr.mxu0 0.0
        %2351 = vmatpush1.msra.mxu0 0.0
        %2352 = vmatprep.subr.mxu0 0.0
        %2353 = vmatpush1.msra.mxu0 0.0
        %2354 = vmatprep.subr.mxu0 0.0
        %2355 = vmatpush1.msra.mxu0 0.0
        %2356 = vmatprep.subr.mxu0 0.0
        %2357 = vmatpush1.msra.mxu0 0.0
        %2358 = vmatprep.subr.mxu0 0.0
        %2359 = vmatpush1.msra.mxu0 %v2323
        %2360 = vmatprep.subr.mxu0 0.0
        %2361 = vmatpush1.msra.mxu0 %v2322
        %2362 = vmatprep.subr.mxu0 0.0
        %2363 = vmatpush1.msra.mxu0 %v2321
        %2364 = vmatprep.subr.mxu0 0.0
        %2365 = vmatpush1.msra.mxu0 %v2320
        %2366 = vmatprep.subr.mxu0 0.0
        %2367 = vmatpush2.msra.mxu0 0.0
        %2368 = vmatprep.subr.mxu0 0.0
        %2369 = vmatpush2.msra.mxu0 0.0
        %2370 = vmatprep.subr.mxu0 0.0
        %2371 = vmatpush2.msra.mxu0 0.0
        %2372 = vmatprep.subr.mxu0 0.0
        %2373 = vmatpush2.msra.mxu0 0.0
        %2374 = vmatprep.subr.mxu0 0.0
        %2375 = vmatpush2.msra.mxu0 0.0
        %2376 = vmatprep.subr.mxu0 0.0
        %2377 = vmatpush2.msra.mxu0 0.0
        %2378 = vmatprep.subr.mxu0 0.0
        %2379 = vmatpush2.msra.mxu0 0.0
        %2380 = vmatprep.subr.mxu0 0.0
        %2381 = vmatpush2.msra.mxu0 0.0
        %2382 = vmatprep.subr.mxu0 0.0
        %2383 = vmatpush2.msra.mxu0 0.0
        %2384 = vmatprep.subr.mxu0 0.0
        %2385 = vmatpush2.msra.mxu0 0.0
        %2386 = vmatprep.subr.mxu0 0.0
        %2387 = vmatpush2.msra.mxu0 0.0
        %2388 = vmatprep.subr.mxu0 0.0
        %2389 = vmatpush2.msra.mxu0 0.0
        %2390 = vmatprep.subr.mxu0 0.0
        %2391 = vmatpush2.msra.mxu0 0.0
        %2392 = vmatprep.subr.mxu0 0.0
        %2393 = vmatpush2.msra.mxu0 0.0
        %2394 = vmatprep.subr.mxu0 0.0
        %2395 = vmatpush2.msra.mxu0 0.0
        %2396 = vmatprep.subr.mxu0 0.0
        %2397 = vmatpush2.msra.mxu0 0.0
        %2398 = vmatprep.mubr.f32.mxu0 0.0
        %2399 = vmatmul.mubr.f32.gmra.mxu0 %v2332
        %v2400 = vpop.f32.mrf.mxu0
        %v2401 = vadd.f32 %v2329, %v2400
        %v2402 = vpop.f32.mrf.mxu0
        %2403 = vdwg.mxu0
        %v2404 = vld [vmem:[%s24] sm:$0xff]
        %v2405 = vld [vmem:[%s25] sm:$0x1]
        %v2407 = vlaneseq
        %v2408 = vshrl.u32 %v2407, 7
        %v2409 = vsub.s32 0, %v2408
        %v2410 = vrot.slane %v2405, %v2409
        %v2413 = vsel %vm1552, %v2401, 0
        %2415 = vmatprep.subr.mxu0 0.0
        %2416 = vmatpush1.msra.mxu0 0.0
        %2417 = vmatprep.subr.mxu0 0.0
        %2418 = vmatpush1.msra.mxu0 0.0
        %2419 = vmatprep.subr.mxu0 0.0
        %2420 = vmatpush1.msra.mxu0 0.0
        %2421 = vmatprep.subr.mxu0 0.0
        %2422 = vmatpush1.msra.mxu0 0.0
        %2423 = vmatprep.subr.mxu0 0.0
        %2424 = vmatpush1.msra.mxu0 0.0
        %2425 = vmatprep.subr.mxu0 0.0
        %2426 = vmatpush1.msra.mxu0 0.0
        %2427 = vmatprep.subr.mxu0 0.0
        %2428 = vmatpush1.msra.mxu0 0.0
        %2429 = vmatprep.subr.mxu0 0.0
        %2430 = vmatpush1.msra.mxu0 0.0
        %2431 = vmatprep.subr.mxu0 0.0
        %2432 = vmatpush1.msra.mxu0 0.0
        %2433 = vmatprep.subr.mxu0 0.0
        %2434 = vmatpush1.msra.mxu0 0.0
        %2435 = vmatprep.subr.mxu0 0.0
        %2436 = vmatpush1.msra.mxu0 0.0
        %2437 = vmatprep.subr.mxu0 0.0
        %2438 = vmatpush1.msra.mxu0 0.0
        %2439 = vmatprep.subr.mxu0 0.0
        %2440 = vmatpush1.msra.mxu0 0.0
        %2441 = vmatprep.subr.mxu0 0.0
        %2442 = vmatpush1.msra.mxu0 0.0
        %2443 = vmatprep.subr.mxu0 0.0
        %2444 = vmatpush1.msra.mxu0 0.0
        %2445 = vmatprep.subr.mxu0 0.0
        %2446 = vmatpush1.msra.mxu0 %v2404
        %2447 = vmatprep.subr.mxu0 0.0
        %2448 = vmatpush2.msra.mxu0 0.0
        %2449 = vmatprep.subr.mxu0 0.0
        %2450 = vmatpush2.msra.mxu0 0.0
        %2451 = vmatprep.subr.mxu0 0.0
        %2452 = vmatpush2.msra.mxu0 0.0
        %2453 = vmatprep.subr.mxu0 0.0
        %2454 = vmatpush2.msra.mxu0 0.0
        %2455 = vmatprep.subr.mxu0 0.0
        %2456 = vmatpush2.msra.mxu0 0.0
        %2457 = vmatprep.subr.mxu0 0.0
        %2458 = vmatpush2.msra.mxu0 0.0
        %2459 = vmatprep.subr.mxu0 0.0
        %2460 = vmatpush2.msra.mxu0 0.0
        %2461 = vmatprep.subr.mxu0 0.0
        %2462 = vmatpush2.msra.mxu0 0.0
        %2463 = vmatprep.subr.mxu0 0.0
        %2464 = vmatpush2.msra.mxu0 0.0
        %2465 = vmatprep.subr.mxu0 0.0
        %2466 = vmatpush2.msra.mxu0 0.0
        %2467 = vmatprep.subr.mxu0 0.0
        %2468 = vmatpush2.msra.mxu0 0.0
        %2469 = vmatprep.subr.mxu0 0.0
        %2470 = vmatpush2.msra.mxu0 0.0
        %2471 = vmatprep.subr.mxu0 0.0
        %2472 = vmatpush2.msra.mxu0 0.0
        %2473 = vmatprep.subr.mxu0 0.0
        %2474 = vmatpush2.msra.mxu0 0.0
        %2475 = vmatprep.subr.mxu0 0.0
        %2476 = vmatpush2.msra.mxu0 0.0
        %2477 = vmatprep.subr.mxu0 0.0
        %2478 = vmatpush2.msra.mxu0 0.0
        %2479 = vmatprep.mubr.f32.mxu0 0.0
        %2480 = vmatmul.mubr.f32.gmra.mxu0 %v2413
        %v2481 = vpop.f32.mrf.mxu0
        %v2482 = vadd.f32 %v2410, %v2481
        %v2483 = vpop.f32.mrf.mxu0
        %2484 = vdwg.mxu0
        %v2485 = vmax.f32 %v2482, 0.0
        %v2486 = vld [vmem:[%s26] sm:$0xff]
        %v2487 = vld [vmem:[%s26 + $0x8] sm:$0xff]
        %v2488 = vld [vmem:[%s26 + $0x10] sm:$0xff]
        %v2489 = vld [vmem:[%s26 + $0x18] sm:$0xff]
        %v2490 = vld [vmem:[%s26 + $0x20] sm:$0xff]
        %v2491 = vld [vmem:[%s26 + $0x28] sm:$0xff]
        %v2492 = vld [vmem:[%s26 + $0x30] sm:$0xff]
        %v2493 = vld [vmem:[%s26 + $0x38] sm:$0xff]
        %v2494 = vld [vmem:[#allocation3] sm:$0x1]
        %v2496 = vlaneseq
        %v2497 = vshrl.u32 %v2496, 7
        %v2498 = vsub.s32 0, %v2497
        %v2499 = vrot.slane %v2494, %v2498
        %v2502 = vsel %vm1455, %v2485, 0
        %2504 = vmatprep.subr.mxu0 0.0
        %2505 = vmatpush1.msra.mxu0 0.0
        %2506 = vmatprep.subr.mxu0 0.0
        %2507 = vmatpush1.msra.mxu0 0.0
        %2508 = vmatprep.subr.mxu0 0.0
        %2509 = vmatpush1.msra.mxu0 0.0
        %2510 = vmatprep.subr.mxu0 0.0
        %2511 = vmatpush1.msra.mxu0 0.0
        %2512 = vmatprep.subr.mxu0 0.0
        %2513 = vmatpush1.msra.mxu0 0.0
        %2514 = vmatprep.subr.mxu0 0.0
        %2515 = vmatpush1.msra.mxu0 0.0
        %2516 = vmatprep.subr.mxu0 0.0
        %2517 = vmatpush1.msra.mxu0 0.0
        %2518 = vmatprep.subr.mxu0 0.0
        %2519 = vmatpush1.msra.mxu0 0.0
        %2520 = vmatprep.subr.mxu0 0.0
        %2521 = vmatpush1.msra.mxu0 %v2493
        %2522 = vmatprep.subr.mxu0 0.0
        %2523 = vmatpush1.msra.mxu0 %v2492
        %2524 = vmatprep.subr.mxu0 0.0
        %2525 = vmatpush1.msra.mxu0 %v2491
        %2526 = vmatprep.subr.mxu0 0.0
        %2527 = vmatpush1.msra.mxu0 %v2490
        %2528 = vmatprep.subr.mxu0 0.0
        %2529 = vmatpush1.msra.mxu0 %v2489
        %2530 = vmatprep.subr.mxu0 0.0
        %2531 = vmatpush1.msra.mxu0 %v2488
        %2532 = vmatprep.subr.mxu0 0.0
        %2533 = vmatpush1.msra.mxu0 %v2487
        %2534 = vmatprep.subr.mxu0 0.0
        %2535 = vmatpush1.msra.mxu0 %v2486
        %2536 = vmatprep.subr.mxu0 0.0
        %2537 = vmatpush2.msra.mxu0 0.0
        %2538 = vmatprep.subr.mxu0 0.0
        %2539 = vmatpush2.msra.mxu0 0.0
        %2540 = vmatprep.subr.mxu0 0.0
        %2541 = vmatpush2.msra.mxu0 0.0
        %2542 = vmatprep.subr.mxu0 0.0
        %2543 = vmatpush2.msra.mxu0 0.0
        %2544 = vmatprep.subr.mxu0 0.0
        %2545 = vmatpush2.msra.mxu0 0.0
        %2546 = vmatprep.subr.mxu0 0.0
        %2547 = vmatpush2.msra.mxu0 0.0
        %2548 = vmatprep.subr.mxu0 0.0
        %2549 = vmatpush2.msra.mxu0 0.0
        %2550 = vmatprep.subr.mxu0 0.0
        %2551 = vmatpush2.msra.mxu0 0.0
        %2552 = vmatprep.subr.mxu0 0.0
        %2553 = vmatpush2.msra.mxu0 0.0
        %2554 = vmatprep.subr.mxu0 0.0
        %2555 = vmatpush2.msra.mxu0 0.0
        %2556 = vmatprep.subr.mxu0 0.0
        %2557 = vmatpush2.msra.mxu0 0.0
        %2558 = vmatprep.subr.mxu0 0.0
        %2559 = vmatpush2.msra.mxu0 0.0
        %2560 = vmatprep.subr.mxu0 0.0
        %2561 = vmatpush2.msra.mxu0 0.0
        %2562 = vmatprep.subr.mxu0 0.0
        %2563 = vmatpush2.msra.mxu0 0.0
        %2564 = vmatprep.subr.mxu0 0.0
        %2565 = vmatpush2.msra.mxu0 0.0
        %2566 = vmatprep.subr.mxu0 0.0
        %2567 = vmatpush2.msra.mxu0 0.0
        %2568 = vmatprep.mubr.f32.mxu0 0.0
        %2569 = vmatmul.mubr.f32.gmra.mxu0 %v2502
        %v2570 = vpop.f32.mrf.mxu0
        %v2571 = vadd.f32 %v2499, %v2570
        %v2572 = vpop.f32.mrf.mxu0
        %2573 = vdwg.mxu0
        %vm2574 = vcmask 1024
        %2575 = vst.msk [vmem:[%s28] sm:$0x3] %vm2574, %v2571
      $region140: #{vit_regressor_forward.1} parent=131 // pred_fallthru
        _
      // Predicated region
      $region141: #{vit_regressor_forward.1} parent=131 // pred_check
        %p2576 = pneg %p697
      $region142: #{vit_regressor_forward.1} parent=131 // pred_check_branch
        %2578 = sbr.rel (%p2576) target = $region144
      $region143: #{vit_regressor_forward.1} parent=131 // pred_region
        _
      $region144: #{vit_regressor_forward.1} parent=131 // pred_fallthru
        _
      // Predicated region
      $region145: #{vit_regressor_forward.1} parent=131 // pred_check
        %p2579 = pneg %p697
      $region146: #{vit_regressor_forward.1} parent=131 // pred_check_branch
        %2581 = sbr.rel (%p2579) target = $region148
      $region147: #{vit_regressor_forward.1} parent=131 // pred_region
        _
      $region148: #{vit_regressor_forward.1} parent=131 // pred_fallthru
        _
    $region132: #{vit_regressor_forward.1} parent=5 // pred_fallthru
      _
    %p2582 = scmp.le.s32.totalorder 2, %s36
    // Predicated region
    $region149: #{vit_regressor_forward.1} parent=5 // pred_check
      %p2583 = pneg %p2582
    $region150: #{vit_regressor_forward.1} parent=5 // pred_check_branch
      %2585 = sbr.rel (%p2583) target = $region152
    $region151: #{vit_regressor_forward.1} parent=5 // pred_region
      %s2586 = ssub.s32 %s36, 2
    $region152: #{vit_regressor_forward.1} parent=5 // pred_fallthru
      _
  $region6: #{vit_regressor_forward.1} parent=0 // loop_footer
    %s40 = sadd.s32 1, %s36
  $region7: #{vit_regressor_forward.1} parent=0 // loop_footer_branch
    %35 = sbr.rel target = $region3
  $region8: #{vit_regressor_forward.1} parent=0 // loop_exit
    _

</llo_original>
